<compile_context>
chip_gen: v5e
topology: v5e:2x2
jax: 0.10.0
libtpu: 0.0.40
codegen_flags: <defaults>
</compile_context>

<pallas_src>
from functools import partial

import numpy as np
import jax
import jax.numpy as jnp
from jax.experimental import pallas as pl
from jax.experimental.pallas import tpu as pltpu

K = 5      # conv kernel size
PAD = 2    # conv padding


def _round_up(x, m):
    return (x + m - 1) // m * m


# ----------------------------------------------------------------------------
# Fused Pallas kernel: conv1 -> conv2 -> maxpool -> l1 -> l_out -> softmax
# ----------------------------------------------------------------------------
def _cnn_fused_kernel(x_ref, w1e_ref, b1_ref, w2e_ref, b2_ref,
                      l1w_ref, l1b_ref, low_ref, out_ref,
                      xpad_ref, h1pad_ref, pool_ref, flat_ref,
                      *, H, W, Cin, C1, pad, ksize):
    # x_ref   : (N, H, W*Cin) f32   row-packed NHWC input
    # w1e_ref : (K, RW1, W*C1) bf16 per-kh expanded conv1 weights (RW1 = 128-padded)
    # b1_ref  : (1, W*C1) f32       conv1 bias tiled over w
    # w2e_ref : (K, RW2, W*C1) bf16 per-kh expanded conv2 weights
    # b2_ref  : (1, W*C1) f32
    # l1w_ref : (H*W*C1, 128) bf16  l_1 weights; rows at odd h/w are zero (= 2x2 stride)
    # l1b_ref : (1, 128) f32
    # low_ref : (128, ncls) bf16
    # out_ref : (N, ncls) f32       softmax probabilities
    N = x_ref.shape[0]
    WCin = W * Cin
    WC1 = W * C1
    NH = N * H
    f32, bf16 = jnp.float32, jnp.bfloat16

    # ---- stage 0: zero-padded, row-packed input in VMEM ---------------------
    xpad_ref[...] = jnp.zeros_like(xpad_ref)
    xpad_ref[:, pad:pad + H, pad * Cin:pad * Cin + WCin] = x_ref[...]

    # ---- conv1: 5 row-shifted MXU matmuls (lane-dense, K padded to 128) -----
    acc1 = jnp.zeros((NH, WC1), f32)
    for kh in range(ksize):
        lhs = xpad_ref[:, kh:kh + H, :].reshape(NH, xpad_ref.shape[2])
        acc1 = acc1 + jnp.dot(lhs.astype(bf16), w1e_ref[kh],
                              preferred_element_type=f32)
    h1 = jnp.maximum(acc1 + b1_ref[...], 0.0)          # (N*H, W*C1)

    # ---- conv2: same structure, fed straight from VMEM ----------------------
    h1pad_ref[...] = jnp.zeros_like(h1pad_ref)
    h1pad_ref[:, pad:pad + H, pad * C1:pad * C1 + WC1] = h1.reshape(N, H, WC1)
    acc2 = jnp.zeros((NH, WC1), f32)
    for kh in range(ksize):
        lhs = h1pad_ref[:, kh:kh + H, :].reshape(NH, h1pad_ref.shape[2])
        acc2 = acc2 + jnp.dot(lhs.astype(bf16), w2e_ref[kh],
                              preferred_element_type=f32)
    h2 = jnp.maximum(acc2 + b2_ref[...], 0.0)          # (N*H, W*C1)

    # ---- fused 2x2 maxpool: max of 4 shifted VMEM views ---------------------
    # (stride-2 selection is folded into zeroed rows of l1w; out-of-window
    #  reads land in zeroed rows/lanes and are multiplied by zero weights)
    pool_ref[...] = jnp.zeros_like(pool_ref)
    pool_ref[0:NH, 0:WC1] = h2
    p01 = pool_ref[0:NH, C1:C1 + WC1]                  # (h,   w+1)
    p10 = pool_ref[1:NH + 1, 0:WC1]                    # (h+1, w  )
    p11 = pool_ref[1:NH + 1, C1:C1 + WC1]              # (h+1, w+1)
    pooled = jnp.maximum(jnp.maximum(h2, p01), jnp.maximum(p10, p11))

    # ---- flatten to lane-dense (N, H*W*C1) with aligned 128-lane stores -----
    pooled3 = pooled.reshape(N, H, WC1)
    for h in range(H):
        flat_ref[:, h * WC1:(h + 1) * WC1] = pooled3[:, h, :]

    # ---- MLP head + softmax --------------------------------------------------
    hid = jnp.dot(flat_ref[...].astype(bf16), l1w_ref[...],
                  preferred_element_type=f32)
    hid = jnp.maximum(hid + l1b_ref[...], 0.0)         # (N, 128), cols 100..127 stay 0
    logits = jnp.dot(hid.astype(bf16), low_ref[...],
                     preferred_element_type=f32)       # (N, ncls)
    m = jnp.max(logits, axis=1, keepdims=True)
    e = jnp.exp(logits - m)
    inv = pl.reciprocal(jnp.sum(e, axis=1, keepdims=True), approx=True)
    out_ref[...] = (e * inv).astype(out_ref.dtype)


# ----------------------------------------------------------------------------
# Wrapper
# ----------------------------------------------------------------------------
def cnn_forward(x_nchw, kp):
    """Matches CNN.forward: x is NCHW like PyTorch, returns softmax probs."""
    N, Cin, H, W = x_nchw.shape
    WC1 = kp["b1"].shape[1]
    C1 = WC1 // W
    ncls = kp["lout_w"].shape[1]
    rw1 = kp["w1e"].shape[1]
    rw2 = kp["w2e"].shape[1]
    ksize = kp["w1e"].shape[0]

    # Only per-call XLA glue: NCHW -> row-packed NHWC rows (N, H, W*Cin).
    x_rows = jnp.transpose(x_nchw, (0, 2, 3, 1)).reshape(N, H, W * Cin)
    x_rows = x_rows.astype(jnp.float32)

    kernel = partial(_cnn_fused_kernel, H=H, W=W, Cin=Cin, C1=C1,
                     pad=PAD, ksize=ksize)
    return pl.pallas_call(
        kernel,
        out_shape=jax.ShapeDtypeStruct((N, ncls), jnp.float32),
        in_specs=[pl.BlockSpec(memory_space=pltpu.MemorySpace.VMEM)] * 8,
        out_specs=pl.BlockSpec(memory_space=pltpu.MemorySpace.VMEM),
        scratch_shapes=[
            pltpu.VMEM((N, H + 2 * PAD, rw1), jnp.float32),   # padded input rows
            pltpu.VMEM((N, H + 2 * PAD, rw2), jnp.float32),   # padded conv1 rows
            pltpu.VMEM((N * H + 8, WC1 + C1), jnp.float32),   # pooling window buffer
            pltpu.VMEM((N, H * W * C1), jnp.float32),         # lane-dense flatten
        ],
    )(x_rows, kp["w1e"], kp["b1"], kp["w2e"], kp["b2"],
      kp["l1w"], kp["l1b"], kp["lout_w"])


# ----------------------------------------------------------------------------
# One-time host-side parameter preparation
# ----------------------------------------------------------------------------
def _expand_conv_rows(w_kkio, width, row_pad):
    """(K, K, Cin, Cout) conv weight -> per-kh row-matmul weights:
       We[kh, (w+kw)*Cin + ci, w*Cout + co] = w[kh, kw, ci, co]; zero elsewhere."""
    k, _, cin, cout = w_kkio.shape
    we = np.zeros((k, row_pad, width * cout), np.float32)
    for kh in range(k):
        for kw in range(k):
            for w in range(width):
                we[kh, (w + kw) * cin:(w + kw) * cin + cin,
                   w * cout:w * cout + cout] = w_kkio[kh, kw]
    return we


def prepare_params(raw, height, width, num_filters):
    H, W, C1 = height, width, num_filters
    Cin = raw["conv1_w"].shape[2]
    ncls = raw["lout_w"].shape[1]
    num_l1 = raw["l1_b"].shape[1]
    nl1_pad = _round_up(num_l1, 128)
    rw1 = _round_up((W + 2 * PAD) * Cin, 128)
    rw2 = _round_up((W + 2 * PAD) * C1, 128)
    ho, wo = H // 2, W // 2

    w1e = _expand_conv_rows(np.asarray(raw["conv1_w"]), W, rw1)
    w2e = _expand_conv_rows(np.asarray(raw["conv2_w"]), W, rw2)
    b1t = np.tile(np.asarray(raw["conv1_b"]), (1, W))        # (1, W*C1)
    b2t = np.tile(np.asarray(raw["conv2_b"]), (1, W))

    # l_1 weight: torch flatten order is (c, ho, wo).  Scatter its rows into the
    # kernel's lane-dense (h, w, c) flatten of the *un*-downsampled pooled map;
    # rows at odd h or odd w stay zero -> implements the stride-2 pool selection
    # inside the matmul.  Hidden dim padded 100 -> 128 with zeros.
    l1w_raw = np.asarray(raw["l1_w"])                         # (C1*ho*wo, num_l1)
    l1w_eff = np.zeros((H * W * C1, nl1_pad), np.float32)
    for h in range(0, H, 2):
        for w in range(0, W, 2):
            for c in range(C1):
                src = c * (ho * wo) + (h // 2) * wo + (w // 2)
                dst = (h * W + w) * C1 + c
                l1w_eff[dst, :num_l1] = l1w_raw[src]

    l1b = np.zeros((1, nl1_pad), np.float32)
    l1b[:, :num_l1] = np.asarray(raw["l1_b"])
    low = np.zeros((nl1_pad, ncls), np.float32)
    low[:num_l1] = np.asarray(raw["lout_w"])

    return {
        "w1e": jnp.asarray(w1e, jnp.bfloat16),
        "b1": jnp.asarray(b1t, jnp.float32),
        "w2e": jnp.asarray(w2e, jnp.bfloat16),
        "b2": jnp.asarray(b2t, jnp.float32),
        "l1w": jnp.asarray(l1w_eff, jnp.bfloat16),
        "l1b": jnp.asarray(l1b, jnp.float32),
        "lout_w": jnp.asarray(low, jnp.bfloat16),
    }


# ----------------------------------------------------------------------------
# Deterministic synthetic parameters (same semantics as the nn.Module)
# ----------------------------------------------------------------------------
def init_params(key, num_classes, channels, height, width, num_filters):
    ks = jax.random.split(key, 6)
    l1_in = num_filters * (height // 2) * (width // 2)
    num_l1 = 100
    # conv weights as (K, K, Cin, Cout) == torch weight transposed (2, 3, 1, 0);
    # l1_w / lout_w stored transposed vs torch (so forward is x @ W + b).
    return {
        "conv1_w": 0.1 * jax.random.normal(ks[0], (K, K, channels, num_filters), jnp.float32),
        "conv1_b": 0.1 * jax.random.normal(ks[1], (1, num_filters), jnp.float32),
        "conv2_w": 0.1 * jax.random.normal(ks[2], (K, K, num_filters, num_filters), jnp.float32),
        "conv2_b": 0.1 * jax.random.normal(ks[3], (1, num_filters), jnp.float32),
        "l1_w": 0.05 * jax.random.normal(ks[4], (l1_in, num_l1), jnp.float32),
        "l1_b": jnp.zeros((1, num_l1), jnp.float32),
        "lout_w": 0.05 * jax.random.normal(ks[5], (num_l1, num_classes), jnp.float32),
    }


# ----------------------------------------------------------------------------
# Pure-JAX reference of the original PyTorch module (f32, XLA) for a sanity check
# ----------------------------------------------------------------------------
def reference_forward(x_nchw, raw):
    w1 = jnp.transpose(raw["conv1_w"], (3, 2, 0, 1))   # -> torch OIHW
    w2 = jnp.transpose(raw["conv2_w"], (3, 2, 0, 1))
    y = jax.lax.conv_general_dilated(x_nchw, w1, (1, 1), [(PAD, PAD), (PAD, PAD)],
                                     dimension_numbers=("NCHW", "OIHW", "NCHW"))
    y = jax.nn.relu(y + raw["conv1_b"].reshape(1, -1, 1, 1))
    y = jax.lax.conv_general_dilated(y, w2, (1, 1), [(PAD, PAD), (PAD, PAD)],
                                     dimension_numbers=("NCHW", "OIHW", "NCHW"))
    y = jax.nn.relu(y + raw["conv2_b"].reshape(1, -1, 1, 1))
    y = jax.lax.reduce_window(y, -jnp.inf, jax.lax.max,
                              (1, 1, 2, 2), (1, 1, 2, 2), "VALID")
    y = y.reshape(y.shape[0], -1)                      # NCHW flatten (torch order)
    y = jax.nn.relu(y @ raw["l1_w"] + raw["l1_b"])
    return jax.nn.softmax(y @ raw["lout_w"], axis=1)


if __name__ == "__main__":
    num_classes, channels, height, width, num_filters = 10, 4, 16, 16, 8
    batch = 2

    key = jax.random.PRNGKey(0)
    k_params, k_x = jax.random.split(key)
    raw = init_params(k_params, num_classes, channels, height, width, num_filters)
    kparams = prepare_params(raw, height, width, num_filters)
    x = jax.random.normal(k_x, (batch, channels, height, width), jnp.float32)  # NCHW

    fwd = jax.jit(lambda xx: cnn_forward(xx, kparams))
    out = jax.block_until_ready(fwd(x))

    assert out.shape == (batch, num_classes)
    # softmax rows sum to ~1 (loose tol: approx-reciprocal + bf16 matmuls)
    assert bool(jnp.allclose(jnp.sum(out, axis=1), 1.0, atol=2e-2))
    # sanity-check against the pure-JAX/XLA reference of the original module
    ref = reference_forward(x, raw)
    assert bool(jnp.max(jnp.abs(out - ref)) < 3e-2)
    print("KERNEL_OK")
</pallas_src>

<mosaic_0001>
module attributes {stable_mosaic.version = 11 : i64} {
  func.func @_cnn_fused_kernel(%arg0: memref<2x16x64xf32, #tpu.memory_space<vmem>>, %arg1: memref<5x128x128xbf16, #tpu.memory_space<vmem>>, %arg2: memref<1x128xf32, #tpu.memory_space<vmem>>, %arg3: memref<5x256x128xbf16, #tpu.memory_space<vmem>>, %arg4: memref<1x128xf32, #tpu.memory_space<vmem>>, %arg5: memref<2048x128xbf16, #tpu.memory_space<vmem>>, %arg6: memref<1x128xf32, #tpu.memory_space<vmem>>, %arg7: memref<128x10xbf16, #tpu.memory_space<vmem>>, %arg8: memref<2x10xf32, #tpu.memory_space<vmem>>, %arg9: memref<2x20x128xf32, #tpu.memory_space<vmem>>, %arg10: memref<2x20x256xf32, #tpu.memory_space<vmem>>, %arg11: memref<40x136xf32, #tpu.memory_space<vmem>>, %arg12: memref<2x2048xf32, #tpu.memory_space<vmem>>) attributes {dimension_semantics = [], scalar_prefetch = 0 : i64, scratch_operands = 4 : i64, tpu.core_type = #tpu.core_type<tc>} {
    %cst = arith.constant 0.000000e+00 : f32
    %0 = vector.broadcast %cst : f32 to vector<2x20x128xf32>
    %c0 = arith.constant 0 : index
    %c0_0 = arith.constant 0 : index
    %c0_1 = arith.constant 0 : index
    %1 = vector.load %arg9[%c0, %c0_0, %c0_1] : memref<2x20x128xf32, #tpu.memory_space<vmem>>, vector<2x20x128xf32>
    tpu.vector_store %arg9[%c0, %c0_0, %c0_1], %0 {strides = array<i32>} : memref<2x20x128xf32, #tpu.memory_space<vmem>>, vector<2x20x128xf32>,
    %c0_2 = arith.constant 0 : index
    %c0_3 = arith.constant 0 : index
    %c0_4 = arith.constant 0 : index
    %2 = vector.load %arg0[%c0_2, %c0_3, %c0_4] : memref<2x16x64xf32, #tpu.memory_space<vmem>>, vector<2x16x64xf32>
    %c0_5 = arith.constant 0 : index
    %c2 = arith.constant 2 : index
    %c8 = arith.constant 8 : index
    %3 = vector.load %arg9[%c0_5, %c2, %c8] : memref<2x20x128xf32, #tpu.memory_space<vmem>>, vector<2x16x64xf32>
    tpu.vector_store %arg9[%c0_5, %c2, %c8], %2 {strides = array<i32>} : memref<2x20x128xf32, #tpu.memory_space<vmem>>, vector<2x16x64xf32>,
    %cst_6 = arith.constant 0.000000e+00 : f32
    %4 = vector.broadcast %cst_6 : f32 to vector<32x128xf32>
    %c0_7 = arith.constant 0 : index
    %c0_8 = arith.constant 0 : index
    %c0_9 = arith.constant 0 : index
    %5 = vector.load %arg9[%c0_7, %c0_8, %c0_9] : memref<2x20x128xf32, #tpu.memory_space<vmem>>, vector<2x16x128xf32>
    %6 = vector.shape_cast %5 : vector<2x16x128xf32> to vector<32x128xf32>
    %7 = arith.truncf %6 : vector<32x128xf32> to vector<32x128xbf16>
    %c0_10 = arith.constant 0 : index
    %c0_11 = arith.constant 0 : index
    %c0_12 = arith.constant 0 : index
    %8 = vector.load %arg1[%c0_10, %c0_11, %c0_12] : memref<5x128x128xbf16, #tpu.memory_space<vmem>>, vector<1x128x128xbf16>
    %9 = vector.shape_cast %8 : vector<1x128x128xbf16> to vector<128x128xbf16>
    %cst_13 = arith.constant dense<0.000000e+00> : vector<32x128xf32>
    %10 = tpu.matmul %7, %9, %cst_13 {dimension_numbers = #tpu.dot_dimension_numbers<[1], [0], [0], [1], [0, 0, 1, 1], [], []>} : vector<32x128xbf16>, vector<128x128xbf16>, vector<32x128xf32> -> vector<32x128xf32>
    %11 = arith.addf %4, %10 : vector<32x128xf32>
    %c0_14 = arith.constant 0 : index
    %c1 = arith.constant 1 : index
    %c0_15 = arith.constant 0 : index
    %12 = vector.load %arg9[%c0_14, %c1, %c0_15] : memref<2x20x128xf32, #tpu.memory_space<vmem>>, vector<2x16x128xf32>
    %13 = vector.shape_cast %12 : vector<2x16x128xf32> to vector<32x128xf32>
    %14 = arith.truncf %13 : vector<32x128xf32> to vector<32x128xbf16>
    %c1_16 = arith.constant 1 : index
    %c0_17 = arith.constant 0 : index
    %c0_18 = arith.constant 0 : index
    %15 = vector.load %arg1[%c1_16, %c0_17, %c0_18] : memref<5x128x128xbf16, #tpu.memory_space<vmem>>, vector<1x128x128xbf16>
    %16 = vector.shape_cast %15 : vector<1x128x128xbf16> to vector<128x128xbf16>
    %cst_19 = arith.constant dense<0.000000e+00> : vector<32x128xf32>
    %17 = tpu.matmul %14, %16, %cst_19 {dimension_numbers = #tpu.dot_dimension_numbers<[1], [0], [0], [1], [0, 0, 1, 1], [], []>} : vector<32x128xbf16>, vector<128x128xbf16>, vector<32x128xf32> -> vector<32x128xf32>
    %18 = arith.addf %11, %17 : vector<32x128xf32>
    %c0_20 = arith.constant 0 : index
    %c2_21 = arith.constant 2 : index
    %c0_22 = arith.constant 0 : index
    %19 = vector.load %arg9[%c0_20, %c2_21, %c0_22] : memref<2x20x128xf32, #tpu.memory_space<vmem>>, vector<2x16x128xf32>
    %20 = vector.shape_cast %19 : vector<2x16x128xf32> to vector<32x128xf32>
    %21 = arith.truncf %20 : vector<32x128xf32> to vector<32x128xbf16>
    %c2_23 = arith.constant 2 : index
    %c0_24 = arith.constant 0 : index
    %c0_25 = arith.constant 0 : index
    %22 = vector.load %arg1[%c2_23, %c0_24, %c0_25] : memref<5x128x128xbf16, #tpu.memory_space<vmem>>, vector<1x128x128xbf16>
    %23 = vector.shape_cast %22 : vector<1x128x128xbf16> to vector<128x128xbf16>
    %cst_26 = arith.constant dense<0.000000e+00> : vector<32x128xf32>
    %24 = tpu.matmul %21, %23, %cst_26 {dimension_numbers = #tpu.dot_dimension_numbers<[1], [0], [0], [1], [0, 0, 1, 1], [], []>} : vector<32x128xbf16>, vector<128x128xbf16>, vector<32x128xf32> -> vector<32x128xf32>
    %25 = arith.addf %18, %24 : vector<32x128xf32>
    %c0_27 = arith.constant 0 : index
    %c3 = arith.constant 3 : index
    %c0_28 = arith.constant 0 : index
    %26 = vector.load %arg9[%c0_27, %c3, %c0_28] : memref<2x20x128xf32, #tpu.memory_space<vmem>>, vector<2x16x128xf32>
    %27 = vector.shape_cast %26 : vector<2x16x128xf32> to vector<32x128xf32>
    %28 = arith.truncf %27 : vector<32x128xf32> to vector<32x128xbf16>
    %c3_29 = arith.constant 3 : index
    %c0_30 = arith.constant 0 : index
    %c0_31 = arith.constant 0 : index
    %29 = vector.load %arg1[%c3_29, %c0_30, %c0_31] : memref<5x128x128xbf16, #tpu.memory_space<vmem>>, vector<1x128x128xbf16>
    %30 = vector.shape_cast %29 : vector<1x128x128xbf16> to vector<128x128xbf16>
    %cst_32 = arith.constant dense<0.000000e+00> : vector<32x128xf32>
    %31 = tpu.matmul %28, %30, %cst_32 {dimension_numbers = #tpu.dot_dimension_numbers<[1], [0], [0], [1], [0, 0, 1, 1], [], []>} : vector<32x128xbf16>, vector<128x128xbf16>, vector<32x128xf32> -> vector<32x128xf32>
    %32 = arith.addf %25, %31 : vector<32x128xf32>
    %c0_33 = arith.constant 0 : index
    %c4 = arith.constant 4 : index
    %c0_34 = arith.constant 0 : index
    %33 = vector.load %arg9[%c0_33, %c4, %c0_34] : memref<2x20x128xf32, #tpu.memory_space<vmem>>, vector<2x16x128xf32>
    %34 = vector.shape_cast %33 : vector<2x16x128xf32> to vector<32x128xf32>
    %35 = arith.truncf %34 : vector<32x128xf32> to vector<32x128xbf16>
    %c4_35 = arith.constant 4 : index
    %c0_36 = arith.constant 0 : index
    %c0_37 = arith.constant 0 : index
    %36 = vector.load %arg1[%c4_35, %c0_36, %c0_37] : memref<5x128x128xbf16, #tpu.memory_space<vmem>>, vector<1x128x128xbf16>
    %37 = vector.shape_cast %36 : vector<1x128x128xbf16> to vector<128x128xbf16>
    %cst_38 = arith.constant dense<0.000000e+00> : vector<32x128xf32>
    %38 = tpu.matmul %35, %37, %cst_38 {dimension_numbers = #tpu.dot_dimension_numbers<[1], [0], [0], [1], [0, 0, 1, 1], [], []>} : vector<32x128xbf16>, vector<128x128xbf16>, vector<32x128xf32> -> vector<32x128xf32>
    %39 = arith.addf %32, %38 : vector<32x128xf32>
    %c0_39 = arith.constant 0 : index
    %c0_40 = arith.constant 0 : index
    %40 = vector.load %arg2[%c0_39, %c0_40] : memref<1x128xf32, #tpu.memory_space<vmem>>, vector<1x128xf32>
    %41 = vector.broadcast %40 : vector<1x128xf32> to vector<32x128xf32>
    %42 = arith.addf %39, %41 : vector<32x128xf32>
    %cst_41 = arith.constant 0.000000e+00 : f32
    %43 = vector.broadcast %cst_41 : f32 to vector<32x128xf32>
    %44 = arith.maximumf %42, %43 : vector<32x128xf32>
    %cst_42 = arith.constant 0.000000e+00 : f32
    %45 = vector.broadcast %cst_42 : f32 to vector<2x20x256xf32>
    %c0_43 = arith.constant 0 : index
    %c0_44 = arith.constant 0 : index
    %c0_45 = arith.constant 0 : index
    %46 = vector.load %arg10[%c0_43, %c0_44, %c0_45] : memref<2x20x256xf32, #tpu.memory_space<vmem>>, vector<2x20x256xf32>
    tpu.vector_store %arg10[%c0_43, %c0_44, %c0_45], %45 {strides = array<i32>} : memref<2x20x256xf32, #tpu.memory_space<vmem>>, vector<2x20x256xf32>,
    %47 = vector.shape_cast %44 : vector<32x128xf32> to vector<2x16x128xf32>
    %c0_46 = arith.constant 0 : index
    %c2_47 = arith.constant 2 : index
    %c16 = arith.constant 16 : index
    %48 = vector.load %arg10[%c0_46, %c2_47, %c16] : memref<2x20x256xf32, #tpu.memory_space<vmem>>, vector<2x16x128xf32>
    tpu.vector_store %arg10[%c0_46, %c2_47, %c16], %47 {strides = array<i32>} : memref<2x20x256xf32, #tpu.memory_space<vmem>>, vector<2x16x128xf32>,
    %cst_48 = arith.constant 0.000000e+00 : f32
    %49 = vector.broadcast %cst_48 : f32 to vector<32x128xf32>
    %c0_49 = arith.constant 0 : index
    %c0_50 = arith.constant 0 : index
    %c0_51 = arith.constant 0 : index
    %50 = vector.load %arg10[%c0_49, %c0_50, %c0_51] : memref<2x20x256xf32, #tpu.memory_space<vmem>>, vector<2x16x256xf32>
    %51 = vector.shape_cast %50 : vector<2x16x256xf32> to vector<32x256xf32>
    %52 = arith.truncf %51 : vector<32x256xf32> to vector<32x256xbf16>
    %c0_52 = arith.constant 0 : index
    %c0_53 = arith.constant 0 : index
    %c0_54 = arith.constant 0 : index
    %53 = vector.load %arg3[%c0_52, %c0_53, %c0_54] : memref<5x256x128xbf16, #tpu.memory_space<vmem>>, vector<1x256x128xbf16>
    %54 = vector.shape_cast %53 : vector<1x256x128xbf16> to vector<256x128xbf16>
    %cst_55 = arith.constant dense<0.000000e+00> : vector<32x128xf32>
    %55 = tpu.matmul %52, %54, %cst_55 {dimension_numbers = #tpu.dot_dimension_numbers<[1], [0], [0], [1], [0, 0, 1, 1], [], []>} : vector<32x256xbf16>, vector<256x128xbf16>, vector<32x128xf32> -> vector<32x128xf32>
    %56 = arith.addf %49, %55 : vector<32x128xf32>
    %c0_56 = arith.constant 0 : index
    %c1_57 = arith.constant 1 : index
    %c0_58 = arith.constant 0 : index
    %57 = vector.load %arg10[%c0_56, %c1_57, %c0_58] : memref<2x20x256xf32, #tpu.memory_space<vmem>>, vector<2x16x256xf32>
    %58 = vector.shape_cast %57 : vector<2x16x256xf32> to vector<32x256xf32>
    %59 = arith.truncf %58 : vector<32x256xf32> to vector<32x256xbf16>
    %c1_59 = arith.constant 1 : index
    %c0_60 = arith.constant 0 : index
    %c0_61 = arith.constant 0 : index
    %60 = vector.load %arg3[%c1_59, %c0_60, %c0_61] : memref<5x256x128xbf16, #tpu.memory_space<vmem>>, vector<1x256x128xbf16>
    %61 = vector.shape_cast %60 : vector<1x256x128xbf16> to vector<256x128xbf16>
    %cst_62 = arith.constant dense<0.000000e+00> : vector<32x128xf32>
    %62 = tpu.matmul %59, %61, %cst_62 {dimension_numbers = #tpu.dot_dimension_numbers<[1], [0], [0], [1], [0, 0, 1, 1], [], []>} : vector<32x256xbf16>, vector<256x128xbf16>, vector<32x128xf32> -> vector<32x128xf32>
    %63 = arith.addf %56, %62 : vector<32x128xf32>
    %c0_63 = arith.constant 0 : index
    %c2_64 = arith.constant 2 : index
    %c0_65 = arith.constant 0 : index
    %64 = vector.load %arg10[%c0_63, %c2_64, %c0_65] : memref<2x20x256xf32, #tpu.memory_space<vmem>>, vector<2x16x256xf32>
    %65 = vector.shape_cast %64 : vector<2x16x256xf32> to vector<32x256xf32>
    %66 = arith.truncf %65 : vector<32x256xf32> to vector<32x256xbf16>
    %c2_66 = arith.constant 2 : index
    %c0_67 = arith.constant 0 : index
    %c0_68 = arith.constant 0 : index
    %67 = vector.load %arg3[%c2_66, %c0_67, %c0_68] : memref<5x256x128xbf16, #tpu.memory_space<vmem>>, vector<1x256x128xbf16>
    %68 = vector.shape_cast %67 : vector<1x256x128xbf16> to vector<256x128xbf16>
    %cst_69 = arith.constant dense<0.000000e+00> : vector<32x128xf32>
    %69 = tpu.matmul %66, %68, %cst_69 {dimension_numbers = #tpu.dot_dimension_numbers<[1], [0], [0], [1], [0, 0, 1, 1], [], []>} : vector<32x256xbf16>, vector<256x128xbf16>, vector<32x128xf32> -> vector<32x128xf32>
    %70 = arith.addf %63, %69 : vector<32x128xf32>
    %c0_70 = arith.constant 0 : index
    %c3_71 = arith.constant 3 : index
    %c0_72 = arith.constant 0 : index
    %71 = vector.load %arg10[%c0_70, %c3_71, %c0_72] : memref<2x20x256xf32, #tpu.memory_space<vmem>>, vector<2x16x256xf32>
    %72 = vector.shape_cast %71 : vector<2x16x256xf32> to vector<32x256xf32>
    %73 = arith.truncf %72 : vector<32x256xf32> to vector<32x256xbf16>
    %c3_73 = arith.constant 3 : index
    %c0_74 = arith.constant 0 : index
    %c0_75 = arith.constant 0 : index
    %74 = vector.load %arg3[%c3_73, %c0_74, %c0_75] : memref<5x256x128xbf16, #tpu.memory_space<vmem>>, vector<1x256x128xbf16>
    %75 = vector.shape_cast %74 : vector<1x256x128xbf16> to vector<256x128xbf16>
    %cst_76 = arith.constant dense<0.000000e+00> : vector<32x128xf32>
    %76 = tpu.matmul %73, %75, %cst_76 {dimension_numbers = #tpu.dot_dimension_numbers<[1], [0], [0], [1], [0, 0, 1, 1], [], []>} : vector<32x256xbf16>, vector<256x128xbf16>, vector<32x128xf32> -> vector<32x128xf32>
    %77 = arith.addf %70, %76 : vector<32x128xf32>
    %c0_77 = arith.constant 0 : index
    %c4_78 = arith.constant 4 : index
    %c0_79 = arith.constant 0 : index
    %78 = vector.load %arg10[%c0_77, %c4_78, %c0_79] : memref<2x20x256xf32, #tpu.memory_space<vmem>>, vector<2x16x256xf32>
    %79 = vector.shape_cast %78 : vector<2x16x256xf32> to vector<32x256xf32>
    %80 = arith.truncf %79 : vector<32x256xf32> to vector<32x256xbf16>
    %c4_80 = arith.constant 4 : index
    %c0_81 = arith.constant 0 : index
    %c0_82 = arith.constant 0 : index
    %81 = vector.load %arg3[%c4_80, %c0_81, %c0_82] : memref<5x256x128xbf16, #tpu.memory_space<vmem>>, vector<1x256x128xbf16>
    %82 = vector.shape_cast %81 : vector<1x256x128xbf16> to vector<256x128xbf16>
    %cst_83 = arith.constant dense<0.000000e+00> : vector<32x128xf32>
    %83 = tpu.matmul %80, %82, %cst_83 {dimension_numbers = #tpu.dot_dimension_numbers<[1], [0], [0], [1], [0, 0, 1, 1], [], []>} : vector<32x256xbf16>, vector<256x128xbf16>, vector<32x128xf32> -> vector<32x128xf32>
    %84 = arith.addf %77, %83 : vector<32x128xf32>
    %c0_84 = arith.constant 0 : index
    %c0_85 = arith.constant 0 : index
    %85 = vector.load %arg4[%c0_84, %c0_85] : memref<1x128xf32, #tpu.memory_space<vmem>>, vector<1x128xf32>
    %86 = vector.broadcast %85 : vector<1x128xf32> to vector<32x128xf32>
    %87 = arith.addf %84, %86 : vector<32x128xf32>
    %cst_86 = arith.constant 0.000000e+00 : f32
    %88 = vector.broadcast %cst_86 : f32 to vector<32x128xf32>
    %89 = arith.maximumf %87, %88 : vector<32x128xf32>
    %cst_87 = arith.constant 0.000000e+00 : f32
    %90 = vector.broadcast %cst_87 : f32 to vector<40x136xf32>
    %c0_88 = arith.constant 0 : index
    %c0_89 = arith.constant 0 : index
    %91 = vector.load %arg11[%c0_88, %c0_89] : memref<40x136xf32, #tpu.memory_space<vmem>>, vector<40x136xf32>
    tpu.vector_store %arg11[%c0_88, %c0_89], %90 {strides = array<i32>} : memref<40x136xf32, #tpu.memory_space<vmem>>, vector<40x136xf32>,
    %c0_90 = arith.constant 0 : index
    %c0_91 = arith.constant 0 : index
    %92 = vector.load %arg11[%c0_90, %c0_91] : memref<40x136xf32, #tpu.memory_space<vmem>>, vector<32x128xf32>
    tpu.vector_store %arg11[%c0_90, %c0_91], %89 {strides = array<i32>} : memref<40x136xf32, #tpu.memory_space<vmem>>, vector<32x128xf32>,
    %c0_92 = arith.constant 0 : index
    %c8_93 = arith.constant 8 : index
    %93 = vector.load %arg11[%c0_92, %c8_93] : memref<40x136xf32, #tpu.memory_space<vmem>>, vector<32x128xf32>
    %c1_94 = arith.constant 1 : index
    %c0_95 = arith.constant 0 : index
    %94 = vector.load %arg11[%c1_94, %c0_95] : memref<40x136xf32, #tpu.memory_space<vmem>>, vector<32x128xf32>
    %c1_96 = arith.constant 1 : index
    %c8_97 = arith.constant 8 : index
    %95 = vector.load %arg11[%c1_96, %c8_97] : memref<40x136xf32, #tpu.memory_space<vmem>>, vector<32x128xf32>
    %96 = arith.maximumf %89, %93 : vector<32x128xf32>
    %97 = arith.maximumf %94, %95 : vector<32x128xf32>
    %98 = arith.maximumf %96, %97 : vector<32x128xf32>
    %99 = vector.shape_cast %98 : vector<32x128xf32> to vector<2x16x128xf32>
    %100 = vector.extract_strided_slice %99 {offsets = [0, 0, 0], sizes = [2, 1, 128], strides = [1, 1, 1]} : vector<2x16x128xf32> to vector<2x1x128xf32>
    %101 = vector.shape_cast %100 : vector<2x1x128xf32> to vector<2x128xf32>
    %c0_98 = arith.constant 0 : index
    %c0_99 = arith.constant 0 : index
    %102 = vector.load %arg12[%c0_98, %c0_99] : memref<2x2048xf32, #tpu.memory_space<vmem>>, vector<2x128xf32>
    tpu.vector_store %arg12[%c0_98, %c0_99], %101 {strides = array<i32>} : memref<2x2048xf32, #tpu.memory_space<vmem>>, vector<2x128xf32>,
    %103 = vector.extract_strided_slice %99 {offsets = [0, 1, 0], sizes = [2, 1, 128], strides = [1, 1, 1]} : vector<2x16x128xf32> to vector<2x1x128xf32>
    %104 = vector.shape_cast %103 : vector<2x1x128xf32> to vector<2x128xf32>
    %c0_100 = arith.constant 0 : index
    %c128 = arith.constant 128 : index
    %105 = vector.load %arg12[%c0_100, %c128] : memref<2x2048xf32, #tpu.memory_space<vmem>>, vector<2x128xf32>
    tpu.vector_store %arg12[%c0_100, %c128], %104 {strides = array<i32>} : memref<2x2048xf32, #tpu.memory_space<vmem>>, vector<2x128xf32>,
    %106 = vector.extract_strided_slice %99 {offsets = [0, 2, 0], sizes = [2, 1, 128], strides = [1, 1, 1]} : vector<2x16x128xf32> to vector<2x1x128xf32>
    %107 = vector.shape_cast %106 : vector<2x1x128xf32> to vector<2x128xf32>
    %c0_101 = arith.constant 0 : index
    %c256 = arith.constant 256 : index
    %108 = vector.load %arg12[%c0_101, %c256] : memref<2x2048xf32, #tpu.memory_space<vmem>>, vector<2x128xf32>
    tpu.vector_store %arg12[%c0_101, %c256], %107 {strides = array<i32>} : memref<2x2048xf32, #tpu.memory_space<vmem>>, vector<2x128xf32>,
    %109 = vector.extract_strided_slice %99 {offsets = [0, 3, 0], sizes = [2, 1, 128], strides = [1, 1, 1]} : vector<2x16x128xf32> to vector<2x1x128xf32>
    %110 = vector.shape_cast %109 : vector<2x1x128xf32> to vector<2x128xf32>
    %c0_102 = arith.constant 0 : index
    %c384 = arith.constant 384 : index
    %111 = vector.load %arg12[%c0_102, %c384] : memref<2x2048xf32, #tpu.memory_space<vmem>>, vector<2x128xf32>
    tpu.vector_store %arg12[%c0_102, %c384], %110 {strides = array<i32>} : memref<2x2048xf32, #tpu.memory_space<vmem>>, vector<2x128xf32>,
    %112 = vector.extract_strided_slice %99 {offsets = [0, 4, 0], sizes = [2, 1, 128], strides = [1, 1, 1]} : vector<2x16x128xf32> to vector<2x1x128xf32>
    %113 = vector.shape_cast %112 : vector<2x1x128xf32> to vector<2x128xf32>
    %c0_103 = arith.constant 0 : index
    %c512 = arith.constant 512 : index
    %114 = vector.load %arg12[%c0_103, %c512] : memref<2x2048xf32, #tpu.memory_space<vmem>>, vector<2x128xf32>
    tpu.vector_store %arg12[%c0_103, %c512], %113 {strides = array<i32>} : memref<2x2048xf32, #tpu.memory_space<vmem>>, vector<2x128xf32>,
    %115 = vector.extract_strided_slice %99 {offsets = [0, 5, 0], sizes = [2, 1, 128], strides = [1, 1, 1]} : vector<2x16x128xf32> to vector<2x1x128xf32>
    %116 = vector.shape_cast %115 : vector<2x1x128xf32> to vector<2x128xf32>
    %c0_104 = arith.constant 0 : index
    %c640 = arith.constant 640 : index
    %117 = vector.load %arg12[%c0_104, %c640] : memref<2x2048xf32, #tpu.memory_space<vmem>>, vector<2x128xf32>
    tpu.vector_store %arg12[%c0_104, %c640], %116 {strides = array<i32>} : memref<2x2048xf32, #tpu.memory_space<vmem>>, vector<2x128xf32>,
    %118 = vector.extract_strided_slice %99 {offsets = [0, 6, 0], sizes = [2, 1, 128], strides = [1, 1, 1]} : vector<2x16x128xf32> to vector<2x1x128xf32>
    %119 = vector.shape_cast %118 : vector<2x1x128xf32> to vector<2x128xf32>
    %c0_105 = arith.constant 0 : index
    %c768 = arith.constant 768 : index
    %120 = vector.load %arg12[%c0_105, %c768] : memref<2x2048xf32, #tpu.memory_space<vmem>>, vector<2x128xf32>
    tpu.vector_store %arg12[%c0_105, %c768], %119 {strides = array<i32>} : memref<2x2048xf32, #tpu.memory_space<vmem>>, vector<2x128xf32>,
    %121 = vector.extract_strided_slice %99 {offsets = [0, 7, 0], sizes = [2, 1, 128], strides = [1, 1, 1]} : vector<2x16x128xf32> to vector<2x1x128xf32>
    %122 = vector.shape_cast %121 : vector<2x1x128xf32> to vector<2x128xf32>
    %c0_106 = arith.constant 0 : index
    %c896 = arith.constant 896 : index
    %123 = vector.load %arg12[%c0_106, %c896] : memref<2x2048xf32, #tpu.memory_space<vmem>>, vector<2x128xf32>
    tpu.vector_store %arg12[%c0_106, %c896], %122 {strides = array<i32>} : memref<2x2048xf32, #tpu.memory_space<vmem>>, vector<2x128xf32>,
    %124 = vector.extract_strided_slice %99 {offsets = [0, 8, 0], sizes = [2, 1, 128], strides = [1, 1, 1]} : vector<2x16x128xf32> to vector<2x1x128xf32>
    %125 = vector.shape_cast %124 : vector<2x1x128xf32> to vector<2x128xf32>
    %c0_107 = arith.constant 0 : index
    %c1024 = arith.constant 1024 : index
    %126 = vector.load %arg12[%c0_107, %c1024] : memref<2x2048xf32, #tpu.memory_space<vmem>>, vector<2x128xf32>
    tpu.vector_store %arg12[%c0_107, %c1024], %125 {strides = array<i32>} : memref<2x2048xf32, #tpu.memory_space<vmem>>, vector<2x128xf32>,
    %127 = vector.extract_strided_slice %99 {offsets = [0, 9, 0], sizes = [2, 1, 128], strides = [1, 1, 1]} : vector<2x16x128xf32> to vector<2x1x128xf32>
    %128 = vector.shape_cast %127 : vector<2x1x128xf32> to vector<2x128xf32>
    %c0_108 = arith.constant 0 : index
    %c1152 = arith.constant 1152 : index
    %129 = vector.load %arg12[%c0_108, %c1152] : memref<2x2048xf32, #tpu.memory_space<vmem>>, vector<2x128xf32>
    tpu.vector_store %arg12[%c0_108, %c1152], %128 {strides = array<i32>} : memref<2x2048xf32, #tpu.memory_space<vmem>>, vector<2x128xf32>,
    %130 = vector.extract_strided_slice %99 {offsets = [0, 10, 0], sizes = [2, 1, 128], strides = [1, 1, 1]} : vector<2x16x128xf32> to vector<2x1x128xf32>
    %131 = vector.shape_cast %130 : vector<2x1x128xf32> to vector<2x128xf32>
    %c0_109 = arith.constant 0 : index
    %c1280 = arith.constant 1280 : index
    %132 = vector.load %arg12[%c0_109, %c1280] : memref<2x2048xf32, #tpu.memory_space<vmem>>, vector<2x128xf32>
    tpu.vector_store %arg12[%c0_109, %c1280], %131 {strides = array<i32>} : memref<2x2048xf32, #tpu.memory_space<vmem>>, vector<2x128xf32>,
    %133 = vector.extract_strided_slice %99 {offsets = [0, 11, 0], sizes = [2, 1, 128], strides = [1, 1, 1]} : vector<2x16x128xf32> to vector<2x1x128xf32>
    %134 = vector.shape_cast %133 : vector<2x1x128xf32> to vector<2x128xf32>
    %c0_110 = arith.constant 0 : index
    %c1408 = arith.constant 1408 : index
    %135 = vector.load %arg12[%c0_110, %c1408] : memref<2x2048xf32, #tpu.memory_space<vmem>>, vector<2x128xf32>
    tpu.vector_store %arg12[%c0_110, %c1408], %134 {strides = array<i32>} : memref<2x2048xf32, #tpu.memory_space<vmem>>, vector<2x128xf32>,
    %136 = vector.extract_strided_slice %99 {offsets = [0, 12, 0], sizes = [2, 1, 128], strides = [1, 1, 1]} : vector<2x16x128xf32> to vector<2x1x128xf32>
    %137 = vector.shape_cast %136 : vector<2x1x128xf32> to vector<2x128xf32>
    %c0_111 = arith.constant 0 : index
    %c1536 = arith.constant 1536 : index
    %138 = vector.load %arg12[%c0_111, %c1536] : memref<2x2048xf32, #tpu.memory_space<vmem>>, vector<2x128xf32>
    tpu.vector_store %arg12[%c0_111, %c1536], %137 {strides = array<i32>} : memref<2x2048xf32, #tpu.memory_space<vmem>>, vector<2x128xf32>,
    %139 = vector.extract_strided_slice %99 {offsets = [0, 13, 0], sizes = [2, 1, 128], strides = [1, 1, 1]} : vector<2x16x128xf32> to vector<2x1x128xf32>
    %140 = vector.shape_cast %139 : vector<2x1x128xf32> to vector<2x128xf32>
    %c0_112 = arith.constant 0 : index
    %c1664 = arith.constant 1664 : index
    %141 = vector.load %arg12[%c0_112, %c1664] : memref<2x2048xf32, #tpu.memory_space<vmem>>, vector<2x128xf32>
    tpu.vector_store %arg12[%c0_112, %c1664], %140 {strides = array<i32>} : memref<2x2048xf32, #tpu.memory_space<vmem>>, vector<2x128xf32>,
    %142 = vector.extract_strided_slice %99 {offsets = [0, 14, 0], sizes = [2, 1, 128], strides = [1, 1, 1]} : vector<2x16x128xf32> to vector<2x1x128xf32>
    %143 = vector.shape_cast %142 : vector<2x1x128xf32> to vector<2x128xf32>
    %c0_113 = arith.constant 0 : index
    %c1792 = arith.constant 1792 : index
    %144 = vector.load %arg12[%c0_113, %c1792] : memref<2x2048xf32, #tpu.memory_space<vmem>>, vector<2x128xf32>
    tpu.vector_store %arg12[%c0_113, %c1792], %143 {strides = array<i32>} : memref<2x2048xf32, #tpu.memory_space<vmem>>, vector<2x128xf32>,
    %145 = vector.extract_strided_slice %99 {offsets = [0, 15, 0], sizes = [2, 1, 128], strides = [1, 1, 1]} : vector<2x16x128xf32> to vector<2x1x128xf32>
    %146 = vector.shape_cast %145 : vector<2x1x128xf32> to vector<2x128xf32>
    %c0_114 = arith.constant 0 : index
    %c1920 = arith.constant 1920 : index
    %147 = vector.load %arg12[%c0_114, %c1920] : memref<2x2048xf32, #tpu.memory_space<vmem>>, vector<2x128xf32>
    tpu.vector_store %arg12[%c0_114, %c1920], %146 {strides = array<i32>} : memref<2x2048xf32, #tpu.memory_space<vmem>>, vector<2x128xf32>,
    %c0_115 = arith.constant 0 : index
    %c0_116 = arith.constant 0 : index
    %148 = vector.load %arg12[%c0_115, %c0_116] : memref<2x2048xf32, #tpu.memory_space<vmem>>, vector<2x2048xf32>
    %149 = arith.truncf %148 : vector<2x2048xf32> to vector<2x2048xbf16>
    %c0_117 = arith.constant 0 : index
    %c0_118 = arith.constant 0 : index
    %150 = vector.load %arg5[%c0_117, %c0_118] : memref<2048x128xbf16, #tpu.memory_space<vmem>>, vector<2048x128xbf16>
    %cst_119 = arith.constant dense<0.000000e+00> : vector<2x128xf32>
    %151 = tpu.matmul %149, %150, %cst_119 {dimension_numbers = #tpu.dot_dimension_numbers<[1], [0], [0], [1], [0, 0, 1, 1], [], []>} : vector<2x2048xbf16>, vector<2048x128xbf16>, vector<2x128xf32> -> vector<2x128xf32>
    %c0_120 = arith.constant 0 : index
    %c0_121 = arith.constant 0 : index
    %152 = vector.load %arg6[%c0_120, %c0_121] : memref<1x128xf32, #tpu.memory_space<vmem>>, vector<1x128xf32>
    %153 = vector.broadcast %152 : vector<1x128xf32> to vector<2x128xf32>
    %154 = arith.addf %151, %153 : vector<2x128xf32>
    %cst_122 = arith.constant 0.000000e+00 : f32
    %155 = vector.broadcast %cst_122 : f32 to vector<2x128xf32>
    %156 = arith.maximumf %154, %155 : vector<2x128xf32>
    %157 = arith.truncf %156 : vector<2x128xf32> to vector<2x128xbf16>
    %c0_123 = arith.constant 0 : index
    %c0_124 = arith.constant 0 : index
    %158 = vector.load %arg7[%c0_123, %c0_124] : memref<128x10xbf16, #tpu.memory_space<vmem>>, vector<128x10xbf16>
    %cst_125 = arith.constant dense<0.000000e+00> : vector<2x10xf32>
    %159 = tpu.matmul %157, %158, %cst_125 {dimension_numbers = #tpu.dot_dimension_numbers<[1], [0], [0], [1], [0, 0, 1, 1], [], []>} : vector<2x128xbf16>, vector<128x10xbf16>, vector<2x10xf32> -> vector<2x10xf32>
    %cst_126 = arith.constant dense<0xFF800000> : vector<2xf32>
    %160 = vector.multi_reduction <maximumf>, %159, %cst_126 [1] : vector<2x10xf32> to vector<2xf32>
    %161 = vector.shape_cast %160 : vector<2xf32> to vector<2x1xf32>
    %162 = vector.broadcast %161 : vector<2x1xf32> to vector<2x10xf32>
    %163 = arith.subf %159, %162 : vector<2x10xf32>
    %164 = math.exp %163 : vector<2x10xf32>
    %cst_127 = arith.constant dense<0.000000e+00> : vector<2xf32>
    %165 = vector.multi_reduction <add>, %164, %cst_127 [1] : vector<2x10xf32> to vector<2xf32>
    %166 = vector.shape_cast %165 : vector<2xf32> to vector<2x1xf32>
    %167 = tpu.reciprocal %166 {approx = true} : vector<2x1xf32> -> vector<2x1xf32>
    %168 = vector.broadcast %167 : vector<2x1xf32> to vector<2x10xf32>
    %169 = arith.mulf %164, %168 : vector<2x10xf32>
    %c0_128 = arith.constant 0 : index
    %c0_129 = arith.constant 0 : index
    %170 = vector.load %arg8[%c0_128, %c0_129] : memref<2x10xf32, #tpu.memory_space<vmem>>, vector<2x10xf32>
    tpu.vector_store %arg8[%c0_128, %c0_129], %169 {strides = array<i32>} : memref<2x10xf32, #tpu.memory_space<vmem>>, vector<2x10xf32>,
    return
  }
}

</mosaic_0001>

<llo_original>
// kernel: _lambda_.1
$region0: #{_lambda_.1}
  #allocation0 [shape = 'u32[]', space=smem, size = 0x4, offset = 0x4, fixed_abs, tag = 'smem constant byte address 0x4 - core index']
  #allocation1 [shape = 'u32[72,128]{1,0:T(1,128)}', space=vmem, size = 0x9000, scoped, tag = 'internal scratch']
  #allocation2 [shape = 'f32[2,20,128]{2,1,0:T(8,128)}', space=vmem, size = 0x6000, scoped, tag = 'scratch operand']
  #allocation3 [shape = 'f32[2,20,256]{2,1,0:T(8,128)}', space=vmem, size = 0xc000, scoped, tag = 'scratch operand']
  #allocation4 [shape = 'f32[40,136]{1,0:T(8,128)}', space=vmem, size = 0xa000, scoped, tag = 'scratch operand']
  #allocation5 [shape = 'f32[2,2048]{1,0:T(2,128)}', space=vmem, size = 0x4000, scoped, tag = 'scratch operand']
  %s0 = inlined_call_operand.vmem [shape: f32[2,16,64], index: 0, kind: input, shape index: {}]
  %s1 = inlined_call_operand.vmem [shape: bf16[5,128,128], index: 1, kind: input, shape index: {}]
  %s2 = inlined_call_operand.vmem [shape: f32[1,128], index: 2, kind: input, shape index: {}]
  %s3 = inlined_call_operand.hbm [shape: bf16[5,256,128], index: 3, kind: input, shape index: {}]
  %s4 = inlined_call_operand.vmem [shape: f32[1,128], index: 4, kind: input, shape index: {}]
  %s5 = inlined_call_operand.hbm [shape: bf16[2048,128], index: 5, kind: input, shape index: {}]
  %s6 = inlined_call_operand.vmem [shape: f32[1,128], index: 6, kind: input, shape index: {}]
  %s7 = inlined_call_operand.vmem [shape: bf16[128,10], index: 7, kind: input, shape index: {}]
  %s8 = inlined_call_operand.hbm [shape: f32[2,10], index: 8, kind: output, shape index: {}]
  %s9 = sld [smem:[#allocation0]]
  $region50: #{_lambda_.1} parent=0
    _
  %s11 = ssub.s32 1, %s9
  %s12 = scalar_select 0, %s11, %s9
  $region1: #{_lambda_.1} parent=0
    #allocation6 [shape = 'u8[327680]{0}', space=vmem, size = 0x50000, scoped, tag = 'input window, operand 3, single buffered']
    #allocation7 [shape = 's32[1]{0}', space=sflag, size = 0x4, scoped, tag = 'scoped memory for _lambda_.1']
    #allocation8 [shape = 's32[1]{0}', space=sflag, size = 0x4, scoped, tag = 'scoped memory for _lambda_.1']
    #allocation9 [shape = 'u8[524288]{0}', space=vmem, size = 0x80000, scoped, tag = 'input window, operand 5, single buffered']
    #allocation10 [shape = 's32[1]{0}', space=sflag, size = 0x4, scoped, tag = 'scoped memory for _lambda_.1']
    #allocation11 [shape = 'u8[1024]{0}', space=vmem, size = 0x400, scoped, tag = 'output window, operand 0, single buffered']
    %13 = vsyncpa [#allocation7], 0
    %14 = vsyncpa [#allocation10], 0
    %15 = vsyncpa [#allocation8], 0
    // Predicated region
    $region2: #{_lambda_.1} parent=1 // pred_check
      _
    $region3: #{_lambda_.1} parent=1 // pred_check_branch
      %17 = sbr.rel (0) target = $region5
    $region4: #{_lambda_.1} parent=1 // pred_region
      _
    $region5: #{_lambda_.1} parent=1 // pred_fallthru
      _
    // Predicated region
    $region6: #{_lambda_.1} parent=1 // pred_check
      _
    $region7: #{_lambda_.1} parent=1 // pred_check_branch
      %19 = sbr.rel (0) target = $region9
    $region8: #{_lambda_.1} parent=1 // pred_region
      _
    $region9: #{_lambda_.1} parent=1 // pred_fallthru
      _
    // Predicated region
    $region10: #{_lambda_.1} parent=1 // pred_check
      _
    $region11: #{_lambda_.1} parent=1 // pred_check_branch
      %21 = sbr.rel (0) target = $region13
    $region12: #{_lambda_.1} parent=1 // pred_region
      _
    $region13: #{_lambda_.1} parent=1 // pred_fallthru
      _
    // Predicated region
    $region14: #{_lambda_.1} parent=1 // pred_check
      _
    $region15: #{_lambda_.1} parent=1 // pred_check_branch
      %23 = sbr.rel (0) target = $region17
    $region16: #{_lambda_.1} parent=1 // pred_region
      %25 = vsyncadd [#allocation7], 0
      %s26 = sshll.u32 %s3, 4
      %s27 = int_to_ptr.hbm [resolvable:$true] %s26
      %s28 = sshll.u32 [#allocation6], 4
      %s29 = int_to_ptr.vmem [resolvable:$true] %s28
      %34 = dma.hbm_to_vmem [thread:$0]  %s27, 10240, %s29, [#allocation7], 64, 64, 4
    $region17: #{_lambda_.1} parent=1 // pred_fallthru
      _
    // Predicated region
    $region18: #{_lambda_.1} parent=1 // pred_check
      _
    $region19: #{_lambda_.1} parent=1 // pred_check_branch
      %36 = sbr.rel (0) target = $region21
    $region20: #{_lambda_.1} parent=1 // pred_region
      _
    $region21: #{_lambda_.1} parent=1 // pred_fallthru
      _
    // Predicated region
    $region22: #{_lambda_.1} parent=1 // pred_check
      _
    $region23: #{_lambda_.1} parent=1 // pred_check_branch
      %38 = sbr.rel (0) target = $region25
    $region24: #{_lambda_.1} parent=1 // pred_region
      %40 = vsyncadd [#allocation10], 0
      %s41 = sshll.u32 %s5, 4
      %s42 = int_to_ptr.hbm [resolvable:$true] %s41
      %s43 = sshll.u32 [#allocation9], 4
      %s44 = int_to_ptr.vmem [resolvable:$true] %s43
      %49 = dma.hbm_to_vmem [thread:$0]  %s42, 16384, %s44, [#allocation10], 64, 64, 4
    $region25: #{_lambda_.1} parent=1 // pred_fallthru
      _
    // Predicated region
    $region26: #{_lambda_.1} parent=1 // pred_check
      _
    $region27: #{_lambda_.1} parent=1 // pred_check_branch
      %51 = sbr.rel (0) target = $region29
    $region28: #{_lambda_.1} parent=1 // pred_region
      _
    $region29: #{_lambda_.1} parent=1 // pred_fallthru
      _
    // Predicated region
    $region30: #{_lambda_.1} parent=1 // pred_check
      _
    $region31: #{_lambda_.1} parent=1 // pred_check_branch
      %53 = sbr.rel (0) target = $region33
    $region32: #{_lambda_.1} parent=1 // pred_region
      _
    $region33: #{_lambda_.1} parent=1 // pred_fallthru
      _
    // Predicated region
    $region34: #{_lambda_.1} parent=1 // pred_check
      _
    $region35: #{_lambda_.1} parent=1 // pred_check_branch
      %55 = sbr.rel (0) target = $region37
    $region36: #{_lambda_.1} parent=1 // pred_region
      %57 = dma.done [#allocation7], 10240
    $region37: #{_lambda_.1} parent=1 // pred_fallthru
      _
    // Predicated region
    $region38: #{_lambda_.1} parent=1 // pred_check
      _
    $region39: #{_lambda_.1} parent=1 // pred_check_branch
      %59 = sbr.rel (0) target = $region41
    $region40: #{_lambda_.1} parent=1 // pred_region
      %61 = dma.done [#allocation10], 16384
    $region41: #{_lambda_.1} parent=1 // pred_fallthru
      _
    %62 = vst [vmem:[#allocation2] sm:$0xff] 0.0
    %63 = vst [vmem:[#allocation2 + $0x8] sm:$0xff] 0.0
    %64 = vst [vmem:[#allocation2 + $0x10] sm:$0xf] 0.0
    %65 = vst [vmem:[#allocation2 + $0x18] sm:$0xff] 0.0
    %66 = vst [vmem:[#allocation2 + $0x20] sm:$0xff] 0.0
    %67 = vst [vmem:[#allocation2 + $0x28] sm:$0xf] 0.0
    %v68 = vld [vmem:[%s0] sm:$0xff]
    %v69 = vld [vmem:[%s0 + $0x8] sm:$0xff]
    %v70 = vld [vmem:[%s0 + $0x10] sm:$0xff]
    %v71 = vld [vmem:[%s0 + $0x18] sm:$0xff]
    %76 = vrot.lane.b32.xlu0 %v68, 8
    %v77 = vpop.permute.xlu0 %76
    %78 = vrot.lane.b32.xlu0 %v69, 8
    %v79 = vpop.permute.xlu0 %78
    %80 = vrot.lane.b32.xlu0 %v70, 8
    %v81 = vpop.permute.xlu0 %80
    %82 = vrot.lane.b32.xlu0 %v71, 8
    %v83 = vpop.permute.xlu0 %82
    %vm88 = vcmask 588864
    %89 = vst.msk [vmem:[#allocation2 + $0x2] sm:$0xff] %vm88, %v77
    %90 = vst.msk [vmem:[#allocation2 + $0xa] sm:$0xff] %vm88, %v79
    %91 = vst.msk [vmem:[#allocation2 + $0x1a] sm:$0xff] %vm88, %v81
    %92 = vst.msk [vmem:[#allocation2 + $0x22] sm:$0xff] %vm88, %v83
    %v93 = vld [vmem:[#allocation2] sm:$0xff]
    %v94 = vld [vmem:[#allocation2 + $0x8] sm:$0xff]
    %v95 = vld [vmem:[#allocation2 + $0x18] sm:$0xff]
    %v96 = vld [vmem:[#allocation2 + $0x20] sm:$0xff]
    %v97 = vpack.c.bf16 %v94, %v93
    %v98 = vpack.c.bf16 %v96, %v95
    %v99 = vld [vmem:[%s1] sm:$0xf]
    %v100 = vld [vmem:[%s1 + $0x4] sm:$0xf]
    %v101 = vld [vmem:[%s1 + $0x8] sm:$0xf]
    %v102 = vld [vmem:[%s1 + $0xc] sm:$0xf]
    %v103 = vld [vmem:[%s1 + $0x10] sm:$0xf]
    %v104 = vld [vmem:[%s1 + $0x14] sm:$0xf]
    %v105 = vld [vmem:[%s1 + $0x18] sm:$0xf]
    %v106 = vld [vmem:[%s1 + $0x1c] sm:$0xf]
    %v107 = vld [vmem:[%s1 + $0x20] sm:$0xf]
    %v108 = vld [vmem:[%s1 + $0x24] sm:$0xf]
    %v109 = vld [vmem:[%s1 + $0x28] sm:$0xf]
    %v110 = vld [vmem:[%s1 + $0x2c] sm:$0xf]
    %v111 = vld [vmem:[%s1 + $0x30] sm:$0xf]
    %v112 = vld [vmem:[%s1 + $0x34] sm:$0xf]
    %v113 = vld [vmem:[%s1 + $0x38] sm:$0xf]
    %v114 = vld [vmem:[%s1 + $0x3c] sm:$0xf]
    %v115 = vld [vmem:[#allocation2 + $0x1] sm:$0xff]
    %v116 = vld [vmem:[#allocation2 + $0x9] sm:$0xff]
    %v117 = vld [vmem:[#allocation2 + $0x19] sm:$0xff]
    %v118 = vld [vmem:[#allocation2 + $0x21] sm:$0xff]
    %v119 = vpack.c.bf16 %v116, %v115
    %v120 = vpack.c.bf16 %v118, %v117
    %s121 = scalar_lea.vmem %s1, 64
    %v122 = vld [vmem:[%s121] sm:$0xf]
    %v123 = vld [vmem:[%s121 + $0x4] sm:$0xf]
    %v124 = vld [vmem:[%s121 + $0x8] sm:$0xf]
    %v125 = vld [vmem:[%s121 + $0xc] sm:$0xf]
    %v126 = vld [vmem:[%s121 + $0x10] sm:$0xf]
    %v127 = vld [vmem:[%s121 + $0x14] sm:$0xf]
    %v128 = vld [vmem:[%s121 + $0x18] sm:$0xf]
    %v129 = vld [vmem:[%s121 + $0x1c] sm:$0xf]
    %v130 = vld [vmem:[%s121 + $0x20] sm:$0xf]
    %v131 = vld [vmem:[%s121 + $0x24] sm:$0xf]
    %v132 = vld [vmem:[%s121 + $0x28] sm:$0xf]
    %v133 = vld [vmem:[%s121 + $0x2c] sm:$0xf]
    %v134 = vld [vmem:[%s121 + $0x30] sm:$0xf]
    %v135 = vld [vmem:[%s121 + $0x34] sm:$0xf]
    %v136 = vld [vmem:[%s121 + $0x38] sm:$0xf]
    %v137 = vld [vmem:[%s121 + $0x3c] sm:$0xf]
    %v154 = vunpack.c.l.b16 %v122
    %v155 = vunpack.c.l.b16 %v123
    %v156 = vunpack.c.l.b16 %v124
    %v157 = vunpack.c.l.b16 %v125
    %v158 = vunpack.c.l.b16 %v126
    %v159 = vunpack.c.l.b16 %v127
    %v160 = vunpack.c.l.b16 %v128
    %v161 = vunpack.c.l.b16 %v129
    %v162 = vunpack.c.l.b16 %v130
    %v163 = vunpack.c.l.b16 %v131
    %v164 = vunpack.c.l.b16 %v132
    %v165 = vunpack.c.l.b16 %v133
    %v166 = vunpack.c.l.b16 %v134
    %v167 = vunpack.c.l.b16 %v135
    %v168 = vunpack.c.l.b16 %v136
    %v169 = vunpack.c.l.b16 %v137
    %v170 = vpack.c.b16 %v155, %v154
    %v171 = vpack.c.b16 %v157, %v156
    %v172 = vpack.c.b16 %v159, %v158
    %v173 = vpack.c.b16 %v161, %v160
    %v174 = vpack.c.b16 %v163, %v162
    %v175 = vpack.c.b16 %v165, %v164
    %v176 = vpack.c.b16 %v167, %v166
    %v177 = vpack.c.b16 %v169, %v168
    %186 = vmatpush.bf16.msra.mxu0 %v177
    %187 = vmatpush.bf16.msra.mxu0 %v176
    %188 = vmatpush.bf16.msra.mxu0 %v175
    %189 = vmatpush.bf16.msra.mxu0 %v174
    %190 = vmatpush.bf16.msra.mxu0 %v173
    %191 = vmatpush.bf16.msra.mxu0 %v172
    %192 = vmatpush.bf16.msra.mxu0 %v171
    %193 = vmatpush.bf16.msra.mxu0 %v170
    %194 = vmatmul.bf16.gmra.mxu0 %v119
    %v195 = vpop.f32.mrf.mxu0
    %v196 = vadd.f32 0.0, %v195
    %v197 = vpop.f32.mrf.mxu0
    %v198 = vadd.f32 0.0, %v197
    %199 = vmatmul.bf16.gmra.mxu0 %v120
    %v200 = vpop.f32.mrf.mxu0
    %v201 = vadd.f32 0.0, %v200
    %v202 = vpop.f32.mrf.mxu0
    %v203 = vadd.f32 0.0, %v202
    %204 = vdwg.mxu0
    %v221 = vunpack.c.l.b16 %v99
    %v222 = vunpack.c.l.b16 %v100
    %v223 = vunpack.c.l.b16 %v101
    %v224 = vunpack.c.l.b16 %v102
    %v225 = vunpack.c.l.b16 %v103
    %v226 = vunpack.c.l.b16 %v104
    %v227 = vunpack.c.l.b16 %v105
    %v228 = vunpack.c.l.b16 %v106
    %v229 = vunpack.c.l.b16 %v107
    %v230 = vunpack.c.l.b16 %v108
    %v231 = vunpack.c.l.b16 %v109
    %v232 = vunpack.c.l.b16 %v110
    %v233 = vunpack.c.l.b16 %v111
    %v234 = vunpack.c.l.b16 %v112
    %v235 = vunpack.c.l.b16 %v113
    %v236 = vunpack.c.l.b16 %v114
    %v237 = vpack.c.b16 %v222, %v221
    %v238 = vpack.c.b16 %v224, %v223
    %v239 = vpack.c.b16 %v226, %v225
    %v240 = vpack.c.b16 %v228, %v227
    %v241 = vpack.c.b16 %v230, %v229
    %v242 = vpack.c.b16 %v232, %v231
    %v243 = vpack.c.b16 %v234, %v233
    %v244 = vpack.c.b16 %v236, %v235
    %253 = vmatpush.bf16.msra.mxu0 %v244
    %254 = vmatpush.bf16.msra.mxu0 %v243
    %255 = vmatpush.bf16.msra.mxu0 %v242
    %256 = vmatpush.bf16.msra.mxu0 %v241
    %257 = vmatpush.bf16.msra.mxu0 %v240
    %258 = vmatpush.bf16.msra.mxu0 %v239
    %259 = vmatpush.bf16.msra.mxu0 %v238
    %260 = vmatpush.bf16.msra.mxu0 %v237
    %261 = vmatmul.bf16.gmra.mxu0 %v97
    %v262 = vpop.f32.mrf.mxu0
    %v263 = vadd.f32 %v196, %v262
    %v264 = vpop.f32.mrf.mxu0
    %v265 = vadd.f32 %v198, %v264
    %266 = vmatmul.bf16.gmra.mxu0 %v98
    %v267 = vpop.f32.mrf.mxu0
    %v268 = vadd.f32 %v201, %v267
    %v269 = vpop.f32.mrf.mxu0
    %v270 = vadd.f32 %v203, %v269
    %271 = vdwg.mxu0
    %v272 = vld [vmem:[#allocation2 + $0x2] sm:$0xff]
    %v273 = vld [vmem:[#allocation2 + $0xa] sm:$0xff]
    %v274 = vld [vmem:[#allocation2 + $0x1a] sm:$0xff]
    %v275 = vld [vmem:[#allocation2 + $0x22] sm:$0xff]
    %v276 = vpack.c.bf16 %v273, %v272
    %v277 = vpack.c.bf16 %v275, %v274
    %s278 = scalar_lea.vmem %s1, 128
    %v279 = vld [vmem:[%s278] sm:$0xf]
    %v280 = vld [vmem:[%s278 + $0x4] sm:$0xf]
    %v281 = vld [vmem:[%s278 + $0x8] sm:$0xf]
    %v282 = vld [vmem:[%s278 + $0xc] sm:$0xf]
    %v283 = vld [vmem:[%s278 + $0x10] sm:$0xf]
    %v284 = vld [vmem:[%s278 + $0x14] sm:$0xf]
    %v285 = vld [vmem:[%s278 + $0x18] sm:$0xf]
    %v286 = vld [vmem:[%s278 + $0x1c] sm:$0xf]
    %v287 = vld [vmem:[%s278 + $0x20] sm:$0xf]
    %v288 = vld [vmem:[%s278 + $0x24] sm:$0xf]
    %v289 = vld [vmem:[%s278 + $0x28] sm:$0xf]
    %v290 = vld [vmem:[%s278 + $0x2c] sm:$0xf]
    %v291 = vld [vmem:[%s278 + $0x30] sm:$0xf]
    %v292 = vld [vmem:[%s278 + $0x34] sm:$0xf]
    %v293 = vld [vmem:[%s278 + $0x38] sm:$0xf]
    %v294 = vld [vmem:[%s278 + $0x3c] sm:$0xf]
    %v311 = vunpack.c.l.b16 %v279
    %v312 = vunpack.c.l.b16 %v280
    %v313 = vunpack.c.l.b16 %v281
    %v314 = vunpack.c.l.b16 %v282
    %v315 = vunpack.c.l.b16 %v283
    %v316 = vunpack.c.l.b16 %v284
    %v317 = vunpack.c.l.b16 %v285
    %v318 = vunpack.c.l.b16 %v286
    %v319 = vunpack.c.l.b16 %v287
    %v320 = vunpack.c.l.b16 %v288
    %v321 = vunpack.c.l.b16 %v289
    %v322 = vunpack.c.l.b16 %v290
    %v323 = vunpack.c.l.b16 %v291
    %v324 = vunpack.c.l.b16 %v292
    %v325 = vunpack.c.l.b16 %v293
    %v326 = vunpack.c.l.b16 %v294
    %v327 = vpack.c.b16 %v312, %v311
    %v328 = vpack.c.b16 %v314, %v313
    %v329 = vpack.c.b16 %v316, %v315
    %v330 = vpack.c.b16 %v318, %v317
    %v331 = vpack.c.b16 %v320, %v319
    %v332 = vpack.c.b16 %v322, %v321
    %v333 = vpack.c.b16 %v324, %v323
    %v334 = vpack.c.b16 %v326, %v325
    %343 = vmatpush.bf16.msra.mxu0 %v334
    %344 = vmatpush.bf16.msra.mxu0 %v333
    %345 = vmatpush.bf16.msra.mxu0 %v332
    %346 = vmatpush.bf16.msra.mxu0 %v331
    %347 = vmatpush.bf16.msra.mxu0 %v330
    %348 = vmatpush.bf16.msra.mxu0 %v329
    %349 = vmatpush.bf16.msra.mxu0 %v328
    %350 = vmatpush.bf16.msra.mxu0 %v327
    %351 = vmatmul.bf16.gmra.mxu0 %v276
    %v352 = vpop.f32.mrf.mxu0
    %v353 = vadd.f32 0.0, %v352
    %v354 = vpop.f32.mrf.mxu0
    %v355 = vadd.f32 0.0, %v354
    %356 = vmatmul.bf16.gmra.mxu0 %v277
    %v357 = vpop.f32.mrf.mxu0
    %v358 = vadd.f32 0.0, %v357
    %v359 = vpop.f32.mrf.mxu0
    %v360 = vadd.f32 0.0, %v359
    %361 = vdwg.mxu0
    %v362 = vadd.f32 %v263, %v353
    %v363 = vadd.f32 %v265, %v355
    %v364 = vadd.f32 %v268, %v358
    %v365 = vadd.f32 %v270, %v360
    %v366 = vld [vmem:[#allocation2 + $0x3] sm:$0xff]
    %v367 = vld [vmem:[#allocation2 + $0xb] sm:$0xff]
    %v368 = vld [vmem:[#allocation2 + $0x1b] sm:$0xff]
    %v369 = vld [vmem:[#allocation2 + $0x23] sm:$0xff]
    %v370 = vpack.c.bf16 %v367, %v366
    %v371 = vpack.c.bf16 %v369, %v368
    %s372 = scalar_lea.vmem %s1, 192
    %v373 = vld [vmem:[%s372] sm:$0xf]
    %v374 = vld [vmem:[%s372 + $0x4] sm:$0xf]
    %v375 = vld [vmem:[%s372 + $0x8] sm:$0xf]
    %v376 = vld [vmem:[%s372 + $0xc] sm:$0xf]
    %v377 = vld [vmem:[%s372 + $0x10] sm:$0xf]
    %v378 = vld [vmem:[%s372 + $0x14] sm:$0xf]
    %v379 = vld [vmem:[%s372 + $0x18] sm:$0xf]
    %v380 = vld [vmem:[%s372 + $0x1c] sm:$0xf]
    %v381 = vld [vmem:[%s372 + $0x20] sm:$0xf]
    %v382 = vld [vmem:[%s372 + $0x24] sm:$0xf]
    %v383 = vld [vmem:[%s372 + $0x28] sm:$0xf]
    %v384 = vld [vmem:[%s372 + $0x2c] sm:$0xf]
    %v385 = vld [vmem:[%s372 + $0x30] sm:$0xf]
    %v386 = vld [vmem:[%s372 + $0x34] sm:$0xf]
    %v387 = vld [vmem:[%s372 + $0x38] sm:$0xf]
    %v388 = vld [vmem:[%s372 + $0x3c] sm:$0xf]
    %v405 = vunpack.c.l.b16 %v373
    %v406 = vunpack.c.l.b16 %v374
    %v407 = vunpack.c.l.b16 %v375
    %v408 = vunpack.c.l.b16 %v376
    %v409 = vunpack.c.l.b16 %v377
    %v410 = vunpack.c.l.b16 %v378
    %v411 = vunpack.c.l.b16 %v379
    %v412 = vunpack.c.l.b16 %v380
    %v413 = vunpack.c.l.b16 %v381
    %v414 = vunpack.c.l.b16 %v382
    %v415 = vunpack.c.l.b16 %v383
    %v416 = vunpack.c.l.b16 %v384
    %v417 = vunpack.c.l.b16 %v385
    %v418 = vunpack.c.l.b16 %v386
    %v419 = vunpack.c.l.b16 %v387
    %v420 = vunpack.c.l.b16 %v388
    %v421 = vpack.c.b16 %v406, %v405
    %v422 = vpack.c.b16 %v408, %v407
    %v423 = vpack.c.b16 %v410, %v409
    %v424 = vpack.c.b16 %v412, %v411
    %v425 = vpack.c.b16 %v414, %v413
    %v426 = vpack.c.b16 %v416, %v415
    %v427 = vpack.c.b16 %v418, %v417
    %v428 = vpack.c.b16 %v420, %v419
    %437 = vmatpush.bf16.msra.mxu0 %v428
    %438 = vmatpush.bf16.msra.mxu0 %v427
    %439 = vmatpush.bf16.msra.mxu0 %v426
    %440 = vmatpush.bf16.msra.mxu0 %v425
    %441 = vmatpush.bf16.msra.mxu0 %v424
    %442 = vmatpush.bf16.msra.mxu0 %v423
    %443 = vmatpush.bf16.msra.mxu0 %v422
    %444 = vmatpush.bf16.msra.mxu0 %v421
    %445 = vmatmul.bf16.gmra.mxu0 %v370
    %v446 = vpop.f32.mrf.mxu0
    %v447 = vadd.f32 0.0, %v446
    %v448 = vpop.f32.mrf.mxu0
    %v449 = vadd.f32 0.0, %v448
    %450 = vmatmul.bf16.gmra.mxu0 %v371
    %v451 = vpop.f32.mrf.mxu0
    %v452 = vadd.f32 0.0, %v451
    %v453 = vpop.f32.mrf.mxu0
    %v454 = vadd.f32 0.0, %v453
    %455 = vdwg.mxu0
    %v456 = vadd.f32 %v362, %v447
    %v457 = vadd.f32 %v363, %v449
    %v458 = vadd.f32 %v364, %v452
    %v459 = vadd.f32 %v365, %v454
    %v460 = vld [vmem:[#allocation2 + $0x4] sm:$0xff]
    %v461 = vld [vmem:[#allocation2 + $0xc] sm:$0xff]
    %v462 = vld [vmem:[#allocation2 + $0x1c] sm:$0xff]
    %v463 = vld [vmem:[#allocation2 + $0x24] sm:$0xff]
    %v464 = vpack.c.bf16 %v461, %v460
    %v465 = vpack.c.bf16 %v463, %v462
    %s466 = scalar_lea.vmem %s1, 256
    %v467 = vld [vmem:[%s466] sm:$0xf]
    %v468 = vld [vmem:[%s466 + $0x4] sm:$0xf]
    %v469 = vld [vmem:[%s466 + $0x8] sm:$0xf]
    %v470 = vld [vmem:[%s466 + $0xc] sm:$0xf]
    %v471 = vld [vmem:[%s466 + $0x10] sm:$0xf]
    %v472 = vld [vmem:[%s466 + $0x14] sm:$0xf]
    %v473 = vld [vmem:[%s466 + $0x18] sm:$0xf]
    %v474 = vld [vmem:[%s466 + $0x1c] sm:$0xf]
    %v475 = vld [vmem:[%s466 + $0x20] sm:$0xf]
    %v476 = vld [vmem:[%s466 + $0x24] sm:$0xf]
    %v477 = vld [vmem:[%s466 + $0x28] sm:$0xf]
    %v478 = vld [vmem:[%s466 + $0x2c] sm:$0xf]
    %v479 = vld [vmem:[%s466 + $0x30] sm:$0xf]
    %v480 = vld [vmem:[%s466 + $0x34] sm:$0xf]
    %v481 = vld [vmem:[%s466 + $0x38] sm:$0xf]
    %v482 = vld [vmem:[%s466 + $0x3c] sm:$0xf]
    %v499 = vunpack.c.l.b16 %v467
    %v500 = vunpack.c.l.b16 %v468
    %v501 = vunpack.c.l.b16 %v469
    %v502 = vunpack.c.l.b16 %v470
    %v503 = vunpack.c.l.b16 %v471
    %v504 = vunpack.c.l.b16 %v472
    %v505 = vunpack.c.l.b16 %v473
    %v506 = vunpack.c.l.b16 %v474
    %v507 = vunpack.c.l.b16 %v475
    %v508 = vunpack.c.l.b16 %v476
    %v509 = vunpack.c.l.b16 %v477
    %v510 = vunpack.c.l.b16 %v478
    %v511 = vunpack.c.l.b16 %v479
    %v512 = vunpack.c.l.b16 %v480
    %v513 = vunpack.c.l.b16 %v481
    %v514 = vunpack.c.l.b16 %v482
    %v515 = vpack.c.b16 %v500, %v499
    %v516 = vpack.c.b16 %v502, %v501
    %v517 = vpack.c.b16 %v504, %v503
    %v518 = vpack.c.b16 %v506, %v505
    %v519 = vpack.c.b16 %v508, %v507
    %v520 = vpack.c.b16 %v510, %v509
    %v521 = vpack.c.b16 %v512, %v511
    %v522 = vpack.c.b16 %v514, %v513
    %531 = vmatpush.bf16.msra.mxu0 %v522
    %532 = vmatpush.bf16.msra.mxu0 %v521
    %533 = vmatpush.bf16.msra.mxu0 %v520
    %534 = vmatpush.bf16.msra.mxu0 %v519
    %535 = vmatpush.bf16.msra.mxu0 %v518
    %536 = vmatpush.bf16.msra.mxu0 %v517
    %537 = vmatpush.bf16.msra.mxu0 %v516
    %538 = vmatpush.bf16.msra.mxu0 %v515
    %539 = vmatmul.bf16.gmra.mxu0 %v464
    %v540 = vpop.f32.mrf.mxu0
    %v541 = vadd.f32 0.0, %v540
    %v542 = vpop.f32.mrf.mxu0
    %v543 = vadd.f32 0.0, %v542
    %544 = vmatmul.bf16.gmra.mxu0 %v465
    %v545 = vpop.f32.mrf.mxu0
    %v546 = vadd.f32 0.0, %v545
    %v547 = vpop.f32.mrf.mxu0
    %v548 = vadd.f32 0.0, %v547
    %549 = vdwg.mxu0
    %v550 = vadd.f32 %v456, %v541
    %v551 = vadd.f32 %v457, %v543
    %v552 = vadd.f32 %v458, %v546
    %v553 = vadd.f32 %v459, %v548
    %v554 = vld [vmem:[%s2] sm:$0x1]
    %v556 = vperm.slane %v554, 0
    %v558 = vadd.f32 %v550, %v556
    %v559 = vadd.f32 %v551, %v556
    %v560 = vadd.f32 %v552, %v556
    %v561 = vadd.f32 %v553, %v556
    %v562 = vmax.f32 %v558, 0.0
    %v563 = vmax.f32 %v559, 0.0
    %v564 = vmax.f32 %v560, 0.0
    %v565 = vmax.f32 %v561, 0.0
    %566 = vst [vmem:[#allocation3] sm:$0xff] 0.0
    %567 = vst [vmem:[#allocation3 + $0x8] sm:$0xff] 0.0
    %568 = vst [vmem:[#allocation3 + $0x10] sm:$0xff] 0.0
    %569 = vst [vmem:[#allocation3 + $0x18] sm:$0xff] 0.0
    %570 = vst [vmem:[#allocation3 + $0x20] sm:$0xf] 0.0
    %571 = vst [vmem:[#allocation3 + $0x28] sm:$0xf] 0.0
    %572 = vst [vmem:[#allocation3 + $0x30] sm:$0xff] 0.0
    %573 = vst [vmem:[#allocation3 + $0x38] sm:$0xff] 0.0
    %574 = vst [vmem:[#allocation3 + $0x40] sm:$0xff] 0.0
    %575 = vst [vmem:[#allocation3 + $0x48] sm:$0xff] 0.0
    %576 = vst [vmem:[#allocation3 + $0x50] sm:$0xf] 0.0
    %577 = vst [vmem:[#allocation3 + $0x58] sm:$0xf] 0.0
    %vm582 = vcmask 1041408
    %v583 = vrot.slane %v562, 6
    %v584 = vrot.slane %v563, 6
    %v585 = vsel %vm582, %v583, %v584
    %v586 = vrot.slane %v564, 6
    %v587 = vrot.slane %v565, 6
    %v588 = vsel %vm582, %v586, %v587
    %589 = vrot.lane.b32.xlu0 %v583, 16
    %v590 = vpop.permute.xlu0 %589
    %591 = vrot.lane.b32.xlu0 %v585, 16
    %v592 = vpop.permute.xlu0 %591
    %593 = vrot.lane.b32.xlu0 %v584, 16
    %v594 = vpop.permute.xlu0 %593
    %595 = vrot.lane.b32.xlu0 %v586, 16
    %v596 = vpop.permute.xlu0 %595
    %597 = vrot.lane.b32.xlu0 %v588, 16
    %v598 = vpop.permute.xlu0 %597
    %599 = vrot.lane.b32.xlu0 %v587, 16
    %v600 = vpop.permute.xlu0 %599
    %vm607 = vcmask 1047682
    %608 = vst.msk [vmem:[#allocation3] sm:$0xfc] %vm607, %v590
    %vm609 = vcmask 130050
    %610 = vst.msk [vmem:[#allocation3 + $0x8] sm:$0xfc] %vm609, %v590
    %vm611 = vcmask 1047680
    %612 = vst.msk [vmem:[#allocation3 + $0x10] sm:$0xff] %vm611, %v592
    %vm613 = vcmask 130048
    %614 = vst.msk [vmem:[#allocation3 + $0x18] sm:$0xff] %vm613, %v592
    %vm615 = vcmask 1041536
    %616 = vst.msk [vmem:[#allocation3 + $0x20] sm:$0x3] %vm615, %v594
    %vm617 = vcmask 123904
    %618 = vst.msk [vmem:[#allocation3 + $0x28] sm:$0x3] %vm617, %v594
    %619 = vst.msk [vmem:[#allocation3 + $0x30] sm:$0xfc] %vm607, %v596
    %620 = vst.msk [vmem:[#allocation3 + $0x38] sm:$0xfc] %vm609, %v596
    %621 = vst.msk [vmem:[#allocation3 + $0x40] sm:$0xff] %vm611, %v598
    %622 = vst.msk [vmem:[#allocation3 + $0x48] sm:$0xff] %vm613, %v598
    %623 = vst.msk [vmem:[#allocation3 + $0x50] sm:$0x3] %vm615, %v600
    %624 = vst.msk [vmem:[#allocation3 + $0x58] sm:$0x3] %vm617, %v600
    %v625 = vld [vmem:[#allocation3] sm:$0xff]
    %v626 = vld [vmem:[#allocation3 + $0x8] sm:$0xff]
    %v627 = vld [vmem:[#allocation3 + $0x10] sm:$0xff]
    %v628 = vld [vmem:[#allocation3 + $0x18] sm:$0xff]
    %v629 = vld [vmem:[#allocation3 + $0x30] sm:$0xff]
    %v630 = vld [vmem:[#allocation3 + $0x38] sm:$0xff]
    %v631 = vld [vmem:[#allocation3 + $0x40] sm:$0xff]
    %v632 = vld [vmem:[#allocation3 + $0x48] sm:$0xff]
    %v633 = vpack.c.bf16 %v627, %v625
    %v634 = vpack.c.bf16 %v628, %v626
    %v635 = vpack.c.bf16 %v631, %v629
    %v636 = vpack.c.bf16 %v632, %v630
    %v637 = vld [vmem:[#allocation6] sm:$0xf]
    %v638 = vld [vmem:[#allocation6 + $0x4] sm:$0xf]
    %v639 = vld [vmem:[#allocation6 + $0x8] sm:$0xf]
    %v640 = vld [vmem:[#allocation6 + $0xc] sm:$0xf]
    %v641 = vld [vmem:[#allocation6 + $0x10] sm:$0xf]
    %v642 = vld [vmem:[#allocation6 + $0x14] sm:$0xf]
    %v643 = vld [vmem:[#allocation6 + $0x18] sm:$0xf]
    %v644 = vld [vmem:[#allocation6 + $0x1c] sm:$0xf]
    %v645 = vld [vmem:[#allocation6 + $0x20] sm:$0xf]
    %v646 = vld [vmem:[#allocation6 + $0x24] sm:$0xf]
    %v647 = vld [vmem:[#allocation6 + $0x28] sm:$0xf]
    %v648 = vld [vmem:[#allocation6 + $0x2c] sm:$0xf]
    %v649 = vld [vmem:[#allocation6 + $0x30] sm:$0xf]
    %v650 = vld [vmem:[#allocation6 + $0x34] sm:$0xf]
    %v651 = vld [vmem:[#allocation6 + $0x38] sm:$0xf]
    %v652 = vld [vmem:[#allocation6 + $0x3c] sm:$0xf]
    %v653 = vld [vmem:[#allocation6 + $0x40] sm:$0xf]
    %v654 = vld [vmem:[#allocation6 + $0x44] sm:$0xf]
    %v655 = vld [vmem:[#allocation6 + $0x48] sm:$0xf]
    %v656 = vld [vmem:[#allocation6 + $0x4c] sm:$0xf]
    %v657 = vld [vmem:[#allocation6 + $0x50] sm:$0xf]
    %v658 = vld [vmem:[#allocation6 + $0x54] sm:$0xf]
    %v659 = vld [vmem:[#allocation6 + $0x58] sm:$0xf]
    %v660 = vld [vmem:[#allocation6 + $0x5c] sm:$0xf]
    %v661 = vld [vmem:[#allocation6 + $0x60] sm:$0xf]
    %v662 = vld [vmem:[#allocation6 + $0x64] sm:$0xf]
    %v663 = vld [vmem:[#allocation6 + $0x68] sm:$0xf]
    %v664 = vld [vmem:[#allocation6 + $0x6c] sm:$0xf]
    %v665 = vld [vmem:[#allocation6 + $0x70] sm:$0xf]
    %v666 = vld [vmem:[#allocation6 + $0x74] sm:$0xf]
    %v667 = vld [vmem:[#allocation6 + $0x78] sm:$0xf]
    %v668 = vld [vmem:[#allocation6 + $0x7c] sm:$0xf]
    %v669 = vld [vmem:[#allocation3] sm:$0xfe]
    %v670 = vld [vmem:[#allocation3 + $0x8] sm:$0xfe]
    %v671 = vld [vmem:[#allocation3 + $0x20] sm:$0x1]
    %v672 = vld [vmem:[#allocation3 + $0x28] sm:$0x1]
    %v673 = vld [vmem:[#allocation3 + $0x30] sm:$0xfe]
    %v674 = vld [vmem:[#allocation3 + $0x38] sm:$0xfe]
    %v675 = vld [vmem:[#allocation3 + $0x50] sm:$0x1]
    %v676 = vld [vmem:[#allocation3 + $0x58] sm:$0x1]
    %vm689 = vcmask 1046528
    %v690 = vrot.slane %v669, 1
    %v691 = vrot.slane %v627, 1
    %v692 = vsel %vm689, %v690, %v691
    %v693 = vrot.slane %v670, 1
    %v694 = vrot.slane %v628, 1
    %v695 = vsel %vm689, %v693, %v694
    %v696 = vrot.slane %v671, 1
    %v697 = vsel %vm689, %v691, %v696
    %v698 = vrot.slane %v672, 1
    %v699 = vsel %vm689, %v694, %v698
    %v700 = vrot.slane %v673, 1
    %v701 = vrot.slane %v631, 1
    %v702 = vsel %vm689, %v700, %v701
    %v703 = vrot.slane %v674, 1
    %v704 = vrot.slane %v632, 1
    %v705 = vsel %vm689, %v703, %v704
    %v706 = vrot.slane %v675, 1
    %v707 = vsel %vm689, %v701, %v706
    %v708 = vrot.slane %v676, 1
    %v709 = vsel %vm689, %v704, %v708
    %v718 = vpack.c.bf16 %v697, %v692
    %v719 = vpack.c.bf16 %v699, %v695
    %v720 = vpack.c.bf16 %v707, %v702
    %v721 = vpack.c.bf16 %v709, %v705
    %s722 = scalar_lea.vmem [#allocation6], 128
    %v723 = vld [vmem:[%s722] sm:$0xf]
    %v724 = vld [vmem:[%s722 + $0x4] sm:$0xf]
    %v725 = vld [vmem:[%s722 + $0x8] sm:$0xf]
    %v726 = vld [vmem:[%s722 + $0xc] sm:$0xf]
    %v727 = vld [vmem:[%s722 + $0x10] sm:$0xf]
    %v728 = vld [vmem:[%s722 + $0x14] sm:$0xf]
    %v729 = vld [vmem:[%s722 + $0x18] sm:$0xf]
    %v730 = vld [vmem:[%s722 + $0x1c] sm:$0xf]
    %v731 = vld [vmem:[%s722 + $0x20] sm:$0xf]
    %v732 = vld [vmem:[%s722 + $0x24] sm:$0xf]
    %v733 = vld [vmem:[%s722 + $0x28] sm:$0xf]
    %v734 = vld [vmem:[%s722 + $0x2c] sm:$0xf]
    %v735 = vld [vmem:[%s722 + $0x30] sm:$0xf]
    %v736 = vld [vmem:[%s722 + $0x34] sm:$0xf]
    %v737 = vld [vmem:[%s722 + $0x38] sm:$0xf]
    %v738 = vld [vmem:[%s722 + $0x3c] sm:$0xf]
    %v739 = vld [vmem:[%s722 + $0x40] sm:$0xf]
    %v740 = vld [vmem:[%s722 + $0x44] sm:$0xf]
    %v741 = vld [vmem:[%s722 + $0x48] sm:$0xf]
    %v742 = vld [vmem:[%s722 + $0x4c] sm:$0xf]
    %v743 = vld [vmem:[%s722 + $0x50] sm:$0xf]
    %v744 = vld [vmem:[%s722 + $0x54] sm:$0xf]
    %v745 = vld [vmem:[%s722 + $0x58] sm:$0xf]
    %v746 = vld [vmem:[%s722 + $0x5c] sm:$0xf]
    %v747 = vld [vmem:[%s722 + $0x60] sm:$0xf]
    %v748 = vld [vmem:[%s722 + $0x64] sm:$0xf]
    %v749 = vld [vmem:[%s722 + $0x68] sm:$0xf]
    %v750 = vld [vmem:[%s722 + $0x6c] sm:$0xf]
    %v751 = vld [vmem:[%s722 + $0x70] sm:$0xf]
    %v752 = vld [vmem:[%s722 + $0x74] sm:$0xf]
    %v753 = vld [vmem:[%s722 + $0x78] sm:$0xf]
    %v754 = vld [vmem:[%s722 + $0x7c] sm:$0xf]
    %v787 = vunpack.c.l.b16 %v723
    %v788 = vunpack.c.l.b16 %v724
    %v789 = vunpack.c.l.b16 %v725
    %v790 = vunpack.c.l.b16 %v726
    %v791 = vunpack.c.l.b16 %v727
    %v792 = vunpack.c.l.b16 %v728
    %v793 = vunpack.c.l.b16 %v729
    %v794 = vunpack.c.l.b16 %v730
    %v795 = vunpack.c.l.b16 %v731
    %v796 = vunpack.c.l.b16 %v732
    %v797 = vunpack.c.l.b16 %v733
    %v798 = vunpack.c.l.b16 %v734
    %v799 = vunpack.c.l.b16 %v735
    %v800 = vunpack.c.l.b16 %v736
    %v801 = vunpack.c.l.b16 %v737
    %v802 = vunpack.c.l.b16 %v738
    %v803 = vunpack.c.l.b16 %v739
    %v804 = vunpack.c.l.b16 %v740
    %v805 = vunpack.c.l.b16 %v741
    %v806 = vunpack.c.l.b16 %v742
    %v807 = vunpack.c.l.b16 %v743
    %v808 = vunpack.c.l.b16 %v744
    %v809 = vunpack.c.l.b16 %v745
    %v810 = vunpack.c.l.b16 %v746
    %v811 = vunpack.c.l.b16 %v747
    %v812 = vunpack.c.l.b16 %v748
    %v813 = vunpack.c.l.b16 %v749
    %v814 = vunpack.c.l.b16 %v750
    %v815 = vunpack.c.l.b16 %v751
    %v816 = vunpack.c.l.b16 %v752
    %v817 = vunpack.c.l.b16 %v753
    %v818 = vunpack.c.l.b16 %v754
    %v819 = vpack.c.b16 %v788, %v787
    %v820 = vpack.c.b16 %v790, %v789
    %v821 = vpack.c.b16 %v792, %v791
    %v822 = vpack.c.b16 %v794, %v793
    %v823 = vpack.c.b16 %v796, %v795
    %v824 = vpack.c.b16 %v798, %v797
    %v825 = vpack.c.b16 %v800, %v799
    %v826 = vpack.c.b16 %v802, %v801
    %v827 = vpack.c.b16 %v804, %v803
    %v828 = vpack.c.b16 %v806, %v805
    %v829 = vpack.c.b16 %v808, %v807
    %v830 = vpack.c.b16 %v810, %v809
    %v831 = vpack.c.b16 %v812, %v811
    %v832 = vpack.c.b16 %v814, %v813
    %v833 = vpack.c.b16 %v816, %v815
    %v834 = vpack.c.b16 %v818, %v817
    %851 = vmatpush.bf16.msra.mxu0 %v826
    %852 = vmatpush.bf16.msra.mxu0 %v825
    %853 = vmatpush.bf16.msra.mxu0 %v824
    %854 = vmatpush.bf16.msra.mxu0 %v823
    %855 = vmatpush.bf16.msra.mxu0 %v822
    %856 = vmatpush.bf16.msra.mxu0 %v821
    %857 = vmatpush.bf16.msra.mxu0 %v820
    %858 = vmatpush.bf16.msra.mxu0 %v819
    %859 = vmatmul.bf16.gmra.mxu0 %v718
    %v860 = vpop.f32.mrf.mxu0
    %v861 = vadd.f32 0.0, %v860
    %v862 = vpop.f32.mrf.mxu0
    %v863 = vadd.f32 0.0, %v862
    %864 = vmatmul.bf16.gmra.mxu0 %v720
    %v865 = vpop.f32.mrf.mxu0
    %v866 = vadd.f32 0.0, %v865
    %v867 = vpop.f32.mrf.mxu0
    %v868 = vadd.f32 0.0, %v867
    %869 = vdwg.mxu0
    %870 = vmatpush.bf16.msra.mxu0 %v834
    %871 = vmatpush.bf16.msra.mxu0 %v833
    %872 = vmatpush.bf16.msra.mxu0 %v832
    %873 = vmatpush.bf16.msra.mxu0 %v831
    %874 = vmatpush.bf16.msra.mxu0 %v830
    %875 = vmatpush.bf16.msra.mxu0 %v829
    %876 = vmatpush.bf16.msra.mxu0 %v828
    %877 = vmatpush.bf16.msra.mxu0 %v827
    %878 = vmatmul.bf16.gmra.mxu0 %v719
    %v879 = vpop.f32.mrf.mxu0
    %v880 = vadd.f32 %v861, %v879
    %v881 = vpop.f32.mrf.mxu0
    %v882 = vadd.f32 %v863, %v881
    %883 = vmatmul.bf16.gmra.mxu0 %v721
    %v884 = vpop.f32.mrf.mxu0
    %v885 = vadd.f32 %v866, %v884
    %v886 = vpop.f32.mrf.mxu0
    %v887 = vadd.f32 %v868, %v886
    %888 = vdwg.mxu0
    %v921 = vunpack.c.l.b16 %v637
    %v922 = vunpack.c.l.b16 %v638
    %v923 = vunpack.c.l.b16 %v639
    %v924 = vunpack.c.l.b16 %v640
    %v925 = vunpack.c.l.b16 %v641
    %v926 = vunpack.c.l.b16 %v642
    %v927 = vunpack.c.l.b16 %v643
    %v928 = vunpack.c.l.b16 %v644
    %v929 = vunpack.c.l.b16 %v645
    %v930 = vunpack.c.l.b16 %v646
    %v931 = vunpack.c.l.b16 %v647
    %v932 = vunpack.c.l.b16 %v648
    %v933 = vunpack.c.l.b16 %v649
    %v934 = vunpack.c.l.b16 %v650
    %v935 = vunpack.c.l.b16 %v651
    %v936 = vunpack.c.l.b16 %v652
    %v937 = vunpack.c.l.b16 %v653
    %v938 = vunpack.c.l.b16 %v654
    %v939 = vunpack.c.l.b16 %v655
    %v940 = vunpack.c.l.b16 %v656
    %v941 = vunpack.c.l.b16 %v657
    %v942 = vunpack.c.l.b16 %v658
    %v943 = vunpack.c.l.b16 %v659
    %v944 = vunpack.c.l.b16 %v660
    %v945 = vunpack.c.l.b16 %v661
    %v946 = vunpack.c.l.b16 %v662
    %v947 = vunpack.c.l.b16 %v663
    %v948 = vunpack.c.l.b16 %v664
    %v949 = vunpack.c.l.b16 %v665
    %v950 = vunpack.c.l.b16 %v666
    %v951 = vunpack.c.l.b16 %v667
    %v952 = vunpack.c.l.b16 %v668
    %v953 = vpack.c.b16 %v922, %v921
    %v954 = vpack.c.b16 %v924, %v923
    %v955 = vpack.c.b16 %v926, %v925
    %v956 = vpack.c.b16 %v928, %v927
    %v957 = vpack.c.b16 %v930, %v929
    %v958 = vpack.c.b16 %v932, %v931
    %v959 = vpack.c.b16 %v934, %v933
    %v960 = vpack.c.b16 %v936, %v935
    %v961 = vpack.c.b16 %v938, %v937
    %v962 = vpack.c.b16 %v940, %v939
    %v963 = vpack.c.b16 %v942, %v941
    %v964 = vpack.c.b16 %v944, %v943
    %v965 = vpack.c.b16 %v946, %v945
    %v966 = vpack.c.b16 %v948, %v947
    %v967 = vpack.c.b16 %v950, %v949
    %v968 = vpack.c.b16 %v952, %v951
    %985 = vmatpush.bf16.msra.mxu0 %v960
    %986 = vmatpush.bf16.msra.mxu0 %v959
    %987 = vmatpush.bf16.msra.mxu0 %v958
    %988 = vmatpush.bf16.msra.mxu0 %v957
    %989 = vmatpush.bf16.msra.mxu0 %v956
    %990 = vmatpush.bf16.msra.mxu0 %v955
    %991 = vmatpush.bf16.msra.mxu0 %v954
    %992 = vmatpush.bf16.msra.mxu0 %v953
    %993 = vmatmul.bf16.gmra.mxu0 %v633
    %v994 = vpop.f32.mrf.mxu0
    %v995 = vadd.f32 %v880, %v994
    %v996 = vpop.f32.mrf.mxu0
    %v997 = vadd.f32 %v882, %v996
    %998 = vmatmul.bf16.gmra.mxu0 %v635
    %v999 = vpop.f32.mrf.mxu0
    %v1000 = vadd.f32 %v885, %v999
    %v1001 = vpop.f32.mrf.mxu0
    %v1002 = vadd.f32 %v887, %v1001
    %1003 = vdwg.mxu0
    %1004 = vmatpush.bf16.msra.mxu0 %v968
    %1005 = vmatpush.bf16.msra.mxu0 %v967
    %1006 = vmatpush.bf16.msra.mxu0 %v966
    %1007 = vmatpush.bf16.msra.mxu0 %v965
    %1008 = vmatpush.bf16.msra.mxu0 %v964
    %1009 = vmatpush.bf16.msra.mxu0 %v963
    %1010 = vmatpush.bf16.msra.mxu0 %v962
    %1011 = vmatpush.bf16.msra.mxu0 %v961
    %1012 = vmatmul.bf16.gmra.mxu0 %v634
    %v1013 = vpop.f32.mrf.mxu0
    %v1014 = vadd.f32 %v995, %v1013
    %v1015 = vpop.f32.mrf.mxu0
    %v1016 = vadd.f32 %v997, %v1015
    %1017 = vmatmul.bf16.gmra.mxu0 %v636
    %v1018 = vpop.f32.mrf.mxu0
    %v1019 = vadd.f32 %v1000, %v1018
    %v1020 = vpop.f32.mrf.mxu0
    %v1021 = vadd.f32 %v1002, %v1020
    %1022 = vdwg.mxu0
    %v1023 = vld [vmem:[#allocation3] sm:$0xfc]
    %v1024 = vld [vmem:[#allocation3 + $0x8] sm:$0xfc]
    %v1025 = vld [vmem:[#allocation3 + $0x20] sm:$0x3]
    %v1026 = vld [vmem:[#allocation3 + $0x28] sm:$0x3]
    %v1027 = vld [vmem:[#allocation3 + $0x30] sm:$0xfc]
    %v1028 = vld [vmem:[#allocation3 + $0x38] sm:$0xfc]
    %v1029 = vld [vmem:[#allocation3 + $0x50] sm:$0x3]
    %v1030 = vld [vmem:[#allocation3 + $0x58] sm:$0x3]
    %vm1039 = vcmask 1045504
    %v1040 = vrot.slane %v1023, 2
    %v1041 = vrot.slane %v627, 2
    %v1042 = vsel %vm1039, %v1040, %v1041
    %v1043 = vrot.slane %v1024, 2
    %v1044 = vrot.slane %v628, 2
    %v1045 = vsel %vm1039, %v1043, %v1044
    %v1046 = vrot.slane %v1025, 2
    %v1047 = vsel %vm1039, %v1041, %v1046
    %v1048 = vrot.slane %v1026, 2
    %v1049 = vsel %vm1039, %v1044, %v1048
    %v1050 = vrot.slane %v1027, 2
    %v1051 = vrot.slane %v631, 2
    %v1052 = vsel %vm1039, %v1050, %v1051
    %v1053 = vrot.slane %v1028, 2
    %v1054 = vrot.slane %v632, 2
    %v1055 = vsel %vm1039, %v1053, %v1054
    %v1056 = vrot.slane %v1029, 2
    %v1057 = vsel %vm1039, %v1051, %v1056
    %v1058 = vrot.slane %v1030, 2
    %v1059 = vsel %vm1039, %v1054, %v1058
    %v1068 = vpack.c.bf16 %v1047, %v1042
    %v1069 = vpack.c.bf16 %v1049, %v1045
    %v1070 = vpack.c.bf16 %v1057, %v1052
    %v1071 = vpack.c.bf16 %v1059, %v1055
    %s1072 = scalar_lea.vmem [#allocation6], 256
    %v1073 = vld [vmem:[%s1072] sm:$0xf]
    %v1074 = vld [vmem:[%s1072 + $0x4] sm:$0xf]
    %v1075 = vld [vmem:[%s1072 + $0x8] sm:$0xf]
    %v1076 = vld [vmem:[%s1072 + $0xc] sm:$0xf]
    %v1077 = vld [vmem:[%s1072 + $0x10] sm:$0xf]
    %v1078 = vld [vmem:[%s1072 + $0x14] sm:$0xf]
    %v1079 = vld [vmem:[%s1072 + $0x18] sm:$0xf]
    %v1080 = vld [vmem:[%s1072 + $0x1c] sm:$0xf]
    %v1081 = vld [vmem:[%s1072 + $0x20] sm:$0xf]
    %v1082 = vld [vmem:[%s1072 + $0x24] sm:$0xf]
    %v1083 = vld [vmem:[%s1072 + $0x28] sm:$0xf]
    %v1084 = vld [vmem:[%s1072 + $0x2c] sm:$0xf]
    %v1085 = vld [vmem:[%s1072 + $0x30] sm:$0xf]
    %v1086 = vld [vmem:[%s1072 + $0x34] sm:$0xf]
    %v1087 = vld [vmem:[%s1072 + $0x38] sm:$0xf]
    %v1088 = vld [vmem:[%s1072 + $0x3c] sm:$0xf]
    %v1089 = vld [vmem:[%s1072 + $0x40] sm:$0xf]
    %v1090 = vld [vmem:[%s1072 + $0x44] sm:$0xf]
    %v1091 = vld [vmem:[%s1072 + $0x48] sm:$0xf]
    %v1092 = vld [vmem:[%s1072 + $0x4c] sm:$0xf]
    %v1093 = vld [vmem:[%s1072 + $0x50] sm:$0xf]
    %v1094 = vld [vmem:[%s1072 + $0x54] sm:$0xf]
    %v1095 = vld [vmem:[%s1072 + $0x58] sm:$0xf]
    %v1096 = vld [vmem:[%s1072 + $0x5c] sm:$0xf]
    %v1097 = vld [vmem:[%s1072 + $0x60] sm:$0xf]
    %v1098 = vld [vmem:[%s1072 + $0x64] sm:$0xf]
    %v1099 = vld [vmem:[%s1072 + $0x68] sm:$0xf]
    %v1100 = vld [vmem:[%s1072 + $0x6c] sm:$0xf]
    %v1101 = vld [vmem:[%s1072 + $0x70] sm:$0xf]
    %v1102 = vld [vmem:[%s1072 + $0x74] sm:$0xf]
    %v1103 = vld [vmem:[%s1072 + $0x78] sm:$0xf]
    %v1104 = vld [vmem:[%s1072 + $0x7c] sm:$0xf]
    %v1137 = vunpack.c.l.b16 %v1073
    %v1138 = vunpack.c.l.b16 %v1074
    %v1139 = vunpack.c.l.b16 %v1075
    %v1140 = vunpack.c.l.b16 %v1076
    %v1141 = vunpack.c.l.b16 %v1077
    %v1142 = vunpack.c.l.b16 %v1078
    %v1143 = vunpack.c.l.b16 %v1079
    %v1144 = vunpack.c.l.b16 %v1080
    %v1145 = vunpack.c.l.b16 %v1081
    %v1146 = vunpack.c.l.b16 %v1082
    %v1147 = vunpack.c.l.b16 %v1083
    %v1148 = vunpack.c.l.b16 %v1084
    %v1149 = vunpack.c.l.b16 %v1085
    %v1150 = vunpack.c.l.b16 %v1086
    %v1151 = vunpack.c.l.b16 %v1087
    %v1152 = vunpack.c.l.b16 %v1088
    %v1153 = vunpack.c.l.b16 %v1089
    %v1154 = vunpack.c.l.b16 %v1090
    %v1155 = vunpack.c.l.b16 %v1091
    %v1156 = vunpack.c.l.b16 %v1092
    %v1157 = vunpack.c.l.b16 %v1093
    %v1158 = vunpack.c.l.b16 %v1094
    %v1159 = vunpack.c.l.b16 %v1095
    %v1160 = vunpack.c.l.b16 %v1096
    %v1161 = vunpack.c.l.b16 %v1097
    %v1162 = vunpack.c.l.b16 %v1098
    %v1163 = vunpack.c.l.b16 %v1099
    %v1164 = vunpack.c.l.b16 %v1100
    %v1165 = vunpack.c.l.b16 %v1101
    %v1166 = vunpack.c.l.b16 %v1102
    %v1167 = vunpack.c.l.b16 %v1103
    %v1168 = vunpack.c.l.b16 %v1104
    %v1169 = vpack.c.b16 %v1138, %v1137
    %v1170 = vpack.c.b16 %v1140, %v1139
    %v1171 = vpack.c.b16 %v1142, %v1141
    %v1172 = vpack.c.b16 %v1144, %v1143
    %v1173 = vpack.c.b16 %v1146, %v1145
    %v1174 = vpack.c.b16 %v1148, %v1147
    %v1175 = vpack.c.b16 %v1150, %v1149
    %v1176 = vpack.c.b16 %v1152, %v1151
    %v1177 = vpack.c.b16 %v1154, %v1153
    %v1178 = vpack.c.b16 %v1156, %v1155
    %v1179 = vpack.c.b16 %v1158, %v1157
    %v1180 = vpack.c.b16 %v1160, %v1159
    %v1181 = vpack.c.b16 %v1162, %v1161
    %v1182 = vpack.c.b16 %v1164, %v1163
    %v1183 = vpack.c.b16 %v1166, %v1165
    %v1184 = vpack.c.b16 %v1168, %v1167
    %1201 = vmatpush.bf16.msra.mxu0 %v1176
    %1202 = vmatpush.bf16.msra.mxu0 %v1175
    %1203 = vmatpush.bf16.msra.mxu0 %v1174
    %1204 = vmatpush.bf16.msra.mxu0 %v1173
    %1205 = vmatpush.bf16.msra.mxu0 %v1172
    %1206 = vmatpush.bf16.msra.mxu0 %v1171
    %1207 = vmatpush.bf16.msra.mxu0 %v1170
    %1208 = vmatpush.bf16.msra.mxu0 %v1169
    %1209 = vmatmul.bf16.gmra.mxu0 %v1068
    %v1210 = vpop.f32.mrf.mxu0
    %v1211 = vadd.f32 0.0, %v1210
    %v1212 = vpop.f32.mrf.mxu0
    %v1213 = vadd.f32 0.0, %v1212
    %1214 = vmatmul.bf16.gmra.mxu0 %v1070
    %v1215 = vpop.f32.mrf.mxu0
    %v1216 = vadd.f32 0.0, %v1215
    %v1217 = vpop.f32.mrf.mxu0
    %v1218 = vadd.f32 0.0, %v1217
    %1219 = vdwg.mxu0
    %1220 = vmatpush.bf16.msra.mxu0 %v1184
    %1221 = vmatpush.bf16.msra.mxu0 %v1183
    %1222 = vmatpush.bf16.msra.mxu0 %v1182
    %1223 = vmatpush.bf16.msra.mxu0 %v1181
    %1224 = vmatpush.bf16.msra.mxu0 %v1180
    %1225 = vmatpush.bf16.msra.mxu0 %v1179
    %1226 = vmatpush.bf16.msra.mxu0 %v1178
    %1227 = vmatpush.bf16.msra.mxu0 %v1177
    %1228 = vmatmul.bf16.gmra.mxu0 %v1069
    %v1229 = vpop.f32.mrf.mxu0
    %v1230 = vadd.f32 %v1211, %v1229
    %v1231 = vpop.f32.mrf.mxu0
    %v1232 = vadd.f32 %v1213, %v1231
    %1233 = vmatmul.bf16.gmra.mxu0 %v1071
    %v1234 = vpop.f32.mrf.mxu0
    %v1235 = vadd.f32 %v1216, %v1234
    %v1236 = vpop.f32.mrf.mxu0
    %v1237 = vadd.f32 %v1218, %v1236
    %1238 = vdwg.mxu0
    %v1239 = vadd.f32 %v1014, %v1230
    %v1240 = vadd.f32 %v1016, %v1232
    %v1241 = vadd.f32 %v1019, %v1235
    %v1242 = vadd.f32 %v1021, %v1237
    %v1243 = vld [vmem:[#allocation3] sm:$0xf8]
    %v1244 = vld [vmem:[#allocation3 + $0x8] sm:$0xf8]
    %v1245 = vld [vmem:[#allocation3 + $0x20] sm:$0x7]
    %v1246 = vld [vmem:[#allocation3 + $0x28] sm:$0x7]
    %v1247 = vld [vmem:[#allocation3 + $0x30] sm:$0xf8]
    %v1248 = vld [vmem:[#allocation3 + $0x38] sm:$0xf8]
    %v1249 = vld [vmem:[#allocation3 + $0x50] sm:$0x7]
    %v1250 = vld [vmem:[#allocation3 + $0x58] sm:$0x7]
    %vm1259 = vcmask 1044480
    %v1260 = vrot.slane %v1243, 3
    %v1261 = vrot.slane %v627, 3
    %v1262 = vsel %vm1259, %v1260, %v1261
    %v1263 = vrot.slane %v1244, 3
    %v1264 = vrot.slane %v628, 3
    %v1265 = vsel %vm1259, %v1263, %v1264
    %v1266 = vrot.slane %v1245, 3
    %v1267 = vsel %vm1259, %v1261, %v1266
    %v1268 = vrot.slane %v1246, 3
    %v1269 = vsel %vm1259, %v1264, %v1268
    %v1270 = vrot.slane %v1247, 3
    %v1271 = vrot.slane %v631, 3
    %v1272 = vsel %vm1259, %v1270, %v1271
    %v1273 = vrot.slane %v1248, 3
    %v1274 = vrot.slane %v632, 3
    %v1275 = vsel %vm1259, %v1273, %v1274
    %v1276 = vrot.slane %v1249, 3
    %v1277 = vsel %vm1259, %v1271, %v1276
    %v1278 = vrot.slane %v1250, 3
    %v1279 = vsel %vm1259, %v1274, %v1278
    %v1288 = vpack.c.bf16 %v1267, %v1262
    %v1289 = vpack.c.bf16 %v1269, %v1265
    %v1290 = vpack.c.bf16 %v1277, %v1272
    %v1291 = vpack.c.bf16 %v1279, %v1275
    %s1292 = scalar_lea.vmem [#allocation6], 384
    %v1293 = vld [vmem:[%s1292] sm:$0xf]
    %v1294 = vld [vmem:[%s1292 + $0x4] sm:$0xf]
    %v1295 = vld [vmem:[%s1292 + $0x8] sm:$0xf]
    %v1296 = vld [vmem:[%s1292 + $0xc] sm:$0xf]
    %v1297 = vld [vmem:[%s1292 + $0x10] sm:$0xf]
    %v1298 = vld [vmem:[%s1292 + $0x14] sm:$0xf]
    %v1299 = vld [vmem:[%s1292 + $0x18] sm:$0xf]
    %v1300 = vld [vmem:[%s1292 + $0x1c] sm:$0xf]
    %v1301 = vld [vmem:[%s1292 + $0x20] sm:$0xf]
    %v1302 = vld [vmem:[%s1292 + $0x24] sm:$0xf]
    %v1303 = vld [vmem:[%s1292 + $0x28] sm:$0xf]
    %v1304 = vld [vmem:[%s1292 + $0x2c] sm:$0xf]
    %v1305 = vld [vmem:[%s1292 + $0x30] sm:$0xf]
    %v1306 = vld [vmem:[%s1292 + $0x34] sm:$0xf]
    %v1307 = vld [vmem:[%s1292 + $0x38] sm:$0xf]
    %v1308 = vld [vmem:[%s1292 + $0x3c] sm:$0xf]
    %v1309 = vld [vmem:[%s1292 + $0x40] sm:$0xf]
    %v1310 = vld [vmem:[%s1292 + $0x44] sm:$0xf]
    %v1311 = vld [vmem:[%s1292 + $0x48] sm:$0xf]
    %v1312 = vld [vmem:[%s1292 + $0x4c] sm:$0xf]
    %v1313 = vld [vmem:[%s1292 + $0x50] sm:$0xf]
    %v1314 = vld [vmem:[%s1292 + $0x54] sm:$0xf]
    %v1315 = vld [vmem:[%s1292 + $0x58] sm:$0xf]
    %v1316 = vld [vmem:[%s1292 + $0x5c] sm:$0xf]
    %v1317 = vld [vmem:[%s1292 + $0x60] sm:$0xf]
    %v1318 = vld [vmem:[%s1292 + $0x64] sm:$0xf]
    %v1319 = vld [vmem:[%s1292 + $0x68] sm:$0xf]
    %v1320 = vld [vmem:[%s1292 + $0x6c] sm:$0xf]
    %v1321 = vld [vmem:[%s1292 + $0x70] sm:$0xf]
    %v1322 = vld [vmem:[%s1292 + $0x74] sm:$0xf]
    %v1323 = vld [vmem:[%s1292 + $0x78] sm:$0xf]
    %v1324 = vld [vmem:[%s1292 + $0x7c] sm:$0xf]
    %v1357 = vunpack.c.l.b16 %v1293
    %v1358 = vunpack.c.l.b16 %v1294
    %v1359 = vunpack.c.l.b16 %v1295
    %v1360 = vunpack.c.l.b16 %v1296
    %v1361 = vunpack.c.l.b16 %v1297
    %v1362 = vunpack.c.l.b16 %v1298
    %v1363 = vunpack.c.l.b16 %v1299
    %v1364 = vunpack.c.l.b16 %v1300
    %v1365 = vunpack.c.l.b16 %v1301
    %v1366 = vunpack.c.l.b16 %v1302
    %v1367 = vunpack.c.l.b16 %v1303
    %v1368 = vunpack.c.l.b16 %v1304
    %v1369 = vunpack.c.l.b16 %v1305
    %v1370 = vunpack.c.l.b16 %v1306
    %v1371 = vunpack.c.l.b16 %v1307
    %v1372 = vunpack.c.l.b16 %v1308
    %v1373 = vunpack.c.l.b16 %v1309
    %v1374 = vunpack.c.l.b16 %v1310
    %v1375 = vunpack.c.l.b16 %v1311
    %v1376 = vunpack.c.l.b16 %v1312
    %v1377 = vunpack.c.l.b16 %v1313
    %v1378 = vunpack.c.l.b16 %v1314
    %v1379 = vunpack.c.l.b16 %v1315
    %v1380 = vunpack.c.l.b16 %v1316
    %v1381 = vunpack.c.l.b16 %v1317
    %v1382 = vunpack.c.l.b16 %v1318
    %v1383 = vunpack.c.l.b16 %v1319
    %v1384 = vunpack.c.l.b16 %v1320
    %v1385 = vunpack.c.l.b16 %v1321
    %v1386 = vunpack.c.l.b16 %v1322
    %v1387 = vunpack.c.l.b16 %v1323
    %v1388 = vunpack.c.l.b16 %v1324
    %v1389 = vpack.c.b16 %v1358, %v1357
    %v1390 = vpack.c.b16 %v1360, %v1359
    %v1391 = vpack.c.b16 %v1362, %v1361
    %v1392 = vpack.c.b16 %v1364, %v1363
    %v1393 = vpack.c.b16 %v1366, %v1365
    %v1394 = vpack.c.b16 %v1368, %v1367
    %v1395 = vpack.c.b16 %v1370, %v1369
    %v1396 = vpack.c.b16 %v1372, %v1371
    %v1397 = vpack.c.b16 %v1374, %v1373
    %v1398 = vpack.c.b16 %v1376, %v1375
    %v1399 = vpack.c.b16 %v1378, %v1377
    %v1400 = vpack.c.b16 %v1380, %v1379
    %v1401 = vpack.c.b16 %v1382, %v1381
    %v1402 = vpack.c.b16 %v1384, %v1383
    %v1403 = vpack.c.b16 %v1386, %v1385
    %v1404 = vpack.c.b16 %v1388, %v1387
    %1421 = vmatpush.bf16.msra.mxu0 %v1396
    %1422 = vmatpush.bf16.msra.mxu0 %v1395
    %1423 = vmatpush.bf16.msra.mxu0 %v1394
    %1424 = vmatpush.bf16.msra.mxu0 %v1393
    %1425 = vmatpush.bf16.msra.mxu0 %v1392
    %1426 = vmatpush.bf16.msra.mxu0 %v1391
    %1427 = vmatpush.bf16.msra.mxu0 %v1390
    %1428 = vmatpush.bf16.msra.mxu0 %v1389
    %1429 = vmatmul.bf16.gmra.mxu0 %v1288
    %v1430 = vpop.f32.mrf.mxu0
    %v1431 = vadd.f32 0.0, %v1430
    %v1432 = vpop.f32.mrf.mxu0
    %v1433 = vadd.f32 0.0, %v1432
    %1434 = vmatmul.bf16.gmra.mxu0 %v1290
    %v1435 = vpop.f32.mrf.mxu0
    %v1436 = vadd.f32 0.0, %v1435
    %v1437 = vpop.f32.mrf.mxu0
    %v1438 = vadd.f32 0.0, %v1437
    %1439 = vdwg.mxu0
    %1440 = vmatpush.bf16.msra.mxu0 %v1404
    %1441 = vmatpush.bf16.msra.mxu0 %v1403
    %1442 = vmatpush.bf16.msra.mxu0 %v1402
    %1443 = vmatpush.bf16.msra.mxu0 %v1401
    %1444 = vmatpush.bf16.msra.mxu0 %v1400
    %1445 = vmatpush.bf16.msra.mxu0 %v1399
    %1446 = vmatpush.bf16.msra.mxu0 %v1398
    %1447 = vmatpush.bf16.msra.mxu0 %v1397
    %1448 = vmatmul.bf16.gmra.mxu0 %v1289
    %v1449 = vpop.f32.mrf.mxu0
    %v1450 = vadd.f32 %v1431, %v1449
    %v1451 = vpop.f32.mrf.mxu0
    %v1452 = vadd.f32 %v1433, %v1451
    %1453 = vmatmul.bf16.gmra.mxu0 %v1291
    %v1454 = vpop.f32.mrf.mxu0
    %v1455 = vadd.f32 %v1436, %v1454
    %v1456 = vpop.f32.mrf.mxu0
    %v1457 = vadd.f32 %v1438, %v1456
    %1458 = vdwg.mxu0
    %v1459 = vadd.f32 %v1239, %v1450
    %v1460 = vadd.f32 %v1240, %v1452
    %v1461 = vadd.f32 %v1241, %v1455
    %v1462 = vadd.f32 %v1242, %v1457
    %v1463 = vld [vmem:[#allocation3] sm:$0xf0]
    %v1464 = vld [vmem:[#allocation3 + $0x8] sm:$0xf0]
    %v1465 = vld [vmem:[#allocation3 + $0x20] sm:$0xf]
    %v1466 = vld [vmem:[#allocation3 + $0x28] sm:$0xf]
    %v1467 = vld [vmem:[#allocation3 + $0x30] sm:$0xf0]
    %v1468 = vld [vmem:[#allocation3 + $0x38] sm:$0xf0]
    %v1469 = vld [vmem:[#allocation3 + $0x50] sm:$0xf]
    %v1470 = vld [vmem:[#allocation3 + $0x58] sm:$0xf]
    %vm1479 = vcmask 1043456
    %v1480 = vrot.slane %v1463, 4
    %v1481 = vrot.slane %v627, 4
    %v1482 = vsel %vm1479, %v1480, %v1481
    %v1483 = vrot.slane %v1464, 4
    %v1484 = vrot.slane %v628, 4
    %v1485 = vsel %vm1479, %v1483, %v1484
    %v1486 = vrot.slane %v1465, 4
    %v1487 = vsel %vm1479, %v1481, %v1486
    %v1488 = vrot.slane %v1466, 4
    %v1489 = vsel %vm1479, %v1484, %v1488
    %v1490 = vrot.slane %v1467, 4
    %v1491 = vrot.slane %v631, 4
    %v1492 = vsel %vm1479, %v1490, %v1491
    %v1493 = vrot.slane %v1468, 4
    %v1494 = vrot.slane %v632, 4
    %v1495 = vsel %vm1479, %v1493, %v1494
    %v1496 = vrot.slane %v1469, 4
    %v1497 = vsel %vm1479, %v1491, %v1496
    %v1498 = vrot.slane %v1470, 4
    %v1499 = vsel %vm1479, %v1494, %v1498
    %v1508 = vpack.c.bf16 %v1487, %v1482
    %v1509 = vpack.c.bf16 %v1489, %v1485
    %v1510 = vpack.c.bf16 %v1497, %v1492
    %v1511 = vpack.c.bf16 %v1499, %v1495
    %s1512 = scalar_lea.vmem [#allocation6], 512
    %v1513 = vld [vmem:[%s1512] sm:$0xf]
    %v1514 = vld [vmem:[%s1512 + $0x4] sm:$0xf]
    %v1515 = vld [vmem:[%s1512 + $0x8] sm:$0xf]
    %v1516 = vld [vmem:[%s1512 + $0xc] sm:$0xf]
    %v1517 = vld [vmem:[%s1512 + $0x10] sm:$0xf]
    %v1518 = vld [vmem:[%s1512 + $0x14] sm:$0xf]
    %v1519 = vld [vmem:[%s1512 + $0x18] sm:$0xf]
    %v1520 = vld [vmem:[%s1512 + $0x1c] sm:$0xf]
    %v1521 = vld [vmem:[%s1512 + $0x20] sm:$0xf]
    %v1522 = vld [vmem:[%s1512 + $0x24] sm:$0xf]
    %v1523 = vld [vmem:[%s1512 + $0x28] sm:$0xf]
    %v1524 = vld [vmem:[%s1512 + $0x2c] sm:$0xf]
    %v1525 = vld [vmem:[%s1512 + $0x30] sm:$0xf]
    %v1526 = vld [vmem:[%s1512 + $0x34] sm:$0xf]
    %v1527 = vld [vmem:[%s1512 + $0x38] sm:$0xf]
    %v1528 = vld [vmem:[%s1512 + $0x3c] sm:$0xf]
    %v1529 = vld [vmem:[%s1512 + $0x40] sm:$0xf]
    %v1530 = vld [vmem:[%s1512 + $0x44] sm:$0xf]
    %v1531 = vld [vmem:[%s1512 + $0x48] sm:$0xf]
    %v1532 = vld [vmem:[%s1512 + $0x4c] sm:$0xf]
    %v1533 = vld [vmem:[%s1512 + $0x50] sm:$0xf]
    %v1534 = vld [vmem:[%s1512 + $0x54] sm:$0xf]
    %v1535 = vld [vmem:[%s1512 + $0x58] sm:$0xf]
    %v1536 = vld [vmem:[%s1512 + $0x5c] sm:$0xf]
    %v1537 = vld [vmem:[%s1512 + $0x60] sm:$0xf]
    %v1538 = vld [vmem:[%s1512 + $0x64] sm:$0xf]
    %v1539 = vld [vmem:[%s1512 + $0x68] sm:$0xf]
    %v1540 = vld [vmem:[%s1512 + $0x6c] sm:$0xf]
    %v1541 = vld [vmem:[%s1512 + $0x70] sm:$0xf]
    %v1542 = vld [vmem:[%s1512 + $0x74] sm:$0xf]
    %v1543 = vld [vmem:[%s1512 + $0x78] sm:$0xf]
    %v1544 = vld [vmem:[%s1512 + $0x7c] sm:$0xf]
    %v1577 = vunpack.c.l.b16 %v1513
    %v1578 = vunpack.c.l.b16 %v1514
    %v1579 = vunpack.c.l.b16 %v1515
    %v1580 = vunpack.c.l.b16 %v1516
    %v1581 = vunpack.c.l.b16 %v1517
    %v1582 = vunpack.c.l.b16 %v1518
    %v1583 = vunpack.c.l.b16 %v1519
    %v1584 = vunpack.c.l.b16 %v1520
    %v1585 = vunpack.c.l.b16 %v1521
    %v1586 = vunpack.c.l.b16 %v1522
    %v1587 = vunpack.c.l.b16 %v1523
    %v1588 = vunpack.c.l.b16 %v1524
    %v1589 = vunpack.c.l.b16 %v1525
    %v1590 = vunpack.c.l.b16 %v1526
    %v1591 = vunpack.c.l.b16 %v1527
    %v1592 = vunpack.c.l.b16 %v1528
    %v1593 = vunpack.c.l.b16 %v1529
    %v1594 = vunpack.c.l.b16 %v1530
    %v1595 = vunpack.c.l.b16 %v1531
    %v1596 = vunpack.c.l.b16 %v1532
    %v1597 = vunpack.c.l.b16 %v1533
    %v1598 = vunpack.c.l.b16 %v1534
    %v1599 = vunpack.c.l.b16 %v1535
    %v1600 = vunpack.c.l.b16 %v1536
    %v1601 = vunpack.c.l.b16 %v1537
    %v1602 = vunpack.c.l.b16 %v1538
    %v1603 = vunpack.c.l.b16 %v1539
    %v1604 = vunpack.c.l.b16 %v1540
    %v1605 = vunpack.c.l.b16 %v1541
    %v1606 = vunpack.c.l.b16 %v1542
    %v1607 = vunpack.c.l.b16 %v1543
    %v1608 = vunpack.c.l.b16 %v1544
    %v1609 = vpack.c.b16 %v1578, %v1577
    %v1610 = vpack.c.b16 %v1580, %v1579
    %v1611 = vpack.c.b16 %v1582, %v1581
    %v1612 = vpack.c.b16 %v1584, %v1583
    %v1613 = vpack.c.b16 %v1586, %v1585
    %v1614 = vpack.c.b16 %v1588, %v1587
    %v1615 = vpack.c.b16 %v1590, %v1589
    %v1616 = vpack.c.b16 %v1592, %v1591
    %v1617 = vpack.c.b16 %v1594, %v1593
    %v1618 = vpack.c.b16 %v1596, %v1595
    %v1619 = vpack.c.b16 %v1598, %v1597
    %v1620 = vpack.c.b16 %v1600, %v1599
    %v1621 = vpack.c.b16 %v1602, %v1601
    %v1622 = vpack.c.b16 %v1604, %v1603
    %v1623 = vpack.c.b16 %v1606, %v1605
    %v1624 = vpack.c.b16 %v1608, %v1607
    %1641 = vmatpush.bf16.msra.mxu0 %v1616
    %1642 = vmatpush.bf16.msra.mxu0 %v1615
    %1643 = vmatpush.bf16.msra.mxu0 %v1614
    %1644 = vmatpush.bf16.msra.mxu0 %v1613
    %1645 = vmatpush.bf16.msra.mxu0 %v1612
    %1646 = vmatpush.bf16.msra.mxu0 %v1611
    %1647 = vmatpush.bf16.msra.mxu0 %v1610
    %1648 = vmatpush.bf16.msra.mxu0 %v1609
    %1649 = vmatmul.bf16.gmra.mxu0 %v1508
    %v1650 = vpop.f32.mrf.mxu0
    %v1651 = vadd.f32 0.0, %v1650
    %v1652 = vpop.f32.mrf.mxu0
    %v1653 = vadd.f32 0.0, %v1652
    %1654 = vmatmul.bf16.gmra.mxu0 %v1510
    %v1655 = vpop.f32.mrf.mxu0
    %v1656 = vadd.f32 0.0, %v1655
    %v1657 = vpop.f32.mrf.mxu0
    %v1658 = vadd.f32 0.0, %v1657
    %1659 = vdwg.mxu0
    %1660 = vmatpush.bf16.msra.mxu0 %v1624
    %1661 = vmatpush.bf16.msra.mxu0 %v1623
    %1662 = vmatpush.bf16.msra.mxu0 %v1622
    %1663 = vmatpush.bf16.msra.mxu0 %v1621
    %1664 = vmatpush.bf16.msra.mxu0 %v1620
    %1665 = vmatpush.bf16.msra.mxu0 %v1619
    %1666 = vmatpush.bf16.msra.mxu0 %v1618
    %1667 = vmatpush.bf16.msra.mxu0 %v1617
    %1668 = vmatmul.bf16.gmra.mxu0 %v1509
    %v1669 = vpop.f32.mrf.mxu0
    %v1670 = vadd.f32 %v1651, %v1669
    %v1671 = vpop.f32.mrf.mxu0
    %v1672 = vadd.f32 %v1653, %v1671
    %1673 = vmatmul.bf16.gmra.mxu0 %v1511
    %v1674 = vpop.f32.mrf.mxu0
    %v1675 = vadd.f32 %v1656, %v1674
    %v1676 = vpop.f32.mrf.mxu0
    %v1677 = vadd.f32 %v1658, %v1676
    %1678 = vdwg.mxu0
    %v1679 = vadd.f32 %v1459, %v1670
    %v1680 = vadd.f32 %v1460, %v1672
    %v1681 = vadd.f32 %v1461, %v1675
    %v1682 = vadd.f32 %v1462, %v1677
    %v1683 = vld [vmem:[%s4] sm:$0x1]
    %v1685 = vperm.slane %v1683, 0
    %v1687 = vadd.f32 %v1679, %v1685
    %v1688 = vadd.f32 %v1680, %v1685
    %v1689 = vadd.f32 %v1681, %v1685
    %v1690 = vadd.f32 %v1682, %v1685
    %v1691 = vmax.f32 %v1687, 0.0
    %v1692 = vmax.f32 %v1688, 0.0
    %v1693 = vmax.f32 %v1689, 0.0
    %v1694 = vmax.f32 %v1690, 0.0
    %1695 = vst [vmem:[#allocation4] sm:$0xff] 0.0
    %vm1696 = vcmask 64512
    %1697 = vst.msk [vmem:[#allocation4 + $0x8] sm:$0xff] %vm1696, 0.0
    %1698 = vst [vmem:[#allocation4 + $0x10] sm:$0xff] 0.0
    %1699 = vst.msk [vmem:[#allocation4 + $0x18] sm:$0xff] %vm1696, 0.0
    %1700 = vst [vmem:[#allocation4 + $0x20] sm:$0xff] 0.0
    %1701 = vst.msk [vmem:[#allocation4 + $0x28] sm:$0xff] %vm1696, 0.0
    %1702 = vst [vmem:[#allocation4 + $0x30] sm:$0xff] 0.0
    %1703 = vst.msk [vmem:[#allocation4 + $0x38] sm:$0xff] %vm1696, 0.0
    %1704 = vst [vmem:[#allocation4 + $0x40] sm:$0xff] 0.0
    %1705 = vst.msk [vmem:[#allocation4 + $0x48] sm:$0xff] %vm1696, 0.0
    %1706 = vst [vmem:[#allocation4] sm:$0xff] %v1691
    %1707 = vst [vmem:[#allocation4 + $0x10] sm:$0xff] %v1692
    %1708 = vst [vmem:[#allocation4 + $0x20] sm:$0xff] %v1693
    %1709 = vst [vmem:[#allocation4 + $0x30] sm:$0xff] %v1694
    %v1710 = vld [vmem:[#allocation4] sm:$0xff]
    %v1711 = vld [vmem:[#allocation4 + $0x8] sm:$0xff]
    %v1712 = vld [vmem:[#allocation4 + $0x10] sm:$0xff]
    %v1713 = vld [vmem:[#allocation4 + $0x18] sm:$0xff]
    %v1714 = vld [vmem:[#allocation4 + $0x20] sm:$0xff]
    %v1715 = vld [vmem:[#allocation4 + $0x28] sm:$0xff]
    %v1716 = vld [vmem:[#allocation4 + $0x30] sm:$0xff]
    %v1717 = vld [vmem:[#allocation4 + $0x38] sm:$0xff]
    %v1718 = vld [vmem:[#allocation4] sm:$0xfe]
    %v1719 = vld [vmem:[#allocation4 + $0x40] sm:$0x1]
    %v1720 = vld [vmem:[#allocation4 + $0x8] sm:$0xfe]
    %v1721 = vld [vmem:[#allocation4 + $0x48] sm:$0x1]
    %1730 = vrot.lane.b32.xlu0 %v1710, 120
    %v1731 = vpop.permute.xlu0 %1730
    %1732 = vrot.lane.b32.xlu0 %v1711, 120
    %v1733 = vpop.permute.xlu0 %1732
    %1734 = vrot.lane.b32.xlu0 %v1712, 120
    %v1735 = vpop.permute.xlu0 %1734
    %1736 = vrot.lane.b32.xlu0 %v1713, 120
    %v1737 = vpop.permute.xlu0 %1736
    %1738 = vrot.lane.b32.xlu0 %v1714, 120
    %v1739 = vpop.permute.xlu0 %1738
    %1740 = vrot.lane.b32.xlu0 %v1715, 120
    %v1741 = vpop.permute.xlu0 %1740
    %1742 = vrot.lane.b32.xlu0 %v1716, 120
    %v1743 = vpop.permute.xlu0 %1742
    %1744 = vrot.lane.b32.xlu0 %v1717, 120
    %v1745 = vpop.permute.xlu0 %1744
    %vm1746 = vcmask 982016
    %v1747 = vsel %vm1746, %v1731, %v1733
    %v1748 = vsel %vm1746, %v1735, %v1737
    %v1749 = vsel %vm1746, %v1739, %v1741
    %v1750 = vsel %vm1746, %v1743, %v1745
    %v1755 = vmax.f32 %v1691, %v1747
    %v1756 = vmax.f32 %v1692, %v1748
    %v1757 = vmax.f32 %v1693, %v1749
    %v1758 = vmax.f32 %v1694, %v1750
    %1763 = vrot.lane.b32.xlu0 %v1718, 120
    %v1764 = vpop.permute.xlu0 %1763
    %1765 = vrot.lane.b32.xlu0 %v1720, 120
    %v1766 = vpop.permute.xlu0 %1765
    %1767 = vrot.lane.b32.xlu0 %v1719, 120
    %v1768 = vpop.permute.xlu0 %1767
    %1769 = vrot.lane.b32.xlu0 %v1721, 120
    %v1770 = vpop.permute.xlu0 %1769
    %v1771 = vsel %vm1746, %v1764, %v1766
    %v1772 = vsel %vm1746, %v1768, %v1770
    %v1775 = vmax.f32 %v1718, %v1771
    %v1776 = vmax.f32 %v1712, %v1748
    %v1777 = vmax.f32 %v1714, %v1749
    %v1778 = vmax.f32 %v1716, %v1750
    %v1779 = vmax.f32 %v1719, %v1772
    %v1785 = vrot.slane %v1775, 1
    %v1786 = vrot.slane %v1776, 1
    %v1787 = vsel %vm689, %v1785, %v1786
    %v1788 = vrot.slane %v1777, 1
    %v1789 = vsel %vm689, %v1786, %v1788
    %v1790 = vrot.slane %v1778, 1
    %v1791 = vsel %vm689, %v1788, %v1790
    %v1792 = vrot.slane %v1779, 1
    %v1793 = vsel %vm689, %v1790, %v1792
    %v1798 = vmax.f32 %v1755, %v1787
    %v1799 = vmax.f32 %v1756, %v1789
    %v1800 = vmax.f32 %v1757, %v1791
    %v1801 = vmax.f32 %v1758, %v1793
    %vm1804 = vcmask 1044484
    %v1805 = vsel %vm1804, %v1798, %v1798
    %vm1806 = vcmask 1046534
    %v1807 = vsel %vm1806, %v1798, %v1805
    %v1808 = vrot.slane %v1800, 7
    %vm1809 = vcmask 1041409
    %v1810 = vsel %vm1809, %v1808, %v1807
    %vm1811 = vcmask 1043459
    %v1812 = vsel %vm1811, %v1808, %v1810
    %vm1813 = vcmask 1045509
    %v1814 = vsel %vm1813, %v1808, %v1812
    %vm1815 = vcmask 1047559
    %v1816 = vsel %vm1815, %v1808, %v1814
    %1818 = vst [vmem:[#allocation5] sm:$0x3] %v1816
    %v1819 = vrot.slane %v1798, 1
    %v1820 = vsel %vm1804, %v1819, %v1819
    %v1821 = vsel %vm1806, %v1819, %v1820
    %v1822 = vsel %vm1809, %v1800, %v1821
    %v1823 = vsel %vm1811, %v1800, %v1822
    %v1824 = vsel %vm1813, %v1800, %v1823
    %v1825 = vsel %vm1815, %v1800, %v1824
    %1827 = vst [vmem:[#allocation5 + $0x2] sm:$0x3] %v1825
    %1828 = vst.sshfl [vmem:[#allocation1] sm:$0xff pattern:$0x73625140] %v1798
    %s1829 = scalar_lea.vmem [#allocation1], 1
    %v1830 = vld [vmem:[%s1829] ss:$4 sm:$0xff]
    %1831 = vst.sshfl [vmem:[#allocation1 + $0x20] sm:$0xff pattern:$0x73625140] %v1800
    %s1832 = scalar_lea.vmem [#allocation1], 33
    %v1833 = vld [vmem:[%s1832] ss:$4 sm:$0xff]
    %v1834 = vsel %vm1804, %v1830, %v1830
    %v1835 = vsel %vm1806, %v1830, %v1834
    %v1836 = vrot.slane %v1833, 7
    %v1837 = vsel %vm1809, %v1836, %v1835
    %v1838 = vsel %vm1811, %v1836, %v1837
    %v1839 = vsel %vm1813, %v1836, %v1838
    %v1840 = vsel %vm1815, %v1836, %v1839
    %1842 = vst [vmem:[#allocation5 + $0x4] sm:$0x3] %v1840
    %1843 = vst.sshfl [vmem:[#allocation1] sm:$0xff pattern:$0x73625140] %v1798
    %s1844 = scalar_lea.vmem [#allocation1], 1
    %v1845 = vld [vmem:[%s1844] ss:$4 sm:$0xff]
    %1846 = vst.sshfl [vmem:[#allocation1 + $0x20] sm:$0xff pattern:$0x73625140] %v1800
    %s1847 = scalar_lea.vmem [#allocation1], 33
    %v1848 = vld [vmem:[%s1847] ss:$4 sm:$0xff]
    %v1849 = vrot.slane %v1845, 1
    %v1850 = vsel %vm1804, %v1849, %v1849
    %v1851 = vsel %vm1806, %v1849, %v1850
    %v1852 = vsel %vm1809, %v1848, %v1851
    %v1853 = vsel %vm1811, %v1848, %v1852
    %v1854 = vsel %vm1813, %v1848, %v1853
    %v1855 = vsel %vm1815, %v1848, %v1854
    %1857 = vst [vmem:[#allocation5 + $0x6] sm:$0x3] %v1855
    %1858 = vst.sshfl [vmem:[#allocation1] sm:$0xff pattern:$0x73625140] %v1798
    %s1859 = scalar_lea.vmem [#allocation1], 2
    %v1860 = vld [vmem:[%s1859] ss:$4 sm:$0xff]
    %1861 = vst.sshfl [vmem:[#allocation1 + $0x20] sm:$0xff pattern:$0x73625140] %v1800
    %s1862 = scalar_lea.vmem [#allocation1], 34
    %v1863 = vld [vmem:[%s1862] ss:$4 sm:$0xff]
    %v1864 = vsel %vm1804, %v1860, %v1860
    %v1865 = vsel %vm1806, %v1860, %v1864
    %v1866 = vrot.slane %v1863, 7
    %v1867 = vsel %vm1809, %v1866, %v1865
    %v1868 = vsel %vm1811, %v1866, %v1867
    %v1869 = vsel %vm1813, %v1866, %v1868
    %v1870 = vsel %vm1815, %v1866, %v1869
    %1872 = vst [vmem:[#allocation5 + $0x8] sm:$0x3] %v1870
    %1873 = vst.sshfl [vmem:[#allocation1] sm:$0xff pattern:$0x73625140] %v1798
    %s1874 = scalar_lea.vmem [#allocation1], 2
    %v1875 = vld [vmem:[%s1874] ss:$4 sm:$0xff]
    %1876 = vst.sshfl [vmem:[#allocation1 + $0x20] sm:$0xff pattern:$0x73625140] %v1800
    %s1877 = scalar_lea.vmem [#allocation1], 34
    %v1878 = vld [vmem:[%s1877] ss:$4 sm:$0xff]
    %v1879 = vrot.slane %v1875, 1
    %v1880 = vsel %vm1804, %v1879, %v1879
    %v1881 = vsel %vm1806, %v1879, %v1880
    %v1882 = vsel %vm1809, %v1878, %v1881
    %v1883 = vsel %vm1811, %v1878, %v1882
    %v1884 = vsel %vm1813, %v1878, %v1883
    %v1885 = vsel %vm1815, %v1878, %v1884
    %1887 = vst [vmem:[#allocation5 + $0xa] sm:$0x3] %v1885
    %1888 = vst.sshfl [vmem:[#allocation1] sm:$0xff pattern:$0x73625140] %v1798
    %s1889 = scalar_lea.vmem [#allocation1], 3
    %v1890 = vld [vmem:[%s1889] ss:$4 sm:$0xff]
    %1891 = vst.sshfl [vmem:[#allocation1 + $0x20] sm:$0xff pattern:$0x73625140] %v1800
    %s1892 = scalar_lea.vmem [#allocation1], 35
    %v1893 = vld [vmem:[%s1892] ss:$4 sm:$0xff]
    %v1894 = vsel %vm1804, %v1890, %v1890
    %v1895 = vsel %vm1806, %v1890, %v1894
    %v1896 = vrot.slane %v1893, 7
    %v1897 = vsel %vm1809, %v1896, %v1895
    %v1898 = vsel %vm1811, %v1896, %v1897
    %v1899 = vsel %vm1813, %v1896, %v1898
    %v1900 = vsel %vm1815, %v1896, %v1899
    %1902 = vst [vmem:[#allocation5 + $0xc] sm:$0x3] %v1900
    %1903 = vst.sshfl [vmem:[#allocation1] sm:$0xff pattern:$0x73625140] %v1798
    %s1904 = scalar_lea.vmem [#allocation1], 3
    %v1905 = vld [vmem:[%s1904] ss:$4 sm:$0xff]
    %1906 = vst.sshfl [vmem:[#allocation1 + $0x20] sm:$0xff pattern:$0x73625140] %v1800
    %s1907 = scalar_lea.vmem [#allocation1], 35
    %v1908 = vld [vmem:[%s1907] ss:$4 sm:$0xff]
    %v1909 = vrot.slane %v1905, 1
    %v1910 = vsel %vm1804, %v1909, %v1909
    %v1911 = vsel %vm1806, %v1909, %v1910
    %v1912 = vsel %vm1809, %v1908, %v1911
    %v1913 = vsel %vm1811, %v1908, %v1912
    %v1914 = vsel %vm1813, %v1908, %v1913
    %v1915 = vsel %vm1815, %v1908, %v1914
    %1917 = vst [vmem:[#allocation5 + $0xe] sm:$0x3] %v1915
    %v1920 = vsel %vm1804, %v1799, %v1799
    %v1921 = vsel %vm1806, %v1799, %v1920
    %v1922 = vrot.slane %v1801, 7
    %v1923 = vsel %vm1809, %v1922, %v1921
    %v1924 = vsel %vm1811, %v1922, %v1923
    %v1925 = vsel %vm1813, %v1922, %v1924
    %v1926 = vsel %vm1815, %v1922, %v1925
    %1928 = vst [vmem:[#allocation5 + $0x10] sm:$0x3] %v1926
    %v1929 = vrot.slane %v1799, 1
    %v1930 = vsel %vm1804, %v1929, %v1929
    %v1931 = vsel %vm1806, %v1929, %v1930
    %v1932 = vsel %vm1809, %v1801, %v1931
    %v1933 = vsel %vm1811, %v1801, %v1932
    %v1934 = vsel %vm1813, %v1801, %v1933
    %v1935 = vsel %vm1815, %v1801, %v1934
    %1937 = vst [vmem:[#allocation5 + $0x12] sm:$0x3] %v1935
    %1938 = vst.sshfl [vmem:[#allocation1] sm:$0xff pattern:$0x73625140] %v1799
    %s1939 = scalar_lea.vmem [#allocation1], 1
    %v1940 = vld [vmem:[%s1939] ss:$4 sm:$0xff]
    %1941 = vst.sshfl [vmem:[#allocation1 + $0x20] sm:$0xff pattern:$0x73625140] %v1801
    %s1942 = scalar_lea.vmem [#allocation1], 33
    %v1943 = vld [vmem:[%s1942] ss:$4 sm:$0xff]
    %v1944 = vsel %vm1804, %v1940, %v1940
    %v1945 = vsel %vm1806, %v1940, %v1944
    %v1946 = vrot.slane %v1943, 7
    %v1947 = vsel %vm1809, %v1946, %v1945
    %v1948 = vsel %vm1811, %v1946, %v1947
    %v1949 = vsel %vm1813, %v1946, %v1948
    %v1950 = vsel %vm1815, %v1946, %v1949
    %1952 = vst [vmem:[#allocation5 + $0x14] sm:$0x3] %v1950
    %1953 = vst.sshfl [vmem:[#allocation1] sm:$0xff pattern:$0x73625140] %v1799
    %s1954 = scalar_lea.vmem [#allocation1], 1
    %v1955 = vld [vmem:[%s1954] ss:$4 sm:$0xff]
    %1956 = vst.sshfl [vmem:[#allocation1 + $0x20] sm:$0xff pattern:$0x73625140] %v1801
    %s1957 = scalar_lea.vmem [#allocation1], 33
    %v1958 = vld [vmem:[%s1957] ss:$4 sm:$0xff]
    %v1959 = vrot.slane %v1955, 1
    %v1960 = vsel %vm1804, %v1959, %v1959
    %v1961 = vsel %vm1806, %v1959, %v1960
    %v1962 = vsel %vm1809, %v1958, %v1961
    %v1963 = vsel %vm1811, %v1958, %v1962
    %v1964 = vsel %vm1813, %v1958, %v1963
    %v1965 = vsel %vm1815, %v1958, %v1964
    %1967 = vst [vmem:[#allocation5 + $0x16] sm:$0x3] %v1965
    %1968 = vst.sshfl [vmem:[#allocation1] sm:$0xff pattern:$0x73625140] %v1799
    %s1969 = scalar_lea.vmem [#allocation1], 2
    %v1970 = vld [vmem:[%s1969] ss:$4 sm:$0xff]
    %1971 = vst.sshfl [vmem:[#allocation1 + $0x20] sm:$0xff pattern:$0x73625140] %v1801
    %s1972 = scalar_lea.vmem [#allocation1], 34
    %v1973 = vld [vmem:[%s1972] ss:$4 sm:$0xff]
    %v1974 = vsel %vm1804, %v1970, %v1970
    %v1975 = vsel %vm1806, %v1970, %v1974
    %v1976 = vrot.slane %v1973, 7
    %v1977 = vsel %vm1809, %v1976, %v1975
    %v1978 = vsel %vm1811, %v1976, %v1977
    %v1979 = vsel %vm1813, %v1976, %v1978
    %v1980 = vsel %vm1815, %v1976, %v1979
    %1982 = vst [vmem:[#allocation5 + $0x18] sm:$0x3] %v1980
    %1983 = vst.sshfl [vmem:[#allocation1] sm:$0xff pattern:$0x73625140] %v1799
    %s1984 = scalar_lea.vmem [#allocation1], 2
    %v1985 = vld [vmem:[%s1984] ss:$4 sm:$0xff]
    %1986 = vst.sshfl [vmem:[#allocation1 + $0x20] sm:$0xff pattern:$0x73625140] %v1801
    %s1987 = scalar_lea.vmem [#allocation1], 34
    %v1988 = vld [vmem:[%s1987] ss:$4 sm:$0xff]
    %v1989 = vrot.slane %v1985, 1
    %v1990 = vsel %vm1804, %v1989, %v1989
    %v1991 = vsel %vm1806, %v1989, %v1990
    %v1992 = vsel %vm1809, %v1988, %v1991
    %v1993 = vsel %vm1811, %v1988, %v1992
    %v1994 = vsel %vm1813, %v1988, %v1993
    %v1995 = vsel %vm1815, %v1988, %v1994
    %1997 = vst [vmem:[#allocation5 + $0x1a] sm:$0x3] %v1995
    %1998 = vst.sshfl [vmem:[#allocation1] sm:$0xff pattern:$0x73625140] %v1799
    %s1999 = scalar_lea.vmem [#allocation1], 3
    %v2000 = vld [vmem:[%s1999] ss:$4 sm:$0xff]
    %2001 = vst.sshfl [vmem:[#allocation1 + $0x20] sm:$0xff pattern:$0x73625140] %v1801
    %s2002 = scalar_lea.vmem [#allocation1], 35
    %v2003 = vld [vmem:[%s2002] ss:$4 sm:$0xff]
    %v2004 = vsel %vm1804, %v2000, %v2000
    %v2005 = vsel %vm1806, %v2000, %v2004
    %v2006 = vrot.slane %v2003, 7
    %v2007 = vsel %vm1809, %v2006, %v2005
    %v2008 = vsel %vm1811, %v2006, %v2007
    %v2009 = vsel %vm1813, %v2006, %v2008
    %v2010 = vsel %vm1815, %v2006, %v2009
    %2012 = vst [vmem:[#allocation5 + $0x1c] sm:$0x3] %v2010
    %2013 = vst.sshfl [vmem:[#allocation1] sm:$0xff pattern:$0x73625140] %v1799
    %s2014 = scalar_lea.vmem [#allocation1], 3
    %v2015 = vld [vmem:[%s2014] ss:$4 sm:$0xff]
    %2016 = vst.sshfl [vmem:[#allocation1 + $0x20] sm:$0xff pattern:$0x73625140] %v1801
    %s2017 = scalar_lea.vmem [#allocation1], 35
    %v2018 = vld [vmem:[%s2017] ss:$4 sm:$0xff]
    %v2019 = vrot.slane %v2015, 1
    %v2020 = vsel %vm1804, %v2019, %v2019
    %v2021 = vsel %vm1806, %v2019, %v2020
    %v2022 = vsel %vm1809, %v2018, %v2021
    %v2023 = vsel %vm1811, %v2018, %v2022
    %v2024 = vsel %vm1813, %v2018, %v2023
    %v2025 = vsel %vm1815, %v2018, %v2024
    %2027 = vst [vmem:[#allocation5 + $0x1e] sm:$0x3] %v2025
    %v2028 = vld [vmem:[#allocation5] sm:$0xff]
    %v2029 = vld [vmem:[#allocation5 + $0x8] sm:$0xff]
    %v2030 = vld [vmem:[#allocation5 + $0x10] sm:$0xff]
    %v2031 = vld [vmem:[#allocation5 + $0x18] sm:$0xff]
    %2036 = vst [vmem:[#allocation1] ss:$4 sm:$0xff] %v2028
    %s2037 = scalar_lea.vmem [#allocation1], 32
    %2038 = vst [vmem:[%s2037] ss:$4 sm:$0xff] %v2029
    %v2039 = vld.sshfl [vmem:[#allocation1] sm:$0xff pattern:$0x73625140]
    %v2040 = vld.sshfl [vmem:[#allocation1 + $0x8] sm:$0xff pattern:$0x73625140]
    %v2041 = vld.sshfl [vmem:[#allocation1 + $0x10] sm:$0xff pattern:$0x73625140]
    %v2042 = vld.sshfl [vmem:[#allocation1 + $0x18] sm:$0xff pattern:$0x73625140]
    %v2043 = vld.sshfl [vmem:[#allocation1 + $0x20] sm:$0xff pattern:$0x73625140]
    %v2044 = vld.sshfl [vmem:[#allocation1 + $0x28] sm:$0xff pattern:$0x73625140]
    %v2045 = vld.sshfl [vmem:[#allocation1 + $0x30] sm:$0xff pattern:$0x73625140]
    %v2046 = vld.sshfl [vmem:[#allocation1 + $0x38] sm:$0xff pattern:$0x73625140]
    %2047 = vst [vmem:[#allocation1] ss:$4 sm:$0xff] %v2030
    %2048 = vst [vmem:[%s2037] ss:$4 sm:$0xff] %v2031
    %v2049 = vld.sshfl [vmem:[#allocation1] sm:$0xff pattern:$0x73625140]
    %v2050 = vld.sshfl [vmem:[#allocation1 + $0x8] sm:$0xff pattern:$0x73625140]
    %v2051 = vld.sshfl [vmem:[#allocation1 + $0x10] sm:$0xff pattern:$0x73625140]
    %v2052 = vld.sshfl [vmem:[#allocation1 + $0x18] sm:$0xff pattern:$0x73625140]
    %v2053 = vld.sshfl [vmem:[#allocation1 + $0x20] sm:$0xff pattern:$0x73625140]
    %v2054 = vld.sshfl [vmem:[#allocation1 + $0x28] sm:$0xff pattern:$0x73625140]
    %v2055 = vld.sshfl [vmem:[#allocation1 + $0x30] sm:$0xff pattern:$0x73625140]
    %v2056 = vld.sshfl [vmem:[#allocation1 + $0x38] sm:$0xff pattern:$0x73625140]
    %v2073 = vpack.c.bf16 %v2039, %v2039
    %v2074 = vpack.c.bf16 %v2040, %v2040
    %v2075 = vpack.c.bf16 %v2041, %v2041
    %v2076 = vpack.c.bf16 %v2042, %v2042
    %v2077 = vpack.c.bf16 %v2043, %v2043
    %v2078 = vpack.c.bf16 %v2044, %v2044
    %v2079 = vpack.c.bf16 %v2045, %v2045
    %v2080 = vpack.c.bf16 %v2046, %v2046
    %v2081 = vpack.c.bf16 %v2049, %v2049
    %v2082 = vpack.c.bf16 %v2050, %v2050
    %v2083 = vpack.c.bf16 %v2051, %v2051
    %v2084 = vpack.c.bf16 %v2052, %v2052
    %v2085 = vpack.c.bf16 %v2053, %v2053
    %v2086 = vpack.c.bf16 %v2054, %v2054
    %v2087 = vpack.c.bf16 %v2055, %v2055
    %v2088 = vpack.c.bf16 %v2056, %v2056
    %v2089 = vld [vmem:[#allocation9] sm:$0xf]
    %v2090 = vld [vmem:[#allocation9 + $0x4] sm:$0xf]
    %v2091 = vld [vmem:[#allocation9 + $0x8] sm:$0xf]
    %v2092 = vld [vmem:[#allocation9 + $0xc] sm:$0xf]
    %v2093 = vld [vmem:[#allocation9 + $0x10] sm:$0xf]
    %v2094 = vld [vmem:[#allocation9 + $0x14] sm:$0xf]
    %v2095 = vld [vmem:[#allocation9 + $0x18] sm:$0xf]
    %v2096 = vld [vmem:[#allocation9 + $0x1c] sm:$0xf]
    %v2097 = vld [vmem:[#allocation9 + $0x20] sm:$0xf]
    %v2098 = vld [vmem:[#allocation9 + $0x24] sm:$0xf]
    %v2099 = vld [vmem:[#allocation9 + $0x28] sm:$0xf]
    %v2100 = vld [vmem:[#allocation9 + $0x2c] sm:$0xf]
    %v2101 = vld [vmem:[#allocation9 + $0x30] sm:$0xf]
    %v2102 = vld [vmem:[#allocation9 + $0x34] sm:$0xf]
    %v2103 = vld [vmem:[#allocation9 + $0x38] sm:$0xf]
    %v2104 = vld [vmem:[#allocation9 + $0x3c] sm:$0xf]
    %v2105 = vld [vmem:[#allocation9 + $0x40] sm:$0xf]
    %v2106 = vld [vmem:[#allocation9 + $0x44] sm:$0xf]
    %v2107 = vld [vmem:[#allocation9 + $0x48] sm:$0xf]
    %v2108 = vld [vmem:[#allocation9 + $0x4c] sm:$0xf]
    %v2109 = vld [vmem:[#allocation9 + $0x50] sm:$0xf]
    %v2110 = vld [vmem:[#allocation9 + $0x54] sm:$0xf]
    %v2111 = vld [vmem:[#allocation9 + $0x58] sm:$0xf]
    %v2112 = vld [vmem:[#allocation9 + $0x5c] sm:$0xf]
    %v2113 = vld [vmem:[#allocation9 + $0x60] sm:$0xf]
    %v2114 = vld [vmem:[#allocation9 + $0x64] sm:$0xf]
    %v2115 = vld [vmem:[#allocation9 + $0x68] sm:$0xf]
    %v2116 = vld [vmem:[#allocation9 + $0x6c] sm:$0xf]
    %v2117 = vld [vmem:[#allocation9 + $0x70] sm:$0xf]
    %v2118 = vld [vmem:[#allocation9 + $0x74] sm:$0xf]
    %v2119 = vld [vmem:[#allocation9 + $0x78] sm:$0xf]
    %v2120 = vld [vmem:[#allocation9 + $0x7c] sm:$0xf]
    %v2121 = vld [vmem:[#allocation9 + $0x80] sm:$0xf]
    %v2122 = vld [vmem:[#allocation9 + $0x84] sm:$0xf]
    %v2123 = vld [vmem:[#allocation9 + $0x88] sm:$0xf]
    %v2124 = vld [vmem:[#allocation9 + $0x8c] sm:$0xf]
    %v2125 = vld [vmem:[#allocation9 + $0x90] sm:$0xf]
    %v2126 = vld [vmem:[#allocation9 + $0x94] sm:$0xf]
    %v2127 = vld [vmem:[#allocation9 + $0x98] sm:$0xf]
    %v2128 = vld [vmem:[#allocation9 + $0x9c] sm:$0xf]
    %v2129 = vld [vmem:[#allocation9 + $0xa0] sm:$0xf]
    %v2130 = vld [vmem:[#allocation9 + $0xa4] sm:$0xf]
    %v2131 = vld [vmem:[#allocation9 + $0xa8] sm:$0xf]
    %v2132 = vld [vmem:[#allocation9 + $0xac] sm:$0xf]
    %v2133 = vld [vmem:[#allocation9 + $0xb0] sm:$0xf]
    %v2134 = vld [vmem:[#allocation9 + $0xb4] sm:$0xf]
    %v2135 = vld [vmem:[#allocation9 + $0xb8] sm:$0xf]
    %v2136 = vld [vmem:[#allocation9 + $0xbc] sm:$0xf]
    %v2137 = vld [vmem:[#allocation9 + $0xc0] sm:$0xf]
    %v2138 = vld [vmem:[#allocation9 + $0xc4] sm:$0xf]
    %v2139 = vld [vmem:[#allocation9 + $0xc8] sm:$0xf]
    %v2140 = vld [vmem:[#allocation9 + $0xcc] sm:$0xf]
    %v2141 = vld [vmem:[#allocation9 + $0xd0] sm:$0xf]
    %v2142 = vld [vmem:[#allocation9 + $0xd4] sm:$0xf]
    %v2143 = vld [vmem:[#allocation9 + $0xd8] sm:$0xf]
    %v2144 = vld [vmem:[#allocation9 + $0xdc] sm:$0xf]
    %v2145 = vld [vmem:[#allocation9 + $0xe0] sm:$0xf]
    %v2146 = vld [vmem:[#allocation9 + $0xe4] sm:$0xf]
    %v2147 = vld [vmem:[#allocation9 + $0xe8] sm:$0xf]
    %v2148 = vld [vmem:[#allocation9 + $0xec] sm:$0xf]
    %v2149 = vld [vmem:[#allocation9 + $0xf0] sm:$0xf]
    %v2150 = vld [vmem:[#allocation9 + $0xf4] sm:$0xf]
    %v2151 = vld [vmem:[#allocation9 + $0xf8] sm:$0xf]
    %v2152 = vld [vmem:[#allocation9 + $0xfc] sm:$0xf]
    %v2153 = vld [vmem:[#allocation9 + $0x100] sm:$0xf]
    %v2154 = vld [vmem:[#allocation9 + $0x104] sm:$0xf]
    %v2155 = vld [vmem:[#allocation9 + $0x108] sm:$0xf]
    %v2156 = vld [vmem:[#allocation9 + $0x10c] sm:$0xf]
    %v2157 = vld [vmem:[#allocation9 + $0x110] sm:$0xf]
    %v2158 = vld [vmem:[#allocation9 + $0x114] sm:$0xf]
    %v2159 = vld [vmem:[#allocation9 + $0x118] sm:$0xf]
    %v2160 = vld [vmem:[#allocation9 + $0x11c] sm:$0xf]
    %v2161 = vld [vmem:[#allocation9 + $0x120] sm:$0xf]
    %v2162 = vld [vmem:[#allocation9 + $0x124] sm:$0xf]
    %v2163 = vld [vmem:[#allocation9 + $0x128] sm:$0xf]
    %v2164 = vld [vmem:[#allocation9 + $0x12c] sm:$0xf]
    %v2165 = vld [vmem:[#allocation9 + $0x130] sm:$0xf]
    %v2166 = vld [vmem:[#allocation9 + $0x134] sm:$0xf]
    %v2167 = vld [vmem:[#allocation9 + $0x138] sm:$0xf]
    %v2168 = vld [vmem:[#allocation9 + $0x13c] sm:$0xf]
    %v2169 = vld [vmem:[#allocation9 + $0x140] sm:$0xf]
    %v2170 = vld [vmem:[#allocation9 + $0x144] sm:$0xf]
    %v2171 = vld [vmem:[#allocation9 + $0x148] sm:$0xf]
    %v2172 = vld [vmem:[#allocation9 + $0x14c] sm:$0xf]
    %v2173 = vld [vmem:[#allocation9 + $0x150] sm:$0xf]
    %v2174 = vld [vmem:[#allocation9 + $0x154] sm:$0xf]
    %v2175 = vld [vmem:[#allocation9 + $0x158] sm:$0xf]
    %v2176 = vld [vmem:[#allocation9 + $0x15c] sm:$0xf]
    %v2177 = vld [vmem:[#allocation9 + $0x160] sm:$0xf]
    %v2178 = vld [vmem:[#allocation9 + $0x164] sm:$0xf]
    %v2179 = vld [vmem:[#allocation9 + $0x168] sm:$0xf]
    %v2180 = vld [vmem:[#allocation9 + $0x16c] sm:$0xf]
    %v2181 = vld [vmem:[#allocation9 + $0x170] sm:$0xf]
    %v2182 = vld [vmem:[#allocation9 + $0x174] sm:$0xf]
    %v2183 = vld [vmem:[#allocation9 + $0x178] sm:$0xf]
    %v2184 = vld [vmem:[#allocation9 + $0x17c] sm:$0xf]
    %v2185 = vld [vmem:[#allocation9 + $0x180] sm:$0xf]
    %v2186 = vld [vmem:[#allocation9 + $0x184] sm:$0xf]
    %v2187 = vld [vmem:[#allocation9 + $0x188] sm:$0xf]
    %v2188 = vld [vmem:[#allocation9 + $0x18c] sm:$0xf]
    %v2189 = vld [vmem:[#allocation9 + $0x190] sm:$0xf]
    %v2190 = vld [vmem:[#allocation9 + $0x194] sm:$0xf]
    %v2191 = vld [vmem:[#allocation9 + $0x198] sm:$0xf]
    %v2192 = vld [vmem:[#allocation9 + $0x19c] sm:$0xf]
    %v2193 = vld [vmem:[#allocation9 + $0x1a0] sm:$0xf]
    %v2194 = vld [vmem:[#allocation9 + $0x1a4] sm:$0xf]
    %v2195 = vld [vmem:[#allocation9 + $0x1a8] sm:$0xf]
    %v2196 = vld [vmem:[#allocation9 + $0x1ac] sm:$0xf]
    %v2197 = vld [vmem:[#allocation9 + $0x1b0] sm:$0xf]
    %v2198 = vld [vmem:[#allocation9 + $0x1b4] sm:$0xf]
    %v2199 = vld [vmem:[#allocation9 + $0x1b8] sm:$0xf]
    %v2200 = vld [vmem:[#allocation9 + $0x1bc] sm:$0xf]
    %v2201 = vld [vmem:[#allocation9 + $0x1c0] sm:$0xf]
    %v2202 = vld [vmem:[#allocation9 + $0x1c4] sm:$0xf]
    %v2203 = vld [vmem:[#allocation9 + $0x1c8] sm:$0xf]
    %v2204 = vld [vmem:[#allocation9 + $0x1cc] sm:$0xf]
    %v2205 = vld [vmem:[#allocation9 + $0x1d0] sm:$0xf]
    %v2206 = vld [vmem:[#allocation9 + $0x1d4] sm:$0xf]
    %v2207 = vld [vmem:[#allocation9 + $0x1d8] sm:$0xf]
    %v2208 = vld [vmem:[#allocation9 + $0x1dc] sm:$0xf]
    %v2209 = vld [vmem:[#allocation9 + $0x1e0] sm:$0xf]
    %v2210 = vld [vmem:[#allocation9 + $0x1e4] sm:$0xf]
    %v2211 = vld [vmem:[#allocation9 + $0x1e8] sm:$0xf]
    %v2212 = vld [vmem:[#allocation9 + $0x1ec] sm:$0xf]
    %v2213 = vld [vmem:[#allocation9 + $0x1f0] sm:$0xf]
    %v2214 = vld [vmem:[#allocation9 + $0x1f4] sm:$0xf]
    %v2215 = vld [vmem:[#allocation9 + $0x1f8] sm:$0xf]
    %v2216 = vld [vmem:[#allocation9 + $0x1fc] sm:$0xf]
    %v2217 = vld [vmem:[#allocation9 + $0x200] sm:$0xf]
    %v2218 = vld [vmem:[#allocation9 + $0x204] sm:$0xf]
    %v2219 = vld [vmem:[#allocation9 + $0x208] sm:$0xf]
    %v2220 = vld [vmem:[#allocation9 + $0x20c] sm:$0xf]
    %v2221 = vld [vmem:[#allocation9 + $0x210] sm:$0xf]
    %v2222 = vld [vmem:[#allocation9 + $0x214] sm:$0xf]
    %v2223 = vld [vmem:[#allocation9 + $0x218] sm:$0xf]
    %v2224 = vld [vmem:[#allocation9 + $0x21c] sm:$0xf]
    %v2225 = vld [vmem:[#allocation9 + $0x220] sm:$0xf]
    %v2226 = vld [vmem:[#allocation9 + $0x224] sm:$0xf]
    %v2227 = vld [vmem:[#allocation9 + $0x228] sm:$0xf]
    %v2228 = vld [vmem:[#allocation9 + $0x22c] sm:$0xf]
    %v2229 = vld [vmem:[#allocation9 + $0x230] sm:$0xf]
    %v2230 = vld [vmem:[#allocation9 + $0x234] sm:$0xf]
    %v2231 = vld [vmem:[#allocation9 + $0x238] sm:$0xf]
    %v2232 = vld [vmem:[#allocation9 + $0x23c] sm:$0xf]
    %v2233 = vld [vmem:[#allocation9 + $0x240] sm:$0xf]
    %v2234 = vld [vmem:[#allocation9 + $0x244] sm:$0xf]
    %v2235 = vld [vmem:[#allocation9 + $0x248] sm:$0xf]
    %v2236 = vld [vmem:[#allocation9 + $0x24c] sm:$0xf]
    %v2237 = vld [vmem:[#allocation9 + $0x250] sm:$0xf]
    %v2238 = vld [vmem:[#allocation9 + $0x254] sm:$0xf]
    %v2239 = vld [vmem:[#allocation9 + $0x258] sm:$0xf]
    %v2240 = vld [vmem:[#allocation9 + $0x25c] sm:$0xf]
    %v2241 = vld [vmem:[#allocation9 + $0x260] sm:$0xf]
    %v2242 = vld [vmem:[#allocation9 + $0x264] sm:$0xf]
    %v2243 = vld [vmem:[#allocation9 + $0x268] sm:$0xf]
    %v2244 = vld [vmem:[#allocation9 + $0x26c] sm:$0xf]
    %v2245 = vld [vmem:[#allocation9 + $0x270] sm:$0xf]
    %v2246 = vld [vmem:[#allocation9 + $0x274] sm:$0xf]
    %v2247 = vld [vmem:[#allocation9 + $0x278] sm:$0xf]
    %v2248 = vld [vmem:[#allocation9 + $0x27c] sm:$0xf]
    %v2249 = vld [vmem:[#allocation9 + $0x280] sm:$0xf]
    %v2250 = vld [vmem:[#allocation9 + $0x284] sm:$0xf]
    %v2251 = vld [vmem:[#allocation9 + $0x288] sm:$0xf]
    %v2252 = vld [vmem:[#allocation9 + $0x28c] sm:$0xf]
    %v2253 = vld [vmem:[#allocation9 + $0x290] sm:$0xf]
    %v2254 = vld [vmem:[#allocation9 + $0x294] sm:$0xf]
    %v2255 = vld [vmem:[#allocation9 + $0x298] sm:$0xf]
    %v2256 = vld [vmem:[#allocation9 + $0x29c] sm:$0xf]
    %v2257 = vld [vmem:[#allocation9 + $0x2a0] sm:$0xf]
    %v2258 = vld [vmem:[#allocation9 + $0x2a4] sm:$0xf]
    %v2259 = vld [vmem:[#allocation9 + $0x2a8] sm:$0xf]
    %v2260 = vld [vmem:[#allocation9 + $0x2ac] sm:$0xf]
    %v2261 = vld [vmem:[#allocation9 + $0x2b0] sm:$0xf]
    %v2262 = vld [vmem:[#allocation9 + $0x2b4] sm:$0xf]
    %v2263 = vld [vmem:[#allocation9 + $0x2b8] sm:$0xf]
    %v2264 = vld [vmem:[#allocation9 + $0x2bc] sm:$0xf]
    %v2265 = vld [vmem:[#allocation9 + $0x2c0] sm:$0xf]
    %v2266 = vld [vmem:[#allocation9 + $0x2c4] sm:$0xf]
    %v2267 = vld [vmem:[#allocation9 + $0x2c8] sm:$0xf]
    %v2268 = vld [vmem:[#allocation9 + $0x2cc] sm:$0xf]
    %v2269 = vld [vmem:[#allocation9 + $0x2d0] sm:$0xf]
    %v2270 = vld [vmem:[#allocation9 + $0x2d4] sm:$0xf]
    %v2271 = vld [vmem:[#allocation9 + $0x2d8] sm:$0xf]
    %v2272 = vld [vmem:[#allocation9 + $0x2dc] sm:$0xf]
    %v2273 = vld [vmem:[#allocation9 + $0x2e0] sm:$0xf]
    %v2274 = vld [vmem:[#allocation9 + $0x2e4] sm:$0xf]
    %v2275 = vld [vmem:[#allocation9 + $0x2e8] sm:$0xf]
    %v2276 = vld [vmem:[#allocation9 + $0x2ec] sm:$0xf]
    %v2277 = vld [vmem:[#allocation9 + $0x2f0] sm:$0xf]
    %v2278 = vld [vmem:[#allocation9 + $0x2f4] sm:$0xf]
    %v2279 = vld [vmem:[#allocation9 + $0x2f8] sm:$0xf]
    %v2280 = vld [vmem:[#allocation9 + $0x2fc] sm:$0xf]
    %v2281 = vld [vmem:[#allocation9 + $0x300] sm:$0xf]
    %v2282 = vld [vmem:[#allocation9 + $0x304] sm:$0xf]
    %v2283 = vld [vmem:[#allocation9 + $0x308] sm:$0xf]
    %v2284 = vld [vmem:[#allocation9 + $0x30c] sm:$0xf]
    %v2285 = vld [vmem:[#allocation9 + $0x310] sm:$0xf]
    %v2286 = vld [vmem:[#allocation9 + $0x314] sm:$0xf]
    %v2287 = vld [vmem:[#allocation9 + $0x318] sm:$0xf]
    %v2288 = vld [vmem:[#allocation9 + $0x31c] sm:$0xf]
    %v2289 = vld [vmem:[#allocation9 + $0x320] sm:$0xf]
    %v2290 = vld [vmem:[#allocation9 + $0x324] sm:$0xf]
    %v2291 = vld [vmem:[#allocation9 + $0x328] sm:$0xf]
    %v2292 = vld [vmem:[#allocation9 + $0x32c] sm:$0xf]
    %v2293 = vld [vmem:[#allocation9 + $0x330] sm:$0xf]
    %v2294 = vld [vmem:[#allocation9 + $0x334] sm:$0xf]
    %v2295 = vld [vmem:[#allocation9 + $0x338] sm:$0xf]
    %v2296 = vld [vmem:[#allocation9 + $0x33c] sm:$0xf]
    %v2297 = vld [vmem:[#allocation9 + $0x340] sm:$0xf]
    %v2298 = vld [vmem:[#allocation9 + $0x344] sm:$0xf]
    %v2299 = vld [vmem:[#allocation9 + $0x348] sm:$0xf]
    %v2300 = vld [vmem:[#allocation9 + $0x34c] sm:$0xf]
    %v2301 = vld [vmem:[#allocation9 + $0x350] sm:$0xf]
    %v2302 = vld [vmem:[#allocation9 + $0x354] sm:$0xf]
    %v2303 = vld [vmem:[#allocation9 + $0x358] sm:$0xf]
    %v2304 = vld [vmem:[#allocation9 + $0x35c] sm:$0xf]
    %v2305 = vld [vmem:[#allocation9 + $0x360] sm:$0xf]
    %v2306 = vld [vmem:[#allocation9 + $0x364] sm:$0xf]
    %v2307 = vld [vmem:[#allocation9 + $0x368] sm:$0xf]
    %v2308 = vld [vmem:[#allocation9 + $0x36c] sm:$0xf]
    %v2309 = vld [vmem:[#allocation9 + $0x370] sm:$0xf]
    %v2310 = vld [vmem:[#allocation9 + $0x374] sm:$0xf]
    %v2311 = vld [vmem:[#allocation9 + $0x378] sm:$0xf]
    %v2312 = vld [vmem:[#allocation9 + $0x37c] sm:$0xf]
    %v2313 = vld [vmem:[#allocation9 + $0x380] sm:$0xf]
    %v2314 = vld [vmem:[#allocation9 + $0x384] sm:$0xf]
    %v2315 = vld [vmem:[#allocation9 + $0x388] sm:$0xf]
    %v2316 = vld [vmem:[#allocation9 + $0x38c] sm:$0xf]
    %v2317 = vld [vmem:[#allocation9 + $0x390] sm:$0xf]
    %v2318 = vld [vmem:[#allocation9 + $0x394] sm:$0xf]
    %v2319 = vld [vmem:[#allocation9 + $0x398] sm:$0xf]
    %v2320 = vld [vmem:[#allocation9 + $0x39c] sm:$0xf]
    %v2321 = vld [vmem:[#allocation9 + $0x3a0] sm:$0xf]
    %v2322 = vld [vmem:[#allocation9 + $0x3a4] sm:$0xf]
    %v2323 = vld [vmem:[#allocation9 + $0x3a8] sm:$0xf]
    %v2324 = vld [vmem:[#allocation9 + $0x3ac] sm:$0xf]
    %v2325 = vld [vmem:[#allocation9 + $0x3b0] sm:$0xf]
    %v2326 = vld [vmem:[#allocation9 + $0x3b4] sm:$0xf]
    %v2327 = vld [vmem:[#allocation9 + $0x3b8] sm:$0xf]
    %v2328 = vld [vmem:[#allocation9 + $0x3bc] sm:$0xf]
    %v2329 = vld [vmem:[#allocation9 + $0x3c0] sm:$0xf]
    %v2330 = vld [vmem:[#allocation9 + $0x3c4] sm:$0xf]
    %v2331 = vld [vmem:[#allocation9 + $0x3c8] sm:$0xf]
    %v2332 = vld [vmem:[#allocation9 + $0x3cc] sm:$0xf]
    %v2333 = vld [vmem:[#allocation9 + $0x3d0] sm:$0xf]
    %v2334 = vld [vmem:[#allocation9 + $0x3d4] sm:$0xf]
    %v2335 = vld [vmem:[#allocation9 + $0x3d8] sm:$0xf]
    %v2336 = vld [vmem:[#allocation9 + $0x3dc] sm:$0xf]
    %v2337 = vld [vmem:[#allocation9 + $0x3e0] sm:$0xf]
    %v2338 = vld [vmem:[#allocation9 + $0x3e4] sm:$0xf]
    %v2339 = vld [vmem:[#allocation9 + $0x3e8] sm:$0xf]
    %v2340 = vld [vmem:[#allocation9 + $0x3ec] sm:$0xf]
    %v2341 = vld [vmem:[#allocation9 + $0x3f0] sm:$0xf]
    %v2342 = vld [vmem:[#allocation9 + $0x3f4] sm:$0xf]
    %v2343 = vld [vmem:[#allocation9 + $0x3f8] sm:$0xf]
    %v2344 = vld [vmem:[#allocation9 + $0x3fc] sm:$0xf]
    %v2345 = vld [vmem:[%s6] sm:$0x1]
    %v2347 = vperm.slane %v2345, 0
    %v2605 = vunpack.c.l.b16 %v2089
    %v2606 = vunpack.c.l.b16 %v2090
    %v2607 = vunpack.c.l.b16 %v2091
    %v2608 = vunpack.c.l.b16 %v2092
    %v2609 = vunpack.c.l.b16 %v2093
    %v2610 = vunpack.c.l.b16 %v2094
    %v2611 = vunpack.c.l.b16 %v2095
    %v2612 = vunpack.c.l.b16 %v2096
    %v2613 = vunpack.c.l.b16 %v2097
    %v2614 = vunpack.c.l.b16 %v2098
    %v2615 = vunpack.c.l.b16 %v2099
    %v2616 = vunpack.c.l.b16 %v2100
    %v2617 = vunpack.c.l.b16 %v2101
    %v2618 = vunpack.c.l.b16 %v2102
    %v2619 = vunpack.c.l.b16 %v2103
    %v2620 = vunpack.c.l.b16 %v2104
    %v2621 = vunpack.c.l.b16 %v2105
    %v2622 = vunpack.c.l.b16 %v2106
    %v2623 = vunpack.c.l.b16 %v2107
    %v2624 = vunpack.c.l.b16 %v2108
    %v2625 = vunpack.c.l.b16 %v2109
    %v2626 = vunpack.c.l.b16 %v2110
    %v2627 = vunpack.c.l.b16 %v2111
    %v2628 = vunpack.c.l.b16 %v2112
    %v2629 = vunpack.c.l.b16 %v2113
    %v2630 = vunpack.c.l.b16 %v2114
    %v2631 = vunpack.c.l.b16 %v2115
    %v2632 = vunpack.c.l.b16 %v2116
    %v2633 = vunpack.c.l.b16 %v2117
    %v2634 = vunpack.c.l.b16 %v2118
    %v2635 = vunpack.c.l.b16 %v2119
    %v2636 = vunpack.c.l.b16 %v2120
    %v2637 = vunpack.c.l.b16 %v2121
    %v2638 = vunpack.c.l.b16 %v2122
    %v2639 = vunpack.c.l.b16 %v2123
    %v2640 = vunpack.c.l.b16 %v2124
    %v2641 = vunpack.c.l.b16 %v2125
    %v2642 = vunpack.c.l.b16 %v2126
    %v2643 = vunpack.c.l.b16 %v2127
    %v2644 = vunpack.c.l.b16 %v2128
    %v2645 = vunpack.c.l.b16 %v2129
    %v2646 = vunpack.c.l.b16 %v2130
    %v2647 = vunpack.c.l.b16 %v2131
    %v2648 = vunpack.c.l.b16 %v2132
    %v2649 = vunpack.c.l.b16 %v2133
    %v2650 = vunpack.c.l.b16 %v2134
    %v2651 = vunpack.c.l.b16 %v2135
    %v2652 = vunpack.c.l.b16 %v2136
    %v2653 = vunpack.c.l.b16 %v2137
    %v2654 = vunpack.c.l.b16 %v2138
    %v2655 = vunpack.c.l.b16 %v2139
    %v2656 = vunpack.c.l.b16 %v2140
    %v2657 = vunpack.c.l.b16 %v2141
    %v2658 = vunpack.c.l.b16 %v2142
    %v2659 = vunpack.c.l.b16 %v2143
    %v2660 = vunpack.c.l.b16 %v2144
    %v2661 = vunpack.c.l.b16 %v2145
    %v2662 = vunpack.c.l.b16 %v2146
    %v2663 = vunpack.c.l.b16 %v2147
    %v2664 = vunpack.c.l.b16 %v2148
    %v2665 = vunpack.c.l.b16 %v2149
    %v2666 = vunpack.c.l.b16 %v2150
    %v2667 = vunpack.c.l.b16 %v2151
    %v2668 = vunpack.c.l.b16 %v2152
    %v2669 = vunpack.c.l.b16 %v2153
    %v2670 = vunpack.c.l.b16 %v2154
    %v2671 = vunpack.c.l.b16 %v2155
    %v2672 = vunpack.c.l.b16 %v2156
    %v2673 = vunpack.c.l.b16 %v2157
    %v2674 = vunpack.c.l.b16 %v2158
    %v2675 = vunpack.c.l.b16 %v2159
    %v2676 = vunpack.c.l.b16 %v2160
    %v2677 = vunpack.c.l.b16 %v2161
    %v2678 = vunpack.c.l.b16 %v2162
    %v2679 = vunpack.c.l.b16 %v2163
    %v2680 = vunpack.c.l.b16 %v2164
    %v2681 = vunpack.c.l.b16 %v2165
    %v2682 = vunpack.c.l.b16 %v2166
    %v2683 = vunpack.c.l.b16 %v2167
    %v2684 = vunpack.c.l.b16 %v2168
    %v2685 = vunpack.c.l.b16 %v2169
    %v2686 = vunpack.c.l.b16 %v2170
    %v2687 = vunpack.c.l.b16 %v2171
    %v2688 = vunpack.c.l.b16 %v2172
    %v2689 = vunpack.c.l.b16 %v2173
    %v2690 = vunpack.c.l.b16 %v2174
    %v2691 = vunpack.c.l.b16 %v2175
    %v2692 = vunpack.c.l.b16 %v2176
    %v2693 = vunpack.c.l.b16 %v2177
    %v2694 = vunpack.c.l.b16 %v2178
    %v2695 = vunpack.c.l.b16 %v2179
    %v2696 = vunpack.c.l.b16 %v2180
    %v2697 = vunpack.c.l.b16 %v2181
    %v2698 = vunpack.c.l.b16 %v2182
    %v2699 = vunpack.c.l.b16 %v2183
    %v2700 = vunpack.c.l.b16 %v2184
    %v2701 = vunpack.c.l.b16 %v2185
    %v2702 = vunpack.c.l.b16 %v2186
    %v2703 = vunpack.c.l.b16 %v2187
    %v2704 = vunpack.c.l.b16 %v2188
    %v2705 = vunpack.c.l.b16 %v2189
    %v2706 = vunpack.c.l.b16 %v2190
    %v2707 = vunpack.c.l.b16 %v2191
    %v2708 = vunpack.c.l.b16 %v2192
    %v2709 = vunpack.c.l.b16 %v2193
    %v2710 = vunpack.c.l.b16 %v2194
    %v2711 = vunpack.c.l.b16 %v2195
    %v2712 = vunpack.c.l.b16 %v2196
    %v2713 = vunpack.c.l.b16 %v2197
    %v2714 = vunpack.c.l.b16 %v2198
    %v2715 = vunpack.c.l.b16 %v2199
    %v2716 = vunpack.c.l.b16 %v2200
    %v2717 = vunpack.c.l.b16 %v2201
    %v2718 = vunpack.c.l.b16 %v2202
    %v2719 = vunpack.c.l.b16 %v2203
    %v2720 = vunpack.c.l.b16 %v2204
    %v2721 = vunpack.c.l.b16 %v2205
    %v2722 = vunpack.c.l.b16 %v2206
    %v2723 = vunpack.c.l.b16 %v2207
    %v2724 = vunpack.c.l.b16 %v2208
    %v2725 = vunpack.c.l.b16 %v2209
    %v2726 = vunpack.c.l.b16 %v2210
    %v2727 = vunpack.c.l.b16 %v2211
    %v2728 = vunpack.c.l.b16 %v2212
    %v2729 = vunpack.c.l.b16 %v2213
    %v2730 = vunpack.c.l.b16 %v2214
    %v2731 = vunpack.c.l.b16 %v2215
    %v2732 = vunpack.c.l.b16 %v2216
    %v2733 = vunpack.c.l.b16 %v2217
    %v2734 = vunpack.c.l.b16 %v2218
    %v2735 = vunpack.c.l.b16 %v2219
    %v2736 = vunpack.c.l.b16 %v2220
    %v2737 = vunpack.c.l.b16 %v2221
    %v2738 = vunpack.c.l.b16 %v2222
    %v2739 = vunpack.c.l.b16 %v2223
    %v2740 = vunpack.c.l.b16 %v2224
    %v2741 = vunpack.c.l.b16 %v2225
    %v2742 = vunpack.c.l.b16 %v2226
    %v2743 = vunpack.c.l.b16 %v2227
    %v2744 = vunpack.c.l.b16 %v2228
    %v2745 = vunpack.c.l.b16 %v2229
    %v2746 = vunpack.c.l.b16 %v2230
    %v2747 = vunpack.c.l.b16 %v2231
    %v2748 = vunpack.c.l.b16 %v2232
    %v2749 = vunpack.c.l.b16 %v2233
    %v2750 = vunpack.c.l.b16 %v2234
    %v2751 = vunpack.c.l.b16 %v2235
    %v2752 = vunpack.c.l.b16 %v2236
    %v2753 = vunpack.c.l.b16 %v2237
    %v2754 = vunpack.c.l.b16 %v2238
    %v2755 = vunpack.c.l.b16 %v2239
    %v2756 = vunpack.c.l.b16 %v2240
    %v2757 = vunpack.c.l.b16 %v2241
    %v2758 = vunpack.c.l.b16 %v2242
    %v2759 = vunpack.c.l.b16 %v2243
    %v2760 = vunpack.c.l.b16 %v2244
    %v2761 = vunpack.c.l.b16 %v2245
    %v2762 = vunpack.c.l.b16 %v2246
    %v2763 = vunpack.c.l.b16 %v2247
    %v2764 = vunpack.c.l.b16 %v2248
    %v2765 = vunpack.c.l.b16 %v2249
    %v2766 = vunpack.c.l.b16 %v2250
    %v2767 = vunpack.c.l.b16 %v2251
    %v2768 = vunpack.c.l.b16 %v2252
    %v2769 = vunpack.c.l.b16 %v2253
    %v2770 = vunpack.c.l.b16 %v2254
    %v2771 = vunpack.c.l.b16 %v2255
    %v2772 = vunpack.c.l.b16 %v2256
    %v2773 = vunpack.c.l.b16 %v2257
    %v2774 = vunpack.c.l.b16 %v2258
    %v2775 = vunpack.c.l.b16 %v2259
    %v2776 = vunpack.c.l.b16 %v2260
    %v2777 = vunpack.c.l.b16 %v2261
    %v2778 = vunpack.c.l.b16 %v2262
    %v2779 = vunpack.c.l.b16 %v2263
    %v2780 = vunpack.c.l.b16 %v2264
    %v2781 = vunpack.c.l.b16 %v2265
    %v2782 = vunpack.c.l.b16 %v2266
    %v2783 = vunpack.c.l.b16 %v2267
    %v2784 = vunpack.c.l.b16 %v2268
    %v2785 = vunpack.c.l.b16 %v2269
    %v2786 = vunpack.c.l.b16 %v2270
    %v2787 = vunpack.c.l.b16 %v2271
    %v2788 = vunpack.c.l.b16 %v2272
    %v2789 = vunpack.c.l.b16 %v2273
    %v2790 = vunpack.c.l.b16 %v2274
    %v2791 = vunpack.c.l.b16 %v2275
    %v2792 = vunpack.c.l.b16 %v2276
    %v2793 = vunpack.c.l.b16 %v2277
    %v2794 = vunpack.c.l.b16 %v2278
    %v2795 = vunpack.c.l.b16 %v2279
    %v2796 = vunpack.c.l.b16 %v2280
    %v2797 = vunpack.c.l.b16 %v2281
    %v2798 = vunpack.c.l.b16 %v2282
    %v2799 = vunpack.c.l.b16 %v2283
    %v2800 = vunpack.c.l.b16 %v2284
    %v2801 = vunpack.c.l.b16 %v2285
    %v2802 = vunpack.c.l.b16 %v2286
    %v2803 = vunpack.c.l.b16 %v2287
    %v2804 = vunpack.c.l.b16 %v2288
    %v2805 = vunpack.c.l.b16 %v2289
    %v2806 = vunpack.c.l.b16 %v2290
    %v2807 = vunpack.c.l.b16 %v2291
    %v2808 = vunpack.c.l.b16 %v2292
    %v2809 = vunpack.c.l.b16 %v2293
    %v2810 = vunpack.c.l.b16 %v2294
    %v2811 = vunpack.c.l.b16 %v2295
    %v2812 = vunpack.c.l.b16 %v2296
    %v2813 = vunpack.c.l.b16 %v2297
    %v2814 = vunpack.c.l.b16 %v2298
    %v2815 = vunpack.c.l.b16 %v2299
    %v2816 = vunpack.c.l.b16 %v2300
    %v2817 = vunpack.c.l.b16 %v2301
    %v2818 = vunpack.c.l.b16 %v2302
    %v2819 = vunpack.c.l.b16 %v2303
    %v2820 = vunpack.c.l.b16 %v2304
    %v2821 = vunpack.c.l.b16 %v2305
    %v2822 = vunpack.c.l.b16 %v2306
    %v2823 = vunpack.c.l.b16 %v2307
    %v2824 = vunpack.c.l.b16 %v2308
    %v2825 = vunpack.c.l.b16 %v2309
    %v2826 = vunpack.c.l.b16 %v2310
    %v2827 = vunpack.c.l.b16 %v2311
    %v2828 = vunpack.c.l.b16 %v2312
    %v2829 = vunpack.c.l.b16 %v2313
    %v2830 = vunpack.c.l.b16 %v2314
    %v2831 = vunpack.c.l.b16 %v2315
    %v2832 = vunpack.c.l.b16 %v2316
    %v2833 = vunpack.c.l.b16 %v2317
    %v2834 = vunpack.c.l.b16 %v2318
    %v2835 = vunpack.c.l.b16 %v2319
    %v2836 = vunpack.c.l.b16 %v2320
    %v2837 = vunpack.c.l.b16 %v2321
    %v2838 = vunpack.c.l.b16 %v2322
    %v2839 = vunpack.c.l.b16 %v2323
    %v2840 = vunpack.c.l.b16 %v2324
    %v2841 = vunpack.c.l.b16 %v2325
    %v2842 = vunpack.c.l.b16 %v2326
    %v2843 = vunpack.c.l.b16 %v2327
    %v2844 = vunpack.c.l.b16 %v2328
    %v2845 = vunpack.c.l.b16 %v2329
    %v2846 = vunpack.c.l.b16 %v2330
    %v2847 = vunpack.c.l.b16 %v2331
    %v2848 = vunpack.c.l.b16 %v2332
    %v2849 = vunpack.c.l.b16 %v2333
    %v2850 = vunpack.c.l.b16 %v2334
    %v2851 = vunpack.c.l.b16 %v2335
    %v2852 = vunpack.c.l.b16 %v2336
    %v2853 = vunpack.c.l.b16 %v2337
    %v2854 = vunpack.c.l.b16 %v2338
    %v2855 = vunpack.c.l.b16 %v2339
    %v2856 = vunpack.c.l.b16 %v2340
    %v2857 = vunpack.c.l.b16 %v2341
    %v2858 = vunpack.c.l.b16 %v2342
    %v2859 = vunpack.c.l.b16 %v2343
    %v2860 = vunpack.c.l.b16 %v2344
    %v2861 = vpack.c.b16 %v2606, %v2605
    %v2862 = vpack.c.b16 %v2608, %v2607
    %v2863 = vpack.c.b16 %v2610, %v2609
    %v2864 = vpack.c.b16 %v2612, %v2611
    %v2865 = vpack.c.b16 %v2614, %v2613
    %v2866 = vpack.c.b16 %v2616, %v2615
    %v2867 = vpack.c.b16 %v2618, %v2617
    %v2868 = vpack.c.b16 %v2620, %v2619
    %v2869 = vpack.c.b16 %v2622, %v2621
    %v2870 = vpack.c.b16 %v2624, %v2623
    %v2871 = vpack.c.b16 %v2626, %v2625
    %v2872 = vpack.c.b16 %v2628, %v2627
    %v2873 = vpack.c.b16 %v2630, %v2629
    %v2874 = vpack.c.b16 %v2632, %v2631
    %v2875 = vpack.c.b16 %v2634, %v2633
    %v2876 = vpack.c.b16 %v2636, %v2635
    %v2877 = vpack.c.b16 %v2638, %v2637
    %v2878 = vpack.c.b16 %v2640, %v2639
    %v2879 = vpack.c.b16 %v2642, %v2641
    %v2880 = vpack.c.b16 %v2644, %v2643
    %v2881 = vpack.c.b16 %v2646, %v2645
    %v2882 = vpack.c.b16 %v2648, %v2647
    %v2883 = vpack.c.b16 %v2650, %v2649
    %v2884 = vpack.c.b16 %v2652, %v2651
    %v2885 = vpack.c.b16 %v2654, %v2653
    %v2886 = vpack.c.b16 %v2656, %v2655
    %v2887 = vpack.c.b16 %v2658, %v2657
    %v2888 = vpack.c.b16 %v2660, %v2659
    %v2889 = vpack.c.b16 %v2662, %v2661
    %v2890 = vpack.c.b16 %v2664, %v2663
    %v2891 = vpack.c.b16 %v2666, %v2665
    %v2892 = vpack.c.b16 %v2668, %v2667
    %v2893 = vpack.c.b16 %v2670, %v2669
    %v2894 = vpack.c.b16 %v2672, %v2671
    %v2895 = vpack.c.b16 %v2674, %v2673
    %v2896 = vpack.c.b16 %v2676, %v2675
    %v2897 = vpack.c.b16 %v2678, %v2677
    %v2898 = vpack.c.b16 %v2680, %v2679
    %v2899 = vpack.c.b16 %v2682, %v2681
    %v2900 = vpack.c.b16 %v2684, %v2683
    %v2901 = vpack.c.b16 %v2686, %v2685
    %v2902 = vpack.c.b16 %v2688, %v2687
    %v2903 = vpack.c.b16 %v2690, %v2689
    %v2904 = vpack.c.b16 %v2692, %v2691
    %v2905 = vpack.c.b16 %v2694, %v2693
    %v2906 = vpack.c.b16 %v2696, %v2695
    %v2907 = vpack.c.b16 %v2698, %v2697
    %v2908 = vpack.c.b16 %v2700, %v2699
    %v2909 = vpack.c.b16 %v2702, %v2701
    %v2910 = vpack.c.b16 %v2704, %v2703
    %v2911 = vpack.c.b16 %v2706, %v2705
    %v2912 = vpack.c.b16 %v2708, %v2707
    %v2913 = vpack.c.b16 %v2710, %v2709
    %v2914 = vpack.c.b16 %v2712, %v2711
    %v2915 = vpack.c.b16 %v2714, %v2713
    %v2916 = vpack.c.b16 %v2716, %v2715
    %v2917 = vpack.c.b16 %v2718, %v2717
    %v2918 = vpack.c.b16 %v2720, %v2719
    %v2919 = vpack.c.b16 %v2722, %v2721
    %v2920 = vpack.c.b16 %v2724, %v2723
    %v2921 = vpack.c.b16 %v2726, %v2725
    %v2922 = vpack.c.b16 %v2728, %v2727
    %v2923 = vpack.c.b16 %v2730, %v2729
    %v2924 = vpack.c.b16 %v2732, %v2731
    %v2925 = vpack.c.b16 %v2734, %v2733
    %v2926 = vpack.c.b16 %v2736, %v2735
    %v2927 = vpack.c.b16 %v2738, %v2737
    %v2928 = vpack.c.b16 %v2740, %v2739
    %v2929 = vpack.c.b16 %v2742, %v2741
    %v2930 = vpack.c.b16 %v2744, %v2743
    %v2931 = vpack.c.b16 %v2746, %v2745
    %v2932 = vpack.c.b16 %v2748, %v2747
    %v2933 = vpack.c.b16 %v2750, %v2749
    %v2934 = vpack.c.b16 %v2752, %v2751
    %v2935 = vpack.c.b16 %v2754, %v2753
    %v2936 = vpack.c.b16 %v2756, %v2755
    %v2937 = vpack.c.b16 %v2758, %v2757
    %v2938 = vpack.c.b16 %v2760, %v2759
    %v2939 = vpack.c.b16 %v2762, %v2761
    %v2940 = vpack.c.b16 %v2764, %v2763
    %v2941 = vpack.c.b16 %v2766, %v2765
    %v2942 = vpack.c.b16 %v2768, %v2767
    %v2943 = vpack.c.b16 %v2770, %v2769
    %v2944 = vpack.c.b16 %v2772, %v2771
    %v2945 = vpack.c.b16 %v2774, %v2773
    %v2946 = vpack.c.b16 %v2776, %v2775
    %v2947 = vpack.c.b16 %v2778, %v2777
    %v2948 = vpack.c.b16 %v2780, %v2779
    %v2949 = vpack.c.b16 %v2782, %v2781
    %v2950 = vpack.c.b16 %v2784, %v2783
    %v2951 = vpack.c.b16 %v2786, %v2785
    %v2952 = vpack.c.b16 %v2788, %v2787
    %v2953 = vpack.c.b16 %v2790, %v2789
    %v2954 = vpack.c.b16 %v2792, %v2791
    %v2955 = vpack.c.b16 %v2794, %v2793
    %v2956 = vpack.c.b16 %v2796, %v2795
    %v2957 = vpack.c.b16 %v2798, %v2797
    %v2958 = vpack.c.b16 %v2800, %v2799
    %v2959 = vpack.c.b16 %v2802, %v2801
    %v2960 = vpack.c.b16 %v2804, %v2803
    %v2961 = vpack.c.b16 %v2806, %v2805
    %v2962 = vpack.c.b16 %v2808, %v2807
    %v2963 = vpack.c.b16 %v2810, %v2809
    %v2964 = vpack.c.b16 %v2812, %v2811
    %v2965 = vpack.c.b16 %v2814, %v2813
    %v2966 = vpack.c.b16 %v2816, %v2815
    %v2967 = vpack.c.b16 %v2818, %v2817
    %v2968 = vpack.c.b16 %v2820, %v2819
    %v2969 = vpack.c.b16 %v2822, %v2821
    %v2970 = vpack.c.b16 %v2824, %v2823
    %v2971 = vpack.c.b16 %v2826, %v2825
    %v2972 = vpack.c.b16 %v2828, %v2827
    %v2973 = vpack.c.b16 %v2830, %v2829
    %v2974 = vpack.c.b16 %v2832, %v2831
    %v2975 = vpack.c.b16 %v2834, %v2833
    %v2976 = vpack.c.b16 %v2836, %v2835
    %v2977 = vpack.c.b16 %v2838, %v2837
    %v2978 = vpack.c.b16 %v2840, %v2839
    %v2979 = vpack.c.b16 %v2842, %v2841
    %v2980 = vpack.c.b16 %v2844, %v2843
    %v2981 = vpack.c.b16 %v2846, %v2845
    %v2982 = vpack.c.b16 %v2848, %v2847
    %v2983 = vpack.c.b16 %v2850, %v2849
    %v2984 = vpack.c.b16 %v2852, %v2851
    %v2985 = vpack.c.b16 %v2854, %v2853
    %v2986 = vpack.c.b16 %v2856, %v2855
    %v2987 = vpack.c.b16 %v2858, %v2857
    %v2988 = vpack.c.b16 %v2860, %v2859
    %3117 = vmatpush.bf16.msra.mxu0 %v2868
    %3118 = vmatpush.bf16.msra.mxu0 %v2867
    %3119 = vmatpush.bf16.msra.mxu0 %v2866
    %3120 = vmatpush.bf16.msra.mxu0 %v2865
    %3121 = vmatpush.bf16.msra.mxu0 %v2864
    %3122 = vmatpush.bf16.msra.mxu0 %v2863
    %3123 = vmatpush.bf16.msra.mxu0 %v2862
    %3124 = vmatpush.bf16.msra.mxu0 %v2861
    %3125 = vmatmul.bf16.gmra.mxu0 %v2073
    %v3126 = vpop.f32.mrf.mxu0
    %v3127 = vadd.f32 %v2347, %v3126
    %v3128 = vpop.f32.mrf.mxu0
    %3129 = vdwg.mxu0
    %3130 = vmatpush.bf16.msra.mxu0 %v2876
    %3131 = vmatpush.bf16.msra.mxu0 %v2875
    %3132 = vmatpush.bf16.msra.mxu0 %v2874
    %3133 = vmatpush.bf16.msra.mxu0 %v2873
    %3134 = vmatpush.bf16.msra.mxu0 %v2872
    %3135 = vmatpush.bf16.msra.mxu0 %v2871
    %3136 = vmatpush.bf16.msra.mxu0 %v2870
    %3137 = vmatpush.bf16.msra.mxu0 %v2869
    %3138 = vmatmul.bf16.gmra.mxu0 %v2074
    %v3139 = vpop.f32.mrf.mxu0
    %v3140 = vadd.f32 %v3127, %v3139
    %v3141 = vpop.f32.mrf.mxu0
    %3142 = vdwg.mxu0
    %3143 = vmatpush.bf16.msra.mxu0 %v2884
    %3144 = vmatpush.bf16.msra.mxu0 %v2883
    %3145 = vmatpush.bf16.msra.mxu0 %v2882
    %3146 = vmatpush.bf16.msra.mxu0 %v2881
    %3147 = vmatpush.bf16.msra.mxu0 %v2880
    %3148 = vmatpush.bf16.msra.mxu0 %v2879
    %3149 = vmatpush.bf16.msra.mxu0 %v2878
    %3150 = vmatpush.bf16.msra.mxu0 %v2877
    %3151 = vmatmul.bf16.gmra.mxu0 %v2075
    %v3152 = vpop.f32.mrf.mxu0
    %v3153 = vadd.f32 %v3140, %v3152
    %v3154 = vpop.f32.mrf.mxu0
    %3155 = vdwg.mxu0
    %3156 = vmatpush.bf16.msra.mxu0 %v2892
    %3157 = vmatpush.bf16.msra.mxu0 %v2891
    %3158 = vmatpush.bf16.msra.mxu0 %v2890
    %3159 = vmatpush.bf16.msra.mxu0 %v2889
    %3160 = vmatpush.bf16.msra.mxu0 %v2888
    %3161 = vmatpush.bf16.msra.mxu0 %v2887
    %3162 = vmatpush.bf16.msra.mxu0 %v2886
    %3163 = vmatpush.bf16.msra.mxu0 %v2885
    %3164 = vmatmul.bf16.gmra.mxu0 %v2076
    %v3165 = vpop.f32.mrf.mxu0
    %v3166 = vadd.f32 %v3153, %v3165
    %v3167 = vpop.f32.mrf.mxu0
    %3168 = vdwg.mxu0
    %3169 = vmatpush.bf16.msra.mxu0 %v2900
    %3170 = vmatpush.bf16.msra.mxu0 %v2899
    %3171 = vmatpush.bf16.msra.mxu0 %v2898
    %3172 = vmatpush.bf16.msra.mxu0 %v2897
    %3173 = vmatpush.bf16.msra.mxu0 %v2896
    %3174 = vmatpush.bf16.msra.mxu0 %v2895
    %3175 = vmatpush.bf16.msra.mxu0 %v2894
    %3176 = vmatpush.bf16.msra.mxu0 %v2893
    %3177 = vmatmul.bf16.gmra.mxu0 %v2077
    %v3178 = vpop.f32.mrf.mxu0
    %v3179 = vadd.f32 %v3166, %v3178
    %v3180 = vpop.f32.mrf.mxu0
    %3181 = vdwg.mxu0
    %3182 = vmatpush.bf16.msra.mxu0 %v2908
    %3183 = vmatpush.bf16.msra.mxu0 %v2907
    %3184 = vmatpush.bf16.msra.mxu0 %v2906
    %3185 = vmatpush.bf16.msra.mxu0 %v2905
    %3186 = vmatpush.bf16.msra.mxu0 %v2904
    %3187 = vmatpush.bf16.msra.mxu0 %v2903
    %3188 = vmatpush.bf16.msra.mxu0 %v2902
    %3189 = vmatpush.bf16.msra.mxu0 %v2901
    %3190 = vmatmul.bf16.gmra.mxu0 %v2078
    %v3191 = vpop.f32.mrf.mxu0
    %v3192 = vadd.f32 %v3179, %v3191
    %v3193 = vpop.f32.mrf.mxu0
    %3194 = vdwg.mxu0
    %3195 = vmatpush.bf16.msra.mxu0 %v2916
    %3196 = vmatpush.bf16.msra.mxu0 %v2915
    %3197 = vmatpush.bf16.msra.mxu0 %v2914
    %3198 = vmatpush.bf16.msra.mxu0 %v2913
    %3199 = vmatpush.bf16.msra.mxu0 %v2912
    %3200 = vmatpush.bf16.msra.mxu0 %v2911
    %3201 = vmatpush.bf16.msra.mxu0 %v2910
    %3202 = vmatpush.bf16.msra.mxu0 %v2909
    %3203 = vmatmul.bf16.gmra.mxu0 %v2079
    %v3204 = vpop.f32.mrf.mxu0
    %v3205 = vadd.f32 %v3192, %v3204
    %v3206 = vpop.f32.mrf.mxu0
    %3207 = vdwg.mxu0
    %3208 = vmatpush.bf16.msra.mxu0 %v2924
    %3209 = vmatpush.bf16.msra.mxu0 %v2923
    %3210 = vmatpush.bf16.msra.mxu0 %v2922
    %3211 = vmatpush.bf16.msra.mxu0 %v2921
    %3212 = vmatpush.bf16.msra.mxu0 %v2920
    %3213 = vmatpush.bf16.msra.mxu0 %v2919
    %3214 = vmatpush.bf16.msra.mxu0 %v2918
    %3215 = vmatpush.bf16.msra.mxu0 %v2917
    %3216 = vmatmul.bf16.gmra.mxu0 %v2080
    %v3217 = vpop.f32.mrf.mxu0
    %v3218 = vadd.f32 %v3205, %v3217
    %v3219 = vpop.f32.mrf.mxu0
    %3220 = vdwg.mxu0
    %3221 = vmatpush.bf16.msra.mxu0 %v2932
    %3222 = vmatpush.bf16.msra.mxu0 %v2931
    %3223 = vmatpush.bf16.msra.mxu0 %v2930
    %3224 = vmatpush.bf16.msra.mxu0 %v2929
    %3225 = vmatpush.bf16.msra.mxu0 %v2928
    %3226 = vmatpush.bf16.msra.mxu0 %v2927
    %3227 = vmatpush.bf16.msra.mxu0 %v2926
    %3228 = vmatpush.bf16.msra.mxu0 %v2925
    %3229 = vmatmul.bf16.gmra.mxu0 %v2081
    %v3230 = vpop.f32.mrf.mxu0
    %v3231 = vadd.f32 %v3218, %v3230
    %v3232 = vpop.f32.mrf.mxu0
    %3233 = vdwg.mxu0
    %3234 = vmatpush.bf16.msra.mxu0 %v2940
    %3235 = vmatpush.bf16.msra.mxu0 %v2939
    %3236 = vmatpush.bf16.msra.mxu0 %v2938
    %3237 = vmatpush.bf16.msra.mxu0 %v2937
    %3238 = vmatpush.bf16.msra.mxu0 %v2936
    %3239 = vmatpush.bf16.msra.mxu0 %v2935
    %3240 = vmatpush.bf16.msra.mxu0 %v2934
    %3241 = vmatpush.bf16.msra.mxu0 %v2933
    %3242 = vmatmul.bf16.gmra.mxu0 %v2082
    %v3243 = vpop.f32.mrf.mxu0
    %v3244 = vadd.f32 %v3231, %v3243
    %v3245 = vpop.f32.mrf.mxu0
    %3246 = vdwg.mxu0
    %3247 = vmatpush.bf16.msra.mxu0 %v2948
    %3248 = vmatpush.bf16.msra.mxu0 %v2947
    %3249 = vmatpush.bf16.msra.mxu0 %v2946
    %3250 = vmatpush.bf16.msra.mxu0 %v2945
    %3251 = vmatpush.bf16.msra.mxu0 %v2944
    %3252 = vmatpush.bf16.msra.mxu0 %v2943
    %3253 = vmatpush.bf16.msra.mxu0 %v2942
    %3254 = vmatpush.bf16.msra.mxu0 %v2941
    %3255 = vmatmul.bf16.gmra.mxu0 %v2083
    %v3256 = vpop.f32.mrf.mxu0
    %v3257 = vadd.f32 %v3244, %v3256
    %v3258 = vpop.f32.mrf.mxu0
    %3259 = vdwg.mxu0
    %3260 = vmatpush.bf16.msra.mxu0 %v2956
    %3261 = vmatpush.bf16.msra.mxu0 %v2955
    %3262 = vmatpush.bf16.msra.mxu0 %v2954
    %3263 = vmatpush.bf16.msra.mxu0 %v2953
    %3264 = vmatpush.bf16.msra.mxu0 %v2952
    %3265 = vmatpush.bf16.msra.mxu0 %v2951
    %3266 = vmatpush.bf16.msra.mxu0 %v2950
    %3267 = vmatpush.bf16.msra.mxu0 %v2949
    %3268 = vmatmul.bf16.gmra.mxu0 %v2084
    %v3269 = vpop.f32.mrf.mxu0
    %v3270 = vadd.f32 %v3257, %v3269
    %v3271 = vpop.f32.mrf.mxu0
    %3272 = vdwg.mxu0
    %3273 = vmatpush.bf16.msra.mxu0 %v2964
    %3274 = vmatpush.bf16.msra.mxu0 %v2963
    %3275 = vmatpush.bf16.msra.mxu0 %v2962
    %3276 = vmatpush.bf16.msra.mxu0 %v2961
    %3277 = vmatpush.bf16.msra.mxu0 %v2960
    %3278 = vmatpush.bf16.msra.mxu0 %v2959
    %3279 = vmatpush.bf16.msra.mxu0 %v2958
    %3280 = vmatpush.bf16.msra.mxu0 %v2957
    %3281 = vmatmul.bf16.gmra.mxu0 %v2085
    %v3282 = vpop.f32.mrf.mxu0
    %v3283 = vadd.f32 %v3270, %v3282
    %v3284 = vpop.f32.mrf.mxu0
    %3285 = vdwg.mxu0
    %3286 = vmatpush.bf16.msra.mxu0 %v2972
    %3287 = vmatpush.bf16.msra.mxu0 %v2971
    %3288 = vmatpush.bf16.msra.mxu0 %v2970
    %3289 = vmatpush.bf16.msra.mxu0 %v2969
    %3290 = vmatpush.bf16.msra.mxu0 %v2968
    %3291 = vmatpush.bf16.msra.mxu0 %v2967
    %3292 = vmatpush.bf16.msra.mxu0 %v2966
    %3293 = vmatpush.bf16.msra.mxu0 %v2965
    %3294 = vmatmul.bf16.gmra.mxu0 %v2086
    %v3295 = vpop.f32.mrf.mxu0
    %v3296 = vadd.f32 %v3283, %v3295
    %v3297 = vpop.f32.mrf.mxu0
    %3298 = vdwg.mxu0
    %3299 = vmatpush.bf16.msra.mxu0 %v2980
    %3300 = vmatpush.bf16.msra.mxu0 %v2979
    %3301 = vmatpush.bf16.msra.mxu0 %v2978
    %3302 = vmatpush.bf16.msra.mxu0 %v2977
    %3303 = vmatpush.bf16.msra.mxu0 %v2976
    %3304 = vmatpush.bf16.msra.mxu0 %v2975
    %3305 = vmatpush.bf16.msra.mxu0 %v2974
    %3306 = vmatpush.bf16.msra.mxu0 %v2973
    %3307 = vmatmul.bf16.gmra.mxu0 %v2087
    %v3308 = vpop.f32.mrf.mxu0
    %v3309 = vadd.f32 %v3296, %v3308
    %v3310 = vpop.f32.mrf.mxu0
    %3311 = vdwg.mxu0
    %3312 = vmatpush.bf16.msra.mxu0 %v2988
    %3313 = vmatpush.bf16.msra.mxu0 %v2987
    %3314 = vmatpush.bf16.msra.mxu0 %v2986
    %3315 = vmatpush.bf16.msra.mxu0 %v2985
    %3316 = vmatpush.bf16.msra.mxu0 %v2984
    %3317 = vmatpush.bf16.msra.mxu0 %v2983
    %3318 = vmatpush.bf16.msra.mxu0 %v2982
    %3319 = vmatpush.bf16.msra.mxu0 %v2981
    %3320 = vmatmul.bf16.gmra.mxu0 %v2088
    %v3321 = vpop.f32.mrf.mxu0
    %v3322 = vadd.f32 %v3309, %v3321
    %v3323 = vpop.f32.mrf.mxu0
    %3324 = vdwg.mxu0
    %v3325 = vmax.f32 %v3322, 0.0
    %v3326 = vpack.c.bf16 %v3325, %v3325
    %v3327 = vld [vmem:[%s7] sm:$0xf]
    %v3328 = vld [vmem:[%s7 + $0x4] sm:$0xf]
    %v3329 = vld [vmem:[%s7 + $0x8] sm:$0xf]
    %v3330 = vld [vmem:[%s7 + $0xc] sm:$0xf]
    %v3331 = vld [vmem:[%s7 + $0x10] sm:$0xf]
    %v3332 = vld [vmem:[%s7 + $0x14] sm:$0xf]
    %v3333 = vld [vmem:[%s7 + $0x18] sm:$0xf]
    %v3334 = vld [vmem:[%s7 + $0x1c] sm:$0xf]
    %v3335 = vld [vmem:[%s7 + $0x20] sm:$0xf]
    %v3336 = vld [vmem:[%s7 + $0x24] sm:$0xf]
    %v3337 = vld [vmem:[%s7 + $0x28] sm:$0xf]
    %v3338 = vld [vmem:[%s7 + $0x2c] sm:$0xf]
    %v3339 = vld [vmem:[%s7 + $0x30] sm:$0xf]
    %v3340 = vld [vmem:[%s7 + $0x34] sm:$0xf]
    %v3341 = vld [vmem:[%s7 + $0x38] sm:$0xf]
    %v3342 = vld [vmem:[%s7 + $0x3c] sm:$0xf]
    %v3359 = vunpack.c.l.b16 %v3327
    %v3360 = vunpack.c.l.b16 %v3328
    %v3361 = vunpack.c.l.b16 %v3329
    %v3362 = vunpack.c.l.b16 %v3330
    %v3363 = vunpack.c.l.b16 %v3331
    %v3364 = vunpack.c.l.b16 %v3332
    %v3365 = vunpack.c.l.b16 %v3333
    %v3366 = vunpack.c.l.b16 %v3334
    %v3367 = vunpack.c.l.b16 %v3335
    %v3368 = vunpack.c.l.b16 %v3336
    %v3369 = vunpack.c.l.b16 %v3337
    %v3370 = vunpack.c.l.b16 %v3338
    %v3371 = vunpack.c.l.b16 %v3339
    %v3372 = vunpack.c.l.b16 %v3340
    %v3373 = vunpack.c.l.b16 %v3341
    %v3374 = vunpack.c.l.b16 %v3342
    %v3375 = vpack.c.b16 %v3360, %v3359
    %v3376 = vpack.c.b16 %v3362, %v3361
    %v3377 = vpack.c.b16 %v3364, %v3363
    %v3378 = vpack.c.b16 %v3366, %v3365
    %v3379 = vpack.c.b16 %v3368, %v3367
    %v3380 = vpack.c.b16 %v3370, %v3369
    %v3381 = vpack.c.b16 %v3372, %v3371
    %v3382 = vpack.c.b16 %v3374, %v3373
    %3391 = vmatpush.bf16.msra.mxu0 %v3382
    %3392 = vmatpush.bf16.msra.mxu0 %v3381
    %3393 = vmatpush.bf16.msra.mxu0 %v3380
    %3394 = vmatpush.bf16.msra.mxu0 %v3379
    %3395 = vmatpush.bf16.msra.mxu0 %v3378
    %3396 = vmatpush.bf16.msra.mxu0 %v3377
    %3397 = vmatpush.bf16.msra.mxu0 %v3376
    %3398 = vmatpush.bf16.msra.mxu0 %v3375
    %3399 = vmatmul.bf16.gmra.mxu0 %v3326
    %v3400 = vpop.f32.mrf.mxu0
    %v3401 = vadd.f32 0.0, %v3400
    %v3402 = vpop.f32.mrf.mxu0
    %3403 = vdwg.mxu0
    %vm3404 = vcmask 74752
    %v3405 = vsel %vm3404, %v3401, -inf
    %3406 = vmax.xlane.f32.xlu0 %v3405
    %v3407 = vpop.xlane.xlu0 %3406
    %v3408 = vsub.f32 %v3401, %v3407
    %v3409 = vmul.f32 %v3408, 1.442695
    %v3410 = vpow.pop %v3409
    %v3411 = vsel %vm3404, %v3410, 0.0
    %3412 = vadd.xlane.f32.xlu0 %v3411
    %v3413 = vpop.xlane.xlu0 %3412
    %v3414 = vrcp.pop %v3413
    %v3415 = vmul.f32 %v3410, %v3414
    %3416 = vst.msk [vmem:[#allocation11] sm:$0x3] %vm3404, %v3415
    // Predicated region
    $region42: #{_lambda_.1} parent=1 // pred_check
      _
    $region43: #{_lambda_.1} parent=1 // pred_check_branch
      %3418 = sbr.rel (0) target = $region45
    $region44: #{_lambda_.1} parent=1 // pred_region
      %3420 = vsyncadd [#allocation8], 0
      %s3422 = sshll.u32 [#allocation11], 4
      %s3423 = int_to_ptr.vmem [resolvable:$true] %s3422
      %s3424 = sshll.u32 %s8, 4
      %s3425 = int_to_ptr.hbm [resolvable:$true] %s3424
      %3427 = dma.vmem_to_hbm [thread:$0]  %s3423, 32, %s3425, [#allocation8]
    $region45: #{_lambda_.1} parent=1 // pred_fallthru
      _
    // Predicated region
    $region46: #{_lambda_.1} parent=1 // pred_check
      _
    $region47: #{_lambda_.1} parent=1 // pred_check_branch
      %3429 = sbr.rel (0) target = $region49
    $region48: #{_lambda_.1} parent=1 // pred_region
      %3431 = dma.done [#allocation8], 32
    $region49: #{_lambda_.1} parent=1 // pred_fallthru
      _
    %3432 = vsyncpa [#allocation7], 1
    %3433 = vsyncpa [#allocation10], 1
    %3434 = vsyncpa [#allocation8], 1

</llo_original>
